<compile_context>
chip_gen: v5e
topology: v5e:2x2
jax: 0.10.0
libtpu: 0.0.40
codegen_flags: <defaults>
</compile_context>

<pallas_src>
import math

import numpy as np
import jax
import jax.numpy as jnp
from jax.experimental import pallas as pl
from jax.experimental.pallas import tpu as pltpu

# ----------------------------- config (consistent with the PyTorch module) -----------------------
BATCH = 2
IN_CHANS = 1
T_AUDIO = 256

SR = 2000
N_FFT = 32
WIN_LENGTH = 32
HOPSIZE = 8
N_MELS = 16
FMIN = 0.0
FMAX_AUG_RANGE = 2
FMAX = SR // 2 - FMAX_AUG_RANGE // 2          # same rule as AugmentMelSTFT when fmax is None

IMG_SIZE = (16, 32)                            # (n_mels rows, time frames)
PATCH = 8
GRID = (IMG_SIZE[0] // PATCH, IMG_SIZE[1] // PATCH)     # (2, 4)
NUM_PATCHES = GRID[0] * GRID[1]                         # 8
P2 = PATCH * PATCH * IN_CHANS                           # 64
EMBED_DIM = 32
DEPTH = 2
NUM_HEADS = 4
DEC_EMBED_DIM = 32
DEC_DEPTH = 1
DEC_NUM_HEADS = 4
MLP_RATIO = 4.0
MASK_RATIO = 0.75
LN_EPS = 1e-5                                  # nn.LayerNorm default
LANE = 128                                     # TPU lane width

DIM = EMBED_DIM                                # encoder dim == decoder dim == 32
HID = int(EMBED_DIM * MLP_RATIO)               # 128
DH = EMBED_DIM // NUM_HEADS                    # 8
LEN_KEEP = int(NUM_PATCHES * (1 - MASK_RATIO)) # 2
L_ENC = 1 + LEN_KEEP                           # 3  (cls + kept)
L_DEC = NUM_PATCHES + 1                        # 9  (cls + all patches)

# ---- packed per-block parameter slab layout (rows, all 128 lanes wide, zero padded) --------------
#   rows 0..7 : n1_g, n1_b, b_qkv, b_proj, n2_g, n2_b, b1, b2   (one row each)
#   rows 8..  : w_qkv (32), w_proj (32), w1 (32), w2 (128)
ROW_WQKV = 8
ROW_WPROJ = ROW_WQKV + DIM                     # 40
ROW_W1 = ROW_WPROJ + DIM                       # 72
ROW_W2 = ROW_W1 + DIM                          # 104
BLK_ROWS = ROW_W2 + HID                        # 232  (multiple of 8)

# ---- misc-vector slab rows -----------------------------------------------------------------------
VEC_CLS = 0          # cls_token + pos[0]
VEC_MASK_TOK = 1     # decoder mask token
VEC_ENC_NG = 2       # encoder final LayerNorm gamma
VEC_ENC_NB = 3       # encoder final LayerNorm beta
VEC_DEC_EMB_B = 4    # decoder_embed bias
VEC_DEC_NG = 5       # decoder final LayerNorm gamma
VEC_DEC_NB = 6       # decoder final LayerNorm beta
VEC_PRED_B = 7       # decoder_pred bias (64 lanes)


def _vmem_specs(n):
    return [pl.BlockSpec(memory_space=pltpu.MemorySpace.VMEM) for _ in range(n)]


_VMEM_OUT = pl.BlockSpec(memory_space=pltpu.MemorySpace.VMEM)


# ------------------------------ in-kernel helpers (traced inside kernels) -------------------------
def _layernorm(x, g, b, eps=LN_EPS):
    mean = jnp.mean(x, axis=-1, keepdims=True)
    xc = x - mean
    var = jnp.mean(xc * xc, axis=-1, keepdims=True)
    return xc * jax.lax.rsqrt(var + eps) * g + b


def _gelu(x):
    # TODO(synk): nn.GELU default is exact erf-GELU; tanh approximation used (no clean erf lowering).
    c = math.sqrt(2.0 / math.pi)
    return 0.5 * x * (1.0 + jnp.tanh(c * (x + 0.044715 * x * x * x)))


def _block2d(x, slab_ref, base, seq_len, num_heads):
    """One pre-norm ViT block on a 2-D (BATCH*seq_len, DIM) activation.

    All weight matmuls are flat lane-dense 2-D MXU dots; the fused QKV output is split per head
    with static 8-lane slices.  slab_ref is the packed per-block parameter slab (rows = base..).
    """
    dh = DIM // num_heads
    scale = dh ** -0.5

    def vrow(r, width):
        return slab_ref[pl.ds(base + r, 1), :][:, :width]

    n1g, n1b = vrow(0, DIM), vrow(1, DIM)
    bqkv, bproj = vrow(2, 3 * DIM), vrow(3, DIM)
    n2g, n2b = vrow(4, DIM), vrow(5, DIM)
    b1, b2 = vrow(6, HID), vrow(7, DIM)
    wqkv = slab_ref[pl.ds(base + ROW_WQKV, DIM), :][:, :3 * DIM]
    wproj = slab_ref[pl.ds(base + ROW_WPROJ, DIM), :][:, :DIM]
    w1 = slab_ref[pl.ds(base + ROW_W1, DIM), :]                     # (DIM, HID==128)
    w2 = slab_ref[pl.ds(base + ROW_W2, HID), :][:, :DIM]

    # ---- attention ----
    h = _layernorm(x, n1g, n1b)
    qkv = jnp.dot(h, wqkv, preferred_element_type=jnp.float32) + bqkv       # (B*S, 3*DIM)
    batch_rows = []
    for b in range(BATCH):
        r0 = b * seq_len
        head_outs = []
        for hd in range(num_heads):
            q = qkv[r0:r0 + seq_len, hd * dh:(hd + 1) * dh]
            k = qkv[r0:r0 + seq_len, DIM + hd * dh:DIM + (hd + 1) * dh]
            v = qkv[r0:r0 + seq_len, 2 * DIM + hd * dh:2 * DIM + (hd + 1) * dh]
            s = jax.lax.dot_general(q * scale, k, (((1,), (1,)), ((), ())),
                                    preferred_element_type=jnp.float32)      # (S, S)
            s = s - jnp.max(s, axis=-1, keepdims=True)
            p = jnp.exp(s)
            p = p * pl.reciprocal(jnp.sum(p, axis=-1, keepdims=True), approx=True)
            head_outs.append(jnp.dot(p, v, preferred_element_type=jnp.float32))
        batch_rows.append(jnp.concatenate(head_outs, axis=1))                # (S, DIM)
    attn = jnp.concatenate(batch_rows, axis=0)                               # (B*S, DIM)
    x = x + jnp.dot(attn, wproj, preferred_element_type=jnp.float32) + bproj

    # ---- MLP ----
    h2 = _layernorm(x, n2g, n2b)
    m = jnp.dot(h2, w1, preferred_element_type=jnp.float32) + b1
    m = _gelu(m)
    return x + jnp.dot(m, w2, preferred_element_type=jnp.float32) + b2


# --------------------------------------- Pallas kernels ------------------------------------------
def _mel_frontend_kernel(f_ref, dftw_ref, melw_ref, scale_ref, bias_ref, o_ref):
    """Fused: (windowed) DFT power -> mel matmul -> log -> per-bin scale/bias FMA."""
    y = jnp.dot(f_ref[...], dftw_ref[...], preferred_element_type=jnp.float32)   # (F, 2*LANE)
    re = y[:, :LANE]
    im = y[:, LANE:]
    power = re * re + im * im                                                    # (F, LANE)
    mel = jnp.dot(power, melw_ref[...], preferred_element_type=jnp.float32)      # (F, n_mels)
    o_ref[...] = jnp.log(mel + 1e-5) * scale_ref[...] + bias_ref[...]


def _mae_core_kernel(ids_keep_ref, ids_restore_ref,                    # SMEM scalar prefetch
                     patches_ref, patch_w_ref, enc_add_ref,
                     enc_slab_ref, dec_slab_ref, vec_ref,
                     dec_embed_w_ref, dec_pos_ref, dec_pred_w_ref, mask_ref,
                     pred_ref, loss_ref,                               # outputs
                     emb_ref, lat_ref, dec_in_ref):                    # VMEM scratch
    vec = vec_ref[...]                                                 # (8, 128) -> one vreg
    cls_add = vec[VEC_CLS:VEC_CLS + 1, :DIM]
    mask_tok = vec[VEC_MASK_TOK:VEC_MASK_TOK + 1, :DIM]

    # ---- 1. patch embedding of ALL patches + (pos[1:] + patch bias) ----------------------------
    patches = patches_ref[...]                                         # (B*L, 64)
    enc_add = enc_add_ref[...]                                         # (L, 32)
    emb = jnp.dot(patches, patch_w_ref[...], preferred_element_type=jnp.float32)
    emb = emb + jnp.concatenate([enc_add] * BATCH, axis=0)
    emb_ref[...] = emb                                                 # (B*L, 32) scratch

    # ---- 2. random-masking gather of kept tokens + cls slot ------------------------------------
    rows = []
    for b in range(BATCH):
        rows.append(cls_add)
        for j in range(LEN_KEEP):
            idx = ids_keep_ref[b, j]
            rows.append(emb_ref[pl.ds(b * NUM_PATCHES + idx, 1), :])
    x = jnp.concatenate(rows, axis=0)                                  # (B*L_ENC, 32)

    # ---- 3. encoder blocks + final LN + decoder_embed ------------------------------------------
    for i in range(DEPTH):
        x = _block2d(x, enc_slab_ref, i * BLK_ROWS, L_ENC, NUM_HEADS)
    x = _layernorm(x, vec[VEC_ENC_NG:VEC_ENC_NG + 1, :DIM], vec[VEC_ENC_NB:VEC_ENC_NB + 1, :DIM])
    lat = jnp.dot(x, dec_embed_w_ref[...], preferred_element_type=jnp.float32) \
        + vec[VEC_DEC_EMB_B:VEC_DEC_EMB_B + 1, :DIM]
    lat_ref[...] = lat                                                 # (B*L_ENC, 32) scratch

    # ---- 4. decoder token assembly: mask tokens + un-shuffle with ids_restore + dec pos --------
    dec_pos = dec_pos_ref[...]                                         # (L+1, 32)
    for b in range(BATCH):
        dec_in_ref[pl.ds(b * L_DEC, 1), :] = lat[b * L_ENC:b * L_ENC + 1, :] + dec_pos[0:1, :]
        for j in range(NUM_PATCHES):
            r = ids_restore_ref[b, j]
            kf = (r < LEN_KEEP).astype(jnp.float32)
            safe = jnp.where(r < LEN_KEEP, r + 1, 0)                   # clamp for a valid load
            row = lat_ref[pl.ds(b * L_ENC + safe, 1), :]
            row = row * kf + mask_tok * (1.0 - kf)
            dec_in_ref[pl.ds(b * L_DEC + 1 + j, 1), :] = row + dec_pos[1 + j:2 + j, :]

    # ---- 5. decoder blocks + final LN + decoder_pred -------------------------------------------
    y = dec_in_ref[...]                                                # (B*(L+1), 32)
    for i in range(DEC_DEPTH):
        y = _block2d(y, dec_slab_ref, i * BLK_ROWS, L_DEC, DEC_NUM_HEADS)
    y = _layernorm(y, vec[VEC_DEC_NG:VEC_DEC_NG + 1, :DIM], vec[VEC_DEC_NB:VEC_DEC_NB + 1, :DIM])
    pred_full = jnp.dot(y, dec_pred_w_ref[...], preferred_element_type=jnp.float32) \
        + vec[VEC_PRED_B:VEC_PRED_B + 1, :P2]                          # (B*(L+1), 64)

    # drop the cls rows -> (B*L, 64)
    pred = jnp.concatenate(
        [pred_full[b * L_DEC + 1:(b + 1) * L_DEC, :] for b in range(BATCH)], axis=0)
    pred_ref[...] = pred

    # ---- 6. masked MSE loss (exact division) ----------------------------------------------------
    d = pred - patches
    per = jnp.mean(d * d, axis=-1, keepdims=True)                      # (B*L, 1)
    m = mask_ref[...]                                                  # (B*L, 1)
    num = jnp.sum(per * m, axis=0, keepdims=True)                      # (1, 1)
    den = jnp.sum(m, axis=0, keepdims=True)                            # (1, 1)
    loss_ref[...] = num / den


# ------------------------------- numpy helpers (deterministic buffers) ----------------------------
def get_1d_sincos_pos_embed_from_grid(embed_dim, pos):
    omega = np.arange(embed_dim // 2, dtype=np.float32) / (embed_dim / 2.0)
    omega = 1.0 / (10000 ** omega)
    out = np.einsum("m,d->md", pos.reshape(-1).astype(np.float32), omega)
    return np.concatenate([np.sin(out), np.cos(out)], axis=1)


def get_2d_sincos_pos_embed(embed_dim, grid_h_size, grid_w_size, cls_token=False):
    grid_h = np.arange(grid_h_size, dtype=np.float32)
    grid_w = np.arange(grid_w_size, dtype=np.float32)
    grid = np.meshgrid(grid_w, grid_h)          # w goes first
    grid = np.stack(grid, axis=0).reshape([2, 1, grid_h_size, grid_w_size])
    emb_h = get_1d_sincos_pos_embed_from_grid(embed_dim // 2, grid[0])
    emb_w = get_1d_sincos_pos_embed_from_grid(embed_dim // 2, grid[1])
    pos_embed = np.concatenate([emb_h, emb_w], axis=1)
    if cls_token:
        pos_embed = np.concatenate([np.zeros([1, embed_dim], np.float32), pos_embed], axis=0)
    return pos_embed.astype(np.float32)


def kaldi_mel_banks(num_bins, n_fft, sample_freq, low_freq, high_freq):
    # Triangular mel filters following torchaudio.compliance.kaldi.get_mel_banks (vtln disabled).
    num_fft_bins = n_fft // 2
    fft_bin_width = sample_freq / n_fft
    mel = lambda f: 1127.0 * np.log(1.0 + f / 700.0)
    mel_low, mel_high = mel(low_freq), mel(high_freq)
    mel_delta = (mel_high - mel_low) / (num_bins + 1)
    fft_mels = mel(fft_bin_width * np.arange(num_fft_bins, dtype=np.float64))
    banks = np.zeros((num_bins, num_fft_bins), dtype=np.float32)
    for b in range(num_bins):
        left = mel_low + b * mel_delta
        center = left + mel_delta
        right = center + mel_delta
        up = (fft_mels - left) / (center - left)
        down = (right - fft_mels) / (right - center)
        w = np.minimum(up, down)
        w = np.where((fft_mels > left) & (fft_mels < right), w, 0.0)
        banks[b] = np.maximum(w, 0.0)
    return banks


def build_consts():
    n = np.arange(WIN_LENGTH, dtype=np.float64)
    # torch.hann_window(win_length, periodic=False) - matches the module's registered buffer.
    window = 0.5 - 0.5 * np.cos(2.0 * np.pi * n / (WIN_LENGTH - 1))
    win_full = np.zeros(N_FFT, np.float64)
    off = (N_FFT - WIN_LENGTH) // 2
    win_full[off:off + WIN_LENGTH] = window
    n_freq = N_FFT // 2 + 1
    nn_, kk = np.meshgrid(np.arange(N_FFT), np.arange(n_freq), indexing="ij")
    ang = 2.0 * np.pi * nn_ * kk / N_FFT
    # Lane-padded DFT matrix with the Hann window folded in (cols [0:n_freq)=cos, [128:..)=sin).
    dft = np.zeros((N_FFT, 2 * LANE), np.float64)
    dft[:, :n_freq] = np.cos(ang)
    dft[:, LANE:LANE + n_freq] = np.sin(ang)
    dft_w = (win_full[:, None] * dft).astype(np.float32)
    mel = kaldi_mel_banks(N_MELS, N_FFT, SR, FMIN, FMAX)          # (n_mels, n_fft//2)
    mel_w = np.zeros((LANE, N_MELS), np.float32)                  # transposed, lane-padded
    mel_w[:mel.shape[1], :] = mel.T
    return {"dft_w": jnp.asarray(dft_w), "mel_w": jnp.asarray(mel_w)}


# ------------------------------------------ parameters -------------------------------------------
def xavier_uniform(key, fan_in, fan_out):
    # Weights stored pre-transposed as (in, out) so no per-call transposes are needed.
    a = math.sqrt(6.0 / (fan_in + fan_out))
    return jax.random.uniform(key, (fan_in, fan_out), jnp.float32, -a, a)


def _make_block(ks, dim, hid):
    return {
        "n1_g": jnp.ones((1, dim), jnp.float32), "n1_b": jnp.zeros((1, dim), jnp.float32),
        "w_qkv": xavier_uniform(next(ks), dim, 3 * dim), "b_qkv": jnp.zeros((1, 3 * dim), jnp.float32),
        "w_proj": xavier_uniform(next(ks), dim, dim), "b_proj": jnp.zeros((1, dim), jnp.float32),
        "n2_g": jnp.ones((1, dim), jnp.float32), "n2_b": jnp.zeros((1, dim), jnp.float32),
        "w1": xavier_uniform(next(ks), dim, hid), "b1": jnp.zeros((1, hid), jnp.float32),
        "w2": xavier_uniform(next(ks), hid, dim), "b2": jnp.zeros((1, dim), jnp.float32),
    }


def _padl(a):
    return jnp.pad(a.astype(jnp.float32), ((0, 0), (0, LANE - a.shape[1])))


def _pack_blocks(blocks):
    rows = []
    for blk in blocks:
        rows += [_padl(blk[k]) for k in ("n1_g", "n1_b", "b_qkv", "b_proj",
                                         "n2_g", "n2_b", "b1", "b2",
                                         "w_qkv", "w_proj", "w1", "w2")]
    return jnp.concatenate(rows, axis=0)                   # (n_blocks * BLK_ROWS, 128)


def init_params(key):
    ks = iter(jax.random.split(key, 64))
    patch_w = xavier_uniform(next(ks), P2, EMBED_DIM)
    patch_b = jnp.zeros((1, EMBED_DIM), jnp.float32)
    cls_token = 0.02 * jax.random.normal(next(ks), (1, EMBED_DIM), jnp.float32)
    mask_token = 0.02 * jax.random.normal(next(ks), (1, DEC_EMBED_DIM), jnp.float32)
    pos = jnp.asarray(get_2d_sincos_pos_embed(EMBED_DIM, GRID[0], GRID[1], cls_token=True))
    dec_pos = jnp.asarray(get_2d_sincos_pos_embed(DEC_EMBED_DIM, GRID[0], GRID[1], cls_token=True))
    enc_blocks = [_make_block(ks, EMBED_DIM, HID) for _ in range(DEPTH)]
    dec_blocks = [_make_block(ks, DEC_EMBED_DIM, HID) for _ in range(DEC_DEPTH)]
    dec_embed_w = xavier_uniform(next(ks), EMBED_DIM, DEC_EMBED_DIM)
    dec_embed_b = jnp.zeros((1, DEC_EMBED_DIM), jnp.float32)
    dec_pred_w = xavier_uniform(next(ks), DEC_EMBED_DIM, P2)
    dec_pred_b = jnp.zeros((1, P2), jnp.float32)
    norm_g = jnp.ones((1, EMBED_DIM), jnp.float32)
    norm_b = jnp.zeros((1, EMBED_DIM), jnp.float32)
    dec_norm_g = jnp.ones((1, DEC_EMBED_DIM), jnp.float32)
    dec_norm_b = jnp.zeros((1, DEC_EMBED_DIM), jnp.float32)
    # TODO(synk): frame_mean / frame_std come from mean_std.npy in the original; init to 0 / 1.
    frame_mean = jnp.zeros((1, N_MELS), jnp.float32)
    frame_std = jnp.ones((1, N_MELS), jnp.float32)
    vec_rows = [cls_token + pos[:1, :], mask_token, norm_g, norm_b,
                dec_embed_b, dec_norm_g, dec_norm_b, dec_pred_b]
    return {
        "patch_w": patch_w,
        "enc_tok_add": pos[1:, :] + patch_b,               # pos[1:] + patch-embed bias, pre-folded
        "vec_slab": jnp.concatenate([_padl(r) for r in vec_rows], axis=0),
        "enc_slab": _pack_blocks(enc_blocks),
        "dec_slab": _pack_blocks(dec_blocks),
        "dec_embed_w": dec_embed_w,
        "dec_pos": dec_pos,
        "dec_pred_w": dec_pred_w,
        # folded:  out = ((log(mel)+4.5)/5 - mean)/std  ==  log(mel)*scale + bias
        "frame_scale": 0.2 / frame_std,
        "frame_bias": (0.9 - frame_mean) / frame_std,
    }


# --------------------------------------- model forward -------------------------------------------
def mae_forward(audio, params, consts, mask_key):
    B, C, T = audio.shape
    # ---- mel frontend: pre-emphasis / pad / framing glue in JAX, spectral math in the kernel ----
    x = audio.reshape(B * C, T).astype(jnp.float32)
    x = x[:, 1:] - 0.97 * x[:, :-1]                        # pre-emphasis conv1d [-0.97, 1]
    pad = N_FFT // 2                                       # torch.stft center=True reflect pad
    xp = jnp.pad(x, ((0, 0), (pad, pad)), mode="reflect")
    n_frames = 1 + (xp.shape[1] - N_FFT) // HOPSIZE
    idx = HOPSIZE * jnp.arange(n_frames)[:, None] + jnp.arange(N_FFT)[None, :]
    frames = xp[:, idx].reshape(B * C * n_frames, N_FFT)

    mel = pl.pallas_call(
        _mel_frontend_kernel,
        out_shape=jax.ShapeDtypeStruct((B * C * n_frames, N_MELS), jnp.float32),
        in_specs=_vmem_specs(5),
        out_specs=_VMEM_OUT,
    )(frames, consts["dft_w"], consts["mel_w"], params["frame_scale"], params["frame_bias"])

    # image (B, 1, n_mels, frames) cropped to the ViT input and patchified (tiny, 4 KiB, JAX glue)
    img = mel.reshape(B * C, n_frames, N_MELS).transpose(0, 2, 1).reshape(B, C, N_MELS, n_frames)
    img = img[:, :, :IMG_SIZE[0], :IMG_SIZE[1]]
    h, w = GRID
    pt = img.reshape(B, 1, h, PATCH, w, PATCH)
    pt = jnp.transpose(pt, (0, 2, 4, 3, 5, 1))
    patches2d = pt.reshape(B * NUM_PATCHES, P2)

    # ---- random masking bookkeeping: only the argsorts stay in JAX ----
    noise = jax.random.uniform(mask_key, (B, NUM_PATCHES))
    ids_shuffle = jnp.argsort(noise, axis=1)
    ids_restore = jnp.argsort(ids_shuffle, axis=1)
    ids_keep = ids_shuffle[:, :LEN_KEEP].astype(jnp.int32)
    mask = (ids_restore >= LEN_KEEP).astype(jnp.float32)   # (B, L): 0 keep, 1 remove

    pred2d, loss = pl.pallas_call(
        _mae_core_kernel,
        out_shape=(jax.ShapeDtypeStruct((B * NUM_PATCHES, P2), jnp.float32),
                   jax.ShapeDtypeStruct((1, 1), jnp.float32)),
        grid_spec=pltpu.PrefetchScalarGridSpec(
            num_scalar_prefetch=2,
            grid=(),
            in_specs=_vmem_specs(10),
            out_specs=(_VMEM_OUT, _VMEM_OUT),
            scratch_shapes=[pltpu.VMEM((B * NUM_PATCHES, EMBED_DIM), jnp.float32),
                            pltpu.VMEM((B * L_ENC, DEC_EMBED_DIM), jnp.float32),
                            pltpu.VMEM((B * L_DEC, DEC_EMBED_DIM), jnp.float32)],
        ),
    )(ids_keep, ids_restore.astype(jnp.int32),
      patches2d, params["patch_w"], params["enc_tok_add"],
      params["enc_slab"], params["dec_slab"], params["vec_slab"],
      params["dec_embed_w"], params["dec_pos"], params["dec_pred_w"],
      mask.reshape(B * NUM_PATCHES, 1))

    pred = pred2d.reshape(B, NUM_PATCHES, P2)
    return loss[0, 0], pred, mask


# ---------------------------------------------- main ---------------------------------------------
if __name__ == "__main__":
    key = jax.random.PRNGKey(0)
    k_audio, k_mask, k_params = jax.random.split(key, 3)
    audio = jax.random.normal(k_audio, (BATCH, IN_CHANS, T_AUDIO), jnp.float32)
    params = init_params(k_params)
    consts = build_consts()

    fwd = jax.jit(mae_forward)
    loss, pred, mask = fwd(audio, params, consts, k_mask)
    jax.block_until_ready((loss, pred, mask))

    assert pred.shape == (BATCH, NUM_PATCHES, P2)
    assert mask.shape == (BATCH, NUM_PATCHES)
    assert loss.shape == ()
    assert bool(jnp.isfinite(loss))
    print("KERNEL_OK")
</pallas_src>

<mosaic_0001>
module attributes {stable_mosaic.version = 11 : i64} {
  func.func @_mel_frontend_kernel(%arg0: memref<64x32xf32, #tpu.memory_space<vmem>>, %arg1: memref<32x256xf32, #tpu.memory_space<vmem>>, %arg2: memref<128x16xf32, #tpu.memory_space<vmem>>, %arg3: memref<1x16xf32, #tpu.memory_space<vmem>>, %arg4: memref<1x16xf32, #tpu.memory_space<vmem>>, %arg5: memref<64x16xf32, #tpu.memory_space<vmem>>) attributes {dimension_semantics = [], scalar_prefetch = 0 : i64, scratch_operands = 0 : i64, tpu.core_type = #tpu.core_type<tc>} {
    %c0 = arith.constant 0 : index
    %c0_0 = arith.constant 0 : index
    %0 = vector.load %arg0[%c0, %c0_0] : memref<64x32xf32, #tpu.memory_space<vmem>>, vector<64x32xf32>
    %c0_1 = arith.constant 0 : index
    %c0_2 = arith.constant 0 : index
    %1 = vector.load %arg1[%c0_1, %c0_2] : memref<32x256xf32, #tpu.memory_space<vmem>>, vector<32x256xf32>
    %cst = arith.constant dense<0.000000e+00> : vector<64x256xf32>
    %2 = tpu.matmul %0, %1, %cst {dimension_numbers = #tpu.dot_dimension_numbers<[1], [0], [0], [1], [0, 0, 1, 1], [], []>} : vector<64x32xf32>, vector<32x256xf32>, vector<64x256xf32> -> vector<64x256xf32>
    %3 = vector.extract_strided_slice %2 {offsets = [0, 0], sizes = [64, 128], strides = [1, 1]} : vector<64x256xf32> to vector<64x128xf32>
    %4 = vector.extract_strided_slice %2 {offsets = [0, 128], sizes = [64, 128], strides = [1, 1]} : vector<64x256xf32> to vector<64x128xf32>
    %5 = arith.mulf %3, %3 : vector<64x128xf32>
    %6 = arith.mulf %4, %4 : vector<64x128xf32>
    %7 = arith.addf %5, %6 : vector<64x128xf32>
    %c0_3 = arith.constant 0 : index
    %c0_4 = arith.constant 0 : index
    %8 = vector.load %arg2[%c0_3, %c0_4] : memref<128x16xf32, #tpu.memory_space<vmem>>, vector<128x16xf32>
    %cst_5 = arith.constant dense<0.000000e+00> : vector<64x16xf32>
    %9 = tpu.matmul %7, %8, %cst_5 {dimension_numbers = #tpu.dot_dimension_numbers<[1], [0], [0], [1], [0, 0, 1, 1], [], []>} : vector<64x128xf32>, vector<128x16xf32>, vector<64x16xf32> -> vector<64x16xf32>
    %cst_6 = arith.constant 9.99999974E-6 : f32
    %10 = vector.broadcast %cst_6 : f32 to vector<64x16xf32>
    %11 = arith.addf %9, %10 : vector<64x16xf32>
    %12 = math.log %11 : vector<64x16xf32>
    %c0_7 = arith.constant 0 : index
    %c0_8 = arith.constant 0 : index
    %13 = vector.load %arg3[%c0_7, %c0_8] : memref<1x16xf32, #tpu.memory_space<vmem>>, vector<1x16xf32>
    %14 = vector.broadcast %13 : vector<1x16xf32> to vector<64x16xf32>
    %15 = arith.mulf %12, %14 : vector<64x16xf32>
    %c0_9 = arith.constant 0 : index
    %c0_10 = arith.constant 0 : index
    %16 = vector.load %arg4[%c0_9, %c0_10] : memref<1x16xf32, #tpu.memory_space<vmem>>, vector<1x16xf32>
    %17 = vector.broadcast %16 : vector<1x16xf32> to vector<64x16xf32>
    %18 = arith.addf %15, %17 : vector<64x16xf32>
    %c0_11 = arith.constant 0 : index
    %c0_12 = arith.constant 0 : index
    %19 = vector.load %arg5[%c0_11, %c0_12] : memref<64x16xf32, #tpu.memory_space<vmem>>, vector<64x16xf32>
    tpu.vector_store %arg5[%c0_11, %c0_12], %18 {strides = array<i32>} : memref<64x16xf32, #tpu.memory_space<vmem>>, vector<64x16xf32>,
    return
  }
}

module attributes {stable_mosaic.version = 11 : i64} {
  func.func @_mae_core_kernel(%arg0: memref<2x2xi32, #tpu.memory_space<smem>>, %arg1: memref<2x8xi32, #tpu.memory_space<smem>>, %arg2: memref<16x64xf32, #tpu.memory_space<vmem>>, %arg3: memref<64x32xf32, #tpu.memory_space<vmem>>, %arg4: memref<8x32xf32, #tpu.memory_space<vmem>>, %arg5: memref<464x128xf32, #tpu.memory_space<vmem>>, %arg6: memref<232x128xf32, #tpu.memory_space<vmem>>, %arg7: memref<8x128xf32, #tpu.memory_space<vmem>>, %arg8: memref<32x32xf32, #tpu.memory_space<vmem>>, %arg9: memref<9x32xf32, #tpu.memory_space<vmem>>, %arg10: memref<32x64xf32, #tpu.memory_space<vmem>>, %arg11: memref<16x1xf32, #tpu.memory_space<vmem>>, %arg12: memref<16x64xf32, #tpu.memory_space<vmem>>, %arg13: memref<1x1xf32, #tpu.memory_space<vmem>>, %arg14: memref<16x32xf32, #tpu.memory_space<vmem>>, %arg15: memref<6x32xf32, #tpu.memory_space<vmem>>, %arg16: memref<18x32xf32, #tpu.memory_space<vmem>>) attributes {dimension_semantics = [], scalar_prefetch = 2 : i64, scratch_operands = 3 : i64, tpu.core_type = #tpu.core_type<tc>} {
    %c0 = arith.constant 0 : index
    %c0_0 = arith.constant 0 : index
    %0 = vector.load %arg7[%c0, %c0_0] : memref<8x128xf32, #tpu.memory_space<vmem>>, vector<8x128xf32>
    %1 = vector.extract_strided_slice %0 {offsets = [0, 0], sizes = [1, 32], strides = [1, 1]} : vector<8x128xf32> to vector<1x32xf32>
    %2 = vector.extract_strided_slice %0 {offsets = [1, 0], sizes = [1, 32], strides = [1, 1]} : vector<8x128xf32> to vector<1x32xf32>
    %c0_1 = arith.constant 0 : index
    %c0_2 = arith.constant 0 : index
    %3 = vector.load %arg2[%c0_1, %c0_2] : memref<16x64xf32, #tpu.memory_space<vmem>>, vector<16x64xf32>
    %c0_3 = arith.constant 0 : index
    %c0_4 = arith.constant 0 : index
    %4 = vector.load %arg4[%c0_3, %c0_4] : memref<8x32xf32, #tpu.memory_space<vmem>>, vector<8x32xf32>
    %c0_5 = arith.constant 0 : index
    %c0_6 = arith.constant 0 : index
    %5 = vector.load %arg3[%c0_5, %c0_6] : memref<64x32xf32, #tpu.memory_space<vmem>>, vector<64x32xf32>
    %cst = arith.constant dense<0.000000e+00> : vector<16x32xf32>
    %6 = tpu.matmul %3, %5, %cst {dimension_numbers = #tpu.dot_dimension_numbers<[1], [0], [0], [1], [0, 0, 1, 1], [], []>} : vector<16x64xf32>, vector<64x32xf32>, vector<16x32xf32> -> vector<16x32xf32>
    %7 = tpu.concatenate %4, %4 in 0 : vector<8x32xf32>, vector<8x32xf32> -> vector<16x32xf32>
    %8 = arith.addf %6, %7 : vector<16x32xf32>
    %c0_7 = arith.constant 0 : index
    %c0_8 = arith.constant 0 : index
    %9 = vector.load %arg14[%c0_7, %c0_8] : memref<16x32xf32, #tpu.memory_space<vmem>>, vector<16x32xf32>
    tpu.vector_store %arg14[%c0_7, %c0_8], %8 {strides = array<i32>} : memref<16x32xf32, #tpu.memory_space<vmem>>, vector<16x32xf32>,
    %c0_9 = arith.constant 0 : index
    %c0_10 = arith.constant 0 : index
    %10 = memref.load %arg0[%c0_9, %c0_10] : memref<2x2xi32, #tpu.memory_space<smem>>
    %c0_i32 = arith.constant 0 : i32
    %11 = arith.addi %c0_i32, %10 : i32
    %12 = arith.index_cast %11 : i32 to index
    %c0_11 = arith.constant 0 : index
    %13 = vector.load %arg14[%12, %c0_11] : memref<16x32xf32, #tpu.memory_space<vmem>>, vector<1x32xf32>
    %c0_12 = arith.constant 0 : index
    %c1 = arith.constant 1 : index
    %14 = memref.load %arg0[%c0_12, %c1] : memref<2x2xi32, #tpu.memory_space<smem>>
    %c0_i32_13 = arith.constant 0 : i32
    %15 = arith.addi %c0_i32_13, %14 : i32
    %16 = arith.index_cast %15 : i32 to index
    %c0_14 = arith.constant 0 : index
    %17 = vector.load %arg14[%16, %c0_14] : memref<16x32xf32, #tpu.memory_space<vmem>>, vector<1x32xf32>
    %c1_15 = arith.constant 1 : index
    %c0_16 = arith.constant 0 : index
    %18 = memref.load %arg0[%c1_15, %c0_16] : memref<2x2xi32, #tpu.memory_space<smem>>
    %c8_i32 = arith.constant 8 : i32
    %19 = arith.addi %c8_i32, %18 : i32
    %20 = arith.index_cast %19 : i32 to index
    %c0_17 = arith.constant 0 : index
    %21 = vector.load %arg14[%20, %c0_17] : memref<16x32xf32, #tpu.memory_space<vmem>>, vector<1x32xf32>
    %c1_18 = arith.constant 1 : index
    %c1_19 = arith.constant 1 : index
    %22 = memref.load %arg0[%c1_18, %c1_19] : memref<2x2xi32, #tpu.memory_space<smem>>
    %c8_i32_20 = arith.constant 8 : i32
    %23 = arith.addi %c8_i32_20, %22 : i32
    %24 = arith.index_cast %23 : i32 to index
    %c0_21 = arith.constant 0 : index
    %25 = vector.load %arg14[%24, %c0_21] : memref<16x32xf32, #tpu.memory_space<vmem>>, vector<1x32xf32>
    %26 = tpu.concatenate %1, %13, %17, %1, %21, %25 in 0 : vector<1x32xf32>, vector<1x32xf32>, vector<1x32xf32>, vector<1x32xf32>, vector<1x32xf32>, vector<1x32xf32> -> vector<6x32xf32>
    %c0_22 = arith.constant 0 : index
    %c0_23 = arith.constant 0 : index
    %27 = vector.load %arg5[%c0_22, %c0_23] : memref<464x128xf32, #tpu.memory_space<vmem>>, vector<1x128xf32>
    %28 = vector.extract_strided_slice %27 {offsets = [0, 0], sizes = [1, 32], strides = [1, 1]} : vector<1x128xf32> to vector<1x32xf32>
    %c1_24 = arith.constant 1 : index
    %c0_25 = arith.constant 0 : index
    %29 = vector.load %arg5[%c1_24, %c0_25] : memref<464x128xf32, #tpu.memory_space<vmem>>, vector<1x128xf32>
    %30 = vector.extract_strided_slice %29 {offsets = [0, 0], sizes = [1, 32], strides = [1, 1]} : vector<1x128xf32> to vector<1x32xf32>
    %c2 = arith.constant 2 : index
    %c0_26 = arith.constant 0 : index
    %31 = vector.load %arg5[%c2, %c0_26] : memref<464x128xf32, #tpu.memory_space<vmem>>, vector<1x128xf32>
    %32 = vector.extract_strided_slice %31 {offsets = [0, 0], sizes = [1, 96], strides = [1, 1]} : vector<1x128xf32> to vector<1x96xf32>
    %c3 = arith.constant 3 : index
    %c0_27 = arith.constant 0 : index
    %33 = vector.load %arg5[%c3, %c0_27] : memref<464x128xf32, #tpu.memory_space<vmem>>, vector<1x128xf32>
    %34 = vector.extract_strided_slice %33 {offsets = [0, 0], sizes = [1, 32], strides = [1, 1]} : vector<1x128xf32> to vector<1x32xf32>
    %c4 = arith.constant 4 : index
    %c0_28 = arith.constant 0 : index
    %35 = vector.load %arg5[%c4, %c0_28] : memref<464x128xf32, #tpu.memory_space<vmem>>, vector<1x128xf32>
    %36 = vector.extract_strided_slice %35 {offsets = [0, 0], sizes = [1, 32], strides = [1, 1]} : vector<1x128xf32> to vector<1x32xf32>
    %c5 = arith.constant 5 : index
    %c0_29 = arith.constant 0 : index
    %37 = vector.load %arg5[%c5, %c0_29] : memref<464x128xf32, #tpu.memory_space<vmem>>, vector<1x128xf32>
    %38 = vector.extract_strided_slice %37 {offsets = [0, 0], sizes = [1, 32], strides = [1, 1]} : vector<1x128xf32> to vector<1x32xf32>
    %c6 = arith.constant 6 : index
    %c0_30 = arith.constant 0 : index
    %39 = vector.load %arg5[%c6, %c0_30] : memref<464x128xf32, #tpu.memory_space<vmem>>, vector<1x128xf32>
    %c7 = arith.constant 7 : index
    %c0_31 = arith.constant 0 : index
    %40 = vector.load %arg5[%c7, %c0_31] : memref<464x128xf32, #tpu.memory_space<vmem>>, vector<1x128xf32>
    %41 = vector.extract_strided_slice %40 {offsets = [0, 0], sizes = [1, 32], strides = [1, 1]} : vector<1x128xf32> to vector<1x32xf32>
    %c8 = arith.constant 8 : index
    %c0_32 = arith.constant 0 : index
    %42 = vector.load %arg5[%c8, %c0_32] : memref<464x128xf32, #tpu.memory_space<vmem>>, vector<32x128xf32>
    %43 = vector.extract_strided_slice %42 {offsets = [0, 0], sizes = [32, 96], strides = [1, 1]} : vector<32x128xf32> to vector<32x96xf32>
    %c40 = arith.constant 40 : index
    %c0_33 = arith.constant 0 : index
    %44 = vector.load %arg5[%c40, %c0_33] : memref<464x128xf32, #tpu.memory_space<vmem>>, vector<32x128xf32>
    %45 = vector.extract_strided_slice %44 {offsets = [0, 0], sizes = [32, 32], strides = [1, 1]} : vector<32x128xf32> to vector<32x32xf32>
    %c72 = arith.constant 72 : index
    %c0_34 = arith.constant 0 : index
    %46 = vector.load %arg5[%c72, %c0_34] : memref<464x128xf32, #tpu.memory_space<vmem>>, vector<32x128xf32>
    %c104 = arith.constant 104 : index
    %c0_35 = arith.constant 0 : index
    %47 = vector.load %arg5[%c104, %c0_35] : memref<464x128xf32, #tpu.memory_space<vmem>>, vector<128x128xf32>
    %48 = vector.extract_strided_slice %47 {offsets = [0, 0], sizes = [128, 32], strides = [1, 1]} : vector<128x128xf32> to vector<128x32xf32>
    %cst_36 = arith.constant dense<0.000000e+00> : vector<6xf32>
    %49 = vector.multi_reduction <add>, %26, %cst_36 [1] : vector<6x32xf32> to vector<6xf32>
    %50 = vector.shape_cast %49 : vector<6xf32> to vector<6x1xf32>
    %cst_37 = arith.constant 3.200000e+01 : f32
    %51 = vector.broadcast %cst_37 : f32 to vector<6x1xf32>
    %52 = arith.divf %50, %51 : vector<6x1xf32>
    %53 = vector.broadcast %52 : vector<6x1xf32> to vector<6x32xf32>
    %54 = arith.subf %26, %53 : vector<6x32xf32>
    %55 = arith.mulf %54, %54 : vector<6x32xf32>
    %cst_38 = arith.constant dense<0.000000e+00> : vector<6xf32>
    %56 = vector.multi_reduction <add>, %55, %cst_38 [1] : vector<6x32xf32> to vector<6xf32>
    %57 = vector.shape_cast %56 : vector<6xf32> to vector<6x1xf32>
    %cst_39 = arith.constant 3.200000e+01 : f32
    %58 = vector.broadcast %cst_39 : f32 to vector<6x1xf32>
    %59 = arith.divf %57, %58 : vector<6x1xf32>
    %cst_40 = arith.constant 9.99999974E-6 : f32
    %60 = vector.broadcast %cst_40 : f32 to vector<6x1xf32>
    %61 = arith.addf %59, %60 : vector<6x1xf32>
    %62 = math.rsqrt %61 : vector<6x1xf32>
    %63 = vector.broadcast %62 : vector<6x1xf32> to vector<6x32xf32>
    %64 = arith.mulf %54, %63 : vector<6x32xf32>
    %65 = vector.broadcast %28 : vector<1x32xf32> to vector<6x32xf32>
    %66 = arith.mulf %64, %65 : vector<6x32xf32>
    %67 = vector.broadcast %30 : vector<1x32xf32> to vector<6x32xf32>
    %68 = arith.addf %66, %67 : vector<6x32xf32>
    %cst_41 = arith.constant dense<0.000000e+00> : vector<6x96xf32>
    %69 = tpu.matmul %68, %43, %cst_41 {dimension_numbers = #tpu.dot_dimension_numbers<[1], [0], [0], [1], [0, 0, 1, 1], [], []>} : vector<6x32xf32>, vector<32x96xf32>, vector<6x96xf32> -> vector<6x96xf32>
    %70 = vector.broadcast %32 : vector<1x96xf32> to vector<6x96xf32>
    %71 = arith.addf %69, %70 : vector<6x96xf32>
    %72 = vector.extract_strided_slice %71 {offsets = [0, 0], sizes = [3, 8], strides = [1, 1]} : vector<6x96xf32> to vector<3x8xf32>
    %73 = vector.extract_strided_slice %71 {offsets = [0, 32], sizes = [3, 8], strides = [1, 1]} : vector<6x96xf32> to vector<3x8xf32>
    %74 = vector.extract_strided_slice %71 {offsets = [0, 64], sizes = [3, 8], strides = [1, 1]} : vector<6x96xf32> to vector<3x8xf32>
    %cst_42 = arith.constant 0.353553385 : f32
    %75 = vector.broadcast %cst_42 : f32 to vector<3x8xf32>
    %76 = arith.mulf %72, %75 : vector<3x8xf32>
    %cst_43 = arith.constant dense<0.000000e+00> : vector<3x3xf32>
    %77 = tpu.matmul %76, %73, %cst_43 {dimension_numbers = #tpu.dot_dimension_numbers<[1], [1], [0], [0], [0, 0, 1, 0], [], []>} : vector<3x8xf32>, vector<3x8xf32>, vector<3x3xf32> -> vector<3x3xf32>
    %cst_44 = arith.constant dense<0xFF800000> : vector<3xf32>
    %78 = vector.multi_reduction <maximumf>, %77, %cst_44 [1] : vector<3x3xf32> to vector<3xf32>
    %79 = vector.shape_cast %78 : vector<3xf32> to vector<3x1xf32>
    %80 = vector.broadcast %79 : vector<3x1xf32> to vector<3x3xf32>
    %81 = arith.subf %77, %80 : vector<3x3xf32>
    %82 = math.exp %81 : vector<3x3xf32>
    %cst_45 = arith.constant dense<0.000000e+00> : vector<3xf32>
    %83 = vector.multi_reduction <add>, %82, %cst_45 [1] : vector<3x3xf32> to vector<3xf32>
    %84 = vector.shape_cast %83 : vector<3xf32> to vector<3x1xf32>
    %85 = tpu.reciprocal %84 {approx = true} : vector<3x1xf32> -> vector<3x1xf32>
    %86 = vector.broadcast %85 : vector<3x1xf32> to vector<3x3xf32>
    %87 = arith.mulf %82, %86 : vector<3x3xf32>
    %cst_46 = arith.constant dense<0.000000e+00> : vector<3x8xf32>
    %88 = tpu.matmul %87, %74, %cst_46 {dimension_numbers = #tpu.dot_dimension_numbers<[1], [0], [0], [1], [0, 0, 1, 1], [], []>} : vector<3x3xf32>, vector<3x8xf32>, vector<3x8xf32> -> vector<3x8xf32>
    %89 = vector.extract_strided_slice %71 {offsets = [0, 8], sizes = [3, 8], strides = [1, 1]} : vector<6x96xf32> to vector<3x8xf32>
    %90 = vector.extract_strided_slice %71 {offsets = [0, 40], sizes = [3, 8], strides = [1, 1]} : vector<6x96xf32> to vector<3x8xf32>
    %91 = vector.extract_strided_slice %71 {offsets = [0, 72], sizes = [3, 8], strides = [1, 1]} : vector<6x96xf32> to vector<3x8xf32>
    %cst_47 = arith.constant 0.353553385 : f32
    %92 = vector.broadcast %cst_47 : f32 to vector<3x8xf32>
    %93 = arith.mulf %89, %92 : vector<3x8xf32>
    %cst_48 = arith.constant dense<0.000000e+00> : vector<3x3xf32>
    %94 = tpu.matmul %93, %90, %cst_48 {dimension_numbers = #tpu.dot_dimension_numbers<[1], [1], [0], [0], [0, 0, 1, 0], [], []>} : vector<3x8xf32>, vector<3x8xf32>, vector<3x3xf32> -> vector<3x3xf32>
    %cst_49 = arith.constant dense<0xFF800000> : vector<3xf32>
    %95 = vector.multi_reduction <maximumf>, %94, %cst_49 [1] : vector<3x3xf32> to vector<3xf32>
    %96 = vector.shape_cast %95 : vector<3xf32> to vector<3x1xf32>
    %97 = vector.broadcast %96 : vector<3x1xf32> to vector<3x3xf32>
    %98 = arith.subf %94, %97 : vector<3x3xf32>
    %99 = math.exp %98 : vector<3x3xf32>
    %cst_50 = arith.constant dense<0.000000e+00> : vector<3xf32>
    %100 = vector.multi_reduction <add>, %99, %cst_50 [1] : vector<3x3xf32> to vector<3xf32>
    %101 = vector.shape_cast %100 : vector<3xf32> to vector<3x1xf32>
    %102 = tpu.reciprocal %101 {approx = true} : vector<3x1xf32> -> vector<3x1xf32>
    %103 = vector.broadcast %102 : vector<3x1xf32> to vector<3x3xf32>
    %104 = arith.mulf %99, %103 : vector<3x3xf32>
    %cst_51 = arith.constant dense<0.000000e+00> : vector<3x8xf32>
    %105 = tpu.matmul %104, %91, %cst_51 {dimension_numbers = #tpu.dot_dimension_numbers<[1], [0], [0], [1], [0, 0, 1, 1], [], []>} : vector<3x3xf32>, vector<3x8xf32>, vector<3x8xf32> -> vector<3x8xf32>
    %106 = vector.extract_strided_slice %71 {offsets = [0, 16], sizes = [3, 8], strides = [1, 1]} : vector<6x96xf32> to vector<3x8xf32>
    %107 = vector.extract_strided_slice %71 {offsets = [0, 48], sizes = [3, 8], strides = [1, 1]} : vector<6x96xf32> to vector<3x8xf32>
    %108 = vector.extract_strided_slice %71 {offsets = [0, 80], sizes = [3, 8], strides = [1, 1]} : vector<6x96xf32> to vector<3x8xf32>
    %cst_52 = arith.constant 0.353553385 : f32
    %109 = vector.broadcast %cst_52 : f32 to vector<3x8xf32>
    %110 = arith.mulf %106, %109 : vector<3x8xf32>
    %cst_53 = arith.constant dense<0.000000e+00> : vector<3x3xf32>
    %111 = tpu.matmul %110, %107, %cst_53 {dimension_numbers = #tpu.dot_dimension_numbers<[1], [1], [0], [0], [0, 0, 1, 0], [], []>} : vector<3x8xf32>, vector<3x8xf32>, vector<3x3xf32> -> vector<3x3xf32>
    %cst_54 = arith.constant dense<0xFF800000> : vector<3xf32>
    %112 = vector.multi_reduction <maximumf>, %111, %cst_54 [1] : vector<3x3xf32> to vector<3xf32>
    %113 = vector.shape_cast %112 : vector<3xf32> to vector<3x1xf32>
    %114 = vector.broadcast %113 : vector<3x1xf32> to vector<3x3xf32>
    %115 = arith.subf %111, %114 : vector<3x3xf32>
    %116 = math.exp %115 : vector<3x3xf32>
    %cst_55 = arith.constant dense<0.000000e+00> : vector<3xf32>
    %117 = vector.multi_reduction <add>, %116, %cst_55 [1] : vector<3x3xf32> to vector<3xf32>
    %118 = vector.shape_cast %117 : vector<3xf32> to vector<3x1xf32>
    %119 = tpu.reciprocal %118 {approx = true} : vector<3x1xf32> -> vector<3x1xf32>
    %120 = vector.broadcast %119 : vector<3x1xf32> to vector<3x3xf32>
    %121 = arith.mulf %116, %120 : vector<3x3xf32>
    %cst_56 = arith.constant dense<0.000000e+00> : vector<3x8xf32>
    %122 = tpu.matmul %121, %108, %cst_56 {dimension_numbers = #tpu.dot_dimension_numbers<[1], [0], [0], [1], [0, 0, 1, 1], [], []>} : vector<3x3xf32>, vector<3x8xf32>, vector<3x8xf32> -> vector<3x8xf32>
    %123 = vector.extract_strided_slice %71 {offsets = [0, 24], sizes = [3, 8], strides = [1, 1]} : vector<6x96xf32> to vector<3x8xf32>
    %124 = vector.extract_strided_slice %71 {offsets = [0, 56], sizes = [3, 8], strides = [1, 1]} : vector<6x96xf32> to vector<3x8xf32>
    %125 = vector.extract_strided_slice %71 {offsets = [0, 88], sizes = [3, 8], strides = [1, 1]} : vector<6x96xf32> to vector<3x8xf32>
    %cst_57 = arith.constant 0.353553385 : f32
    %126 = vector.broadcast %cst_57 : f32 to vector<3x8xf32>
    %127 = arith.mulf %123, %126 : vector<3x8xf32>
    %cst_58 = arith.constant dense<0.000000e+00> : vector<3x3xf32>
    %128 = tpu.matmul %127, %124, %cst_58 {dimension_numbers = #tpu.dot_dimension_numbers<[1], [1], [0], [0], [0, 0, 1, 0], [], []>} : vector<3x8xf32>, vector<3x8xf32>, vector<3x3xf32> -> vector<3x3xf32>
    %cst_59 = arith.constant dense<0xFF800000> : vector<3xf32>
    %129 = vector.multi_reduction <maximumf>, %128, %cst_59 [1] : vector<3x3xf32> to vector<3xf32>
    %130 = vector.shape_cast %129 : vector<3xf32> to vector<3x1xf32>
    %131 = vector.broadcast %130 : vector<3x1xf32> to vector<3x3xf32>
    %132 = arith.subf %128, %131 : vector<3x3xf32>
    %133 = math.exp %132 : vector<3x3xf32>
    %cst_60 = arith.constant dense<0.000000e+00> : vector<3xf32>
    %134 = vector.multi_reduction <add>, %133, %cst_60 [1] : vector<3x3xf32> to vector<3xf32>
    %135 = vector.shape_cast %134 : vector<3xf32> to vector<3x1xf32>
    %136 = tpu.reciprocal %135 {approx = true} : vector<3x1xf32> -> vector<3x1xf32>
    %137 = vector.broadcast %136 : vector<3x1xf32> to vector<3x3xf32>
    %138 = arith.mulf %133, %137 : vector<3x3xf32>
    %cst_61 = arith.constant dense<0.000000e+00> : vector<3x8xf32>
    %139 = tpu.matmul %138, %125, %cst_61 {dimension_numbers = #tpu.dot_dimension_numbers<[1], [0], [0], [1], [0, 0, 1, 1], [], []>} : vector<3x3xf32>, vector<3x8xf32>, vector<3x8xf32> -> vector<3x8xf32>
    %140 = tpu.concatenate %88, %105, %122, %139 in 1 : vector<3x8xf32>, vector<3x8xf32>, vector<3x8xf32>, vector<3x8xf32> -> vector<3x32xf32>
    %141 = vector.extract_strided_slice %71 {offsets = [3, 0], sizes = [3, 8], strides = [1, 1]} : vector<6x96xf32> to vector<3x8xf32>
    %142 = vector.extract_strided_slice %71 {offsets = [3, 32], sizes = [3, 8], strides = [1, 1]} : vector<6x96xf32> to vector<3x8xf32>
    %143 = vector.extract_strided_slice %71 {offsets = [3, 64], sizes = [3, 8], strides = [1, 1]} : vector<6x96xf32> to vector<3x8xf32>
    %cst_62 = arith.constant 0.353553385 : f32
    %144 = vector.broadcast %cst_62 : f32 to vector<3x8xf32>
    %145 = arith.mulf %141, %144 : vector<3x8xf32>
    %cst_63 = arith.constant dense<0.000000e+00> : vector<3x3xf32>
    %146 = tpu.matmul %145, %142, %cst_63 {dimension_numbers = #tpu.dot_dimension_numbers<[1], [1], [0], [0], [0, 0, 1, 0], [], []>} : vector<3x8xf32>, vector<3x8xf32>, vector<3x3xf32> -> vector<3x3xf32>
    %cst_64 = arith.constant dense<0xFF800000> : vector<3xf32>
    %147 = vector.multi_reduction <maximumf>, %146, %cst_64 [1] : vector<3x3xf32> to vector<3xf32>
    %148 = vector.shape_cast %147 : vector<3xf32> to vector<3x1xf32>
    %149 = vector.broadcast %148 : vector<3x1xf32> to vector<3x3xf32>
    %150 = arith.subf %146, %149 : vector<3x3xf32>
    %151 = math.exp %150 : vector<3x3xf32>
    %cst_65 = arith.constant dense<0.000000e+00> : vector<3xf32>
    %152 = vector.multi_reduction <add>, %151, %cst_65 [1] : vector<3x3xf32> to vector<3xf32>
    %153 = vector.shape_cast %152 : vector<3xf32> to vector<3x1xf32>
    %154 = tpu.reciprocal %153 {approx = true} : vector<3x1xf32> -> vector<3x1xf32>
    %155 = vector.broadcast %154 : vector<3x1xf32> to vector<3x3xf32>
    %156 = arith.mulf %151, %155 : vector<3x3xf32>
    %cst_66 = arith.constant dense<0.000000e+00> : vector<3x8xf32>
    %157 = tpu.matmul %156, %143, %cst_66 {dimension_numbers = #tpu.dot_dimension_numbers<[1], [0], [0], [1], [0, 0, 1, 1], [], []>} : vector<3x3xf32>, vector<3x8xf32>, vector<3x8xf32> -> vector<3x8xf32>
    %158 = vector.extract_strided_slice %71 {offsets = [3, 8], sizes = [3, 8], strides = [1, 1]} : vector<6x96xf32> to vector<3x8xf32>
    %159 = vector.extract_strided_slice %71 {offsets = [3, 40], sizes = [3, 8], strides = [1, 1]} : vector<6x96xf32> to vector<3x8xf32>
    %160 = vector.extract_strided_slice %71 {offsets = [3, 72], sizes = [3, 8], strides = [1, 1]} : vector<6x96xf32> to vector<3x8xf32>
    %cst_67 = arith.constant 0.353553385 : f32
    %161 = vector.broadcast %cst_67 : f32 to vector<3x8xf32>
    %162 = arith.mulf %158, %161 : vector<3x8xf32>
    %cst_68 = arith.constant dense<0.000000e+00> : vector<3x3xf32>
    %163 = tpu.matmul %162, %159, %cst_68 {dimension_numbers = #tpu.dot_dimension_numbers<[1], [1], [0], [0], [0, 0, 1, 0], [], []>} : vector<3x8xf32>, vector<3x8xf32>, vector<3x3xf32> -> vector<3x3xf32>
    %cst_69 = arith.constant dense<0xFF800000> : vector<3xf32>
    %164 = vector.multi_reduction <maximumf>, %163, %cst_69 [1] : vector<3x3xf32> to vector<3xf32>
    %165 = vector.shape_cast %164 : vector<3xf32> to vector<3x1xf32>
    %166 = vector.broadcast %165 : vector<3x1xf32> to vector<3x3xf32>
    %167 = arith.subf %163, %166 : vector<3x3xf32>
    %168 = math.exp %167 : vector<3x3xf32>
    %cst_70 = arith.constant dense<0.000000e+00> : vector<3xf32>
    %169 = vector.multi_reduction <add>, %168, %cst_70 [1] : vector<3x3xf32> to vector<3xf32>
    %170 = vector.shape_cast %169 : vector<3xf32> to vector<3x1xf32>
    %171 = tpu.reciprocal %170 {approx = true} : vector<3x1xf32> -> vector<3x1xf32>
    %172 = vector.broadcast %171 : vector<3x1xf32> to vector<3x3xf32>
    %173 = arith.mulf %168, %172 : vector<3x3xf32>
    %cst_71 = arith.constant dense<0.000000e+00> : vector<3x8xf32>
    %174 = tpu.matmul %173, %160, %cst_71 {dimension_numbers = #tpu.dot_dimension_numbers<[1], [0], [0], [1], [0, 0, 1, 1], [], []>} : vector<3x3xf32>, vector<3x8xf32>, vector<3x8xf32> -> vector<3x8xf32>
    %175 = vector.extract_strided_slice %71 {offsets = [3, 16], sizes = [3, 8], strides = [1, 1]} : vector<6x96xf32> to vector<3x8xf32>
    %176 = vector.extract_strided_slice %71 {offsets = [3, 48], sizes = [3, 8], strides = [1, 1]} : vector<6x96xf32> to vector<3x8xf32>
    %177 = vector.extract_strided_slice %71 {offsets = [3, 80], sizes = [3, 8], strides = [1, 1]} : vector<6x96xf32> to vector<3x8xf32>
    %cst_72 = arith.constant 0.353553385 : f32
    %178 = vector.broadcast %cst_72 : f32 to vector<3x8xf32>
    %179 = arith.mulf %175, %178 : vector<3x8xf32>
    %cst_73 = arith.constant dense<0.000000e+00> : vector<3x3xf32>
    %180 = tpu.matmul %179, %176, %cst_73 {dimension_numbers = #tpu.dot_dimension_numbers<[1], [1], [0], [0], [0, 0, 1, 0], [], []>} : vector<3x8xf32>, vector<3x8xf32>, vector<3x3xf32> -> vector<3x3xf32>
    %cst_74 = arith.constant dense<0xFF800000> : vector<3xf32>
    %181 = vector.multi_reduction <maximumf>, %180, %cst_74 [1] : vector<3x3xf32> to vector<3xf32>
    %182 = vector.shape_cast %181 : vector<3xf32> to vector<3x1xf32>
    %183 = vector.broadcast %182 : vector<3x1xf32> to vector<3x3xf32>
    %184 = arith.subf %180, %183 : vector<3x3xf32>
    %185 = math.exp %184 : vector<3x3xf32>
    %cst_75 = arith.constant dense<0.000000e+00> : vector<3xf32>
    %186 = vector.multi_reduction <add>, %185, %cst_75 [1] : vector<3x3xf32> to vector<3xf32>
    %187 = vector.shape_cast %186 : vector<3xf32> to vector<3x1xf32>
    %188 = tpu.reciprocal %187 {approx = true} : vector<3x1xf32> -> vector<3x1xf32>
    %189 = vector.broadcast %188 : vector<3x1xf32> to vector<3x3xf32>
    %190 = arith.mulf %185, %189 : vector<3x3xf32>
    %cst_76 = arith.constant dense<0.000000e+00> : vector<3x8xf32>
    %191 = tpu.matmul %190, %177, %cst_76 {dimension_numbers = #tpu.dot_dimension_numbers<[1], [0], [0], [1], [0, 0, 1, 1], [], []>} : vector<3x3xf32>, vector<3x8xf32>, vector<3x8xf32> -> vector<3x8xf32>
    %192 = vector.extract_strided_slice %71 {offsets = [3, 24], sizes = [3, 8], strides = [1, 1]} : vector<6x96xf32> to vector<3x8xf32>
    %193 = vector.extract_strided_slice %71 {offsets = [3, 56], sizes = [3, 8], strides = [1, 1]} : vector<6x96xf32> to vector<3x8xf32>
    %194 = vector.extract_strided_slice %71 {offsets = [3, 88], sizes = [3, 8], strides = [1, 1]} : vector<6x96xf32> to vector<3x8xf32>
    %cst_77 = arith.constant 0.353553385 : f32
    %195 = vector.broadcast %cst_77 : f32 to vector<3x8xf32>
    %196 = arith.mulf %192, %195 : vector<3x8xf32>
    %cst_78 = arith.constant dense<0.000000e+00> : vector<3x3xf32>
    %197 = tpu.matmul %196, %193, %cst_78 {dimension_numbers = #tpu.dot_dimension_numbers<[1], [1], [0], [0], [0, 0, 1, 0], [], []>} : vector<3x8xf32>, vector<3x8xf32>, vector<3x3xf32> -> vector<3x3xf32>
    %cst_79 = arith.constant dense<0xFF800000> : vector<3xf32>
    %198 = vector.multi_reduction <maximumf>, %197, %cst_79 [1] : vector<3x3xf32> to vector<3xf32>
    %199 = vector.shape_cast %198 : vector<3xf32> to vector<3x1xf32>
    %200 = vector.broadcast %199 : vector<3x1xf32> to vector<3x3xf32>
    %201 = arith.subf %197, %200 : vector<3x3xf32>
    %202 = math.exp %201 : vector<3x3xf32>
    %cst_80 = arith.constant dense<0.000000e+00> : vector<3xf32>
    %203 = vector.multi_reduction <add>, %202, %cst_80 [1] : vector<3x3xf32> to vector<3xf32>
    %204 = vector.shape_cast %203 : vector<3xf32> to vector<3x1xf32>
    %205 = tpu.reciprocal %204 {approx = true} : vector<3x1xf32> -> vector<3x1xf32>
    %206 = vector.broadcast %205 : vector<3x1xf32> to vector<3x3xf32>
    %207 = arith.mulf %202, %206 : vector<3x3xf32>
    %cst_81 = arith.constant dense<0.000000e+00> : vector<3x8xf32>
    %208 = tpu.matmul %207, %194, %cst_81 {dimension_numbers = #tpu.dot_dimension_numbers<[1], [0], [0], [1], [0, 0, 1, 1], [], []>} : vector<3x3xf32>, vector<3x8xf32>, vector<3x8xf32> -> vector<3x8xf32>
    %209 = tpu.concatenate %157, %174, %191, %208 in 1 : vector<3x8xf32>, vector<3x8xf32>, vector<3x8xf32>, vector<3x8xf32> -> vector<3x32xf32>
    %210 = tpu.concatenate %140, %209 in 0 : vector<3x32xf32>, vector<3x32xf32> -> vector<6x32xf32>
    %cst_82 = arith.constant dense<0.000000e+00> : vector<6x32xf32>
    %211 = tpu.matmul %210, %45, %cst_82 {dimension_numbers = #tpu.dot_dimension_numbers<[1], [0], [0], [1], [0, 0, 1, 1], [], []>} : vector<6x32xf32>, vector<32x32xf32>, vector<6x32xf32> -> vector<6x32xf32>
    %212 = arith.addf %26, %211 : vector<6x32xf32>
    %213 = vector.broadcast %34 : vector<1x32xf32> to vector<6x32xf32>
    %214 = arith.addf %212, %213 : vector<6x32xf32>
    %cst_83 = arith.constant dense<0.000000e+00> : vector<6xf32>
    %215 = vector.multi_reduction <add>, %214, %cst_83 [1] : vector<6x32xf32> to vector<6xf32>
    %216 = vector.shape_cast %215 : vector<6xf32> to vector<6x1xf32>
    %cst_84 = arith.constant 3.200000e+01 : f32
    %217 = vector.broadcast %cst_84 : f32 to vector<6x1xf32>
    %218 = arith.divf %216, %217 : vector<6x1xf32>
    %219 = vector.broadcast %218 : vector<6x1xf32> to vector<6x32xf32>
    %220 = arith.subf %214, %219 : vector<6x32xf32>
    %221 = arith.mulf %220, %220 : vector<6x32xf32>
    %cst_85 = arith.constant dense<0.000000e+00> : vector<6xf32>
    %222 = vector.multi_reduction <add>, %221, %cst_85 [1] : vector<6x32xf32> to vector<6xf32>
    %223 = vector.shape_cast %222 : vector<6xf32> to vector<6x1xf32>
    %cst_86 = arith.constant 3.200000e+01 : f32
    %224 = vector.broadcast %cst_86 : f32 to vector<6x1xf32>
    %225 = arith.divf %223, %224 : vector<6x1xf32>
    %cst_87 = arith.constant 9.99999974E-6 : f32
    %226 = vector.broadcast %cst_87 : f32 to vector<6x1xf32>
    %227 = arith.addf %225, %226 : vector<6x1xf32>
    %228 = math.rsqrt %227 : vector<6x1xf32>
    %229 = vector.broadcast %228 : vector<6x1xf32> to vector<6x32xf32>
    %230 = arith.mulf %220, %229 : vector<6x32xf32>
    %231 = vector.broadcast %36 : vector<1x32xf32> to vector<6x32xf32>
    %232 = arith.mulf %230, %231 : vector<6x32xf32>
    %233 = vector.broadcast %38 : vector<1x32xf32> to vector<6x32xf32>
    %234 = arith.addf %232, %233 : vector<6x32xf32>
    %cst_88 = arith.constant dense<0.000000e+00> : vector<6x128xf32>
    %235 = tpu.matmul %234, %46, %cst_88 {dimension_numbers = #tpu.dot_dimension_numbers<[1], [0], [0], [1], [0, 0, 1, 1], [], []>} : vector<6x32xf32>, vector<32x128xf32>, vector<6x128xf32> -> vector<6x128xf32>
    %236 = vector.broadcast %39 : vector<1x128xf32> to vector<6x128xf32>
    %237 = arith.addf %235, %236 : vector<6x128xf32>
    %cst_89 = arith.constant 5.000000e-01 : f32
    %238 = vector.broadcast %cst_89 : f32 to vector<6x128xf32>
    %239 = arith.mulf %238, %237 : vector<6x128xf32>
    %cst_90 = arith.constant 4.471500e-02 : f32
    %240 = vector.broadcast %cst_90 : f32 to vector<6x128xf32>
    %241 = arith.mulf %240, %237 : vector<6x128xf32>
    %242 = arith.mulf %241, %237 : vector<6x128xf32>
    %243 = arith.mulf %242, %237 : vector<6x128xf32>
    %244 = arith.addf %237, %243 : vector<6x128xf32>
    %cst_91 = arith.constant 0.797884583 : f32
    %245 = vector.broadcast %cst_91 : f32 to vector<6x128xf32>
    %246 = arith.mulf %245, %244 : vector<6x128xf32>
    %247 = math.tanh %246 : vector<6x128xf32>
    %cst_92 = arith.constant 1.000000e+00 : f32
    %248 = vector.broadcast %cst_92 : f32 to vector<6x128xf32>
    %249 = arith.addf %248, %247 : vector<6x128xf32>
    %250 = arith.mulf %239, %249 : vector<6x128xf32>
    %cst_93 = arith.constant dense<0.000000e+00> : vector<6x32xf32>
    %251 = tpu.matmul %250, %48, %cst_93 {dimension_numbers = #tpu.dot_dimension_numbers<[1], [0], [0], [1], [0, 0, 1, 1], [], []>} : vector<6x128xf32>, vector<128x32xf32>, vector<6x32xf32> -> vector<6x32xf32>
    %252 = arith.addf %214, %251 : vector<6x32xf32>
    %253 = vector.broadcast %41 : vector<1x32xf32> to vector<6x32xf32>
    %254 = arith.addf %252, %253 : vector<6x32xf32>
    %c232 = arith.constant 232 : index
    %c0_94 = arith.constant 0 : index
    %255 = vector.load %arg5[%c232, %c0_94] : memref<464x128xf32, #tpu.memory_space<vmem>>, vector<1x128xf32>
    %256 = vector.extract_strided_slice %255 {offsets = [0, 0], sizes = [1, 32], strides = [1, 1]} : vector<1x128xf32> to vector<1x32xf32>
    %c233 = arith.constant 233 : index
    %c0_95 = arith.constant 0 : index
    %257 = vector.load %arg5[%c233, %c0_95] : memref<464x128xf32, #tpu.memory_space<vmem>>, vector<1x128xf32>
    %258 = vector.extract_strided_slice %257 {offsets = [0, 0], sizes = [1, 32], strides = [1, 1]} : vector<1x128xf32> to vector<1x32xf32>
    %c234 = arith.constant 234 : index
    %c0_96 = arith.constant 0 : index
    %259 = vector.load %arg5[%c234, %c0_96] : memref<464x128xf32, #tpu.memory_space<vmem>>, vector<1x128xf32>
    %260 = vector.extract_strided_slice %259 {offsets = [0, 0], sizes = [1, 96], strides = [1, 1]} : vector<1x128xf32> to vector<1x96xf32>
    %c235 = arith.constant 235 : index
    %c0_97 = arith.constant 0 : index
    %261 = vector.load %arg5[%c235, %c0_97] : memref<464x128xf32, #tpu.memory_space<vmem>>, vector<1x128xf32>
    %262 = vector.extract_strided_slice %261 {offsets = [0, 0], sizes = [1, 32], strides = [1, 1]} : vector<1x128xf32> to vector<1x32xf32>
    %c236 = arith.constant 236 : index
    %c0_98 = arith.constant 0 : index
    %263 = vector.load %arg5[%c236, %c0_98] : memref<464x128xf32, #tpu.memory_space<vmem>>, vector<1x128xf32>
    %264 = vector.extract_strided_slice %263 {offsets = [0, 0], sizes = [1, 32], strides = [1, 1]} : vector<1x128xf32> to vector<1x32xf32>
    %c237 = arith.constant 237 : index
    %c0_99 = arith.constant 0 : index
    %265 = vector.load %arg5[%c237, %c0_99] : memref<464x128xf32, #tpu.memory_space<vmem>>, vector<1x128xf32>
    %266 = vector.extract_strided_slice %265 {offsets = [0, 0], sizes = [1, 32], strides = [1, 1]} : vector<1x128xf32> to vector<1x32xf32>
    %c238 = arith.constant 238 : index
    %c0_100 = arith.constant 0 : index
    %267 = vector.load %arg5[%c238, %c0_100] : memref<464x128xf32, #tpu.memory_space<vmem>>, vector<1x128xf32>
    %c239 = arith.constant 239 : index
    %c0_101 = arith.constant 0 : index
    %268 = vector.load %arg5[%c239, %c0_101] : memref<464x128xf32, #tpu.memory_space<vmem>>, vector<1x128xf32>
    %269 = vector.extract_strided_slice %268 {offsets = [0, 0], sizes = [1, 32], strides = [1, 1]} : vector<1x128xf32> to vector<1x32xf32>
    %c240 = arith.constant 240 : index
    %c0_102 = arith.constant 0 : index
    %270 = vector.load %arg5[%c240, %c0_102] : memref<464x128xf32, #tpu.memory_space<vmem>>, vector<32x128xf32>
    %271 = vector.extract_strided_slice %270 {offsets = [0, 0], sizes = [32, 96], strides = [1, 1]} : vector<32x128xf32> to vector<32x96xf32>
    %c272 = arith.constant 272 : index
    %c0_103 = arith.constant 0 : index
    %272 = vector.load %arg5[%c272, %c0_103] : memref<464x128xf32, #tpu.memory_space<vmem>>, vector<32x128xf32>
    %273 = vector.extract_strided_slice %272 {offsets = [0, 0], sizes = [32, 32], strides = [1, 1]} : vector<32x128xf32> to vector<32x32xf32>
    %c304 = arith.constant 304 : index
    %c0_104 = arith.constant 0 : index
    %274 = vector.load %arg5[%c304, %c0_104] : memref<464x128xf32, #tpu.memory_space<vmem>>, vector<32x128xf32>
    %c336 = arith.constant 336 : index
    %c0_105 = arith.constant 0 : index
    %275 = vector.load %arg5[%c336, %c0_105] : memref<464x128xf32, #tpu.memory_space<vmem>>, vector<128x128xf32>
    %276 = vector.extract_strided_slice %275 {offsets = [0, 0], sizes = [128, 32], strides = [1, 1]} : vector<128x128xf32> to vector<128x32xf32>
    %cst_106 = arith.constant dense<0.000000e+00> : vector<6xf32>
    %277 = vector.multi_reduction <add>, %254, %cst_106 [1] : vector<6x32xf32> to vector<6xf32>
    %278 = vector.shape_cast %277 : vector<6xf32> to vector<6x1xf32>
    %cst_107 = arith.constant 3.200000e+01 : f32
    %279 = vector.broadcast %cst_107 : f32 to vector<6x1xf32>
    %280 = arith.divf %278, %279 : vector<6x1xf32>
    %281 = vector.broadcast %280 : vector<6x1xf32> to vector<6x32xf32>
    %282 = arith.subf %254, %281 : vector<6x32xf32>
    %283 = arith.mulf %282, %282 : vector<6x32xf32>
    %cst_108 = arith.constant dense<0.000000e+00> : vector<6xf32>
    %284 = vector.multi_reduction <add>, %283, %cst_108 [1] : vector<6x32xf32> to vector<6xf32>
    %285 = vector.shape_cast %284 : vector<6xf32> to vector<6x1xf32>
    %cst_109 = arith.constant 3.200000e+01 : f32
    %286 = vector.broadcast %cst_109 : f32 to vector<6x1xf32>
    %287 = arith.divf %285, %286 : vector<6x1xf32>
    %cst_110 = arith.constant 9.99999974E-6 : f32
    %288 = vector.broadcast %cst_110 : f32 to vector<6x1xf32>
    %289 = arith.addf %287, %288 : vector<6x1xf32>
    %290 = math.rsqrt %289 : vector<6x1xf32>
    %291 = vector.broadcast %290 : vector<6x1xf32> to vector<6x32xf32>
    %292 = arith.mulf %282, %291 : vector<6x32xf32>
    %293 = vector.broadcast %256 : vector<1x32xf32> to vector<6x32xf32>
    %294 = arith.mulf %292, %293 : vector<6x32xf32>
    %295 = vector.broadcast %258 : vector<1x32xf32> to vector<6x32xf32>
    %296 = arith.addf %294, %295 : vector<6x32xf32>
    %cst_111 = arith.constant dense<0.000000e+00> : vector<6x96xf32>
    %297 = tpu.matmul %296, %271, %cst_111 {dimension_numbers = #tpu.dot_dimension_numbers<[1], [0], [0], [1], [0, 0, 1, 1], [], []>} : vector<6x32xf32>, vector<32x96xf32>, vector<6x96xf32> -> vector<6x96xf32>
    %298 = vector.broadcast %260 : vector<1x96xf32> to vector<6x96xf32>
    %299 = arith.addf %297, %298 : vector<6x96xf32>
    %300 = vector.extract_strided_slice %299 {offsets = [0, 0], sizes = [3, 8], strides = [1, 1]} : vector<6x96xf32> to vector<3x8xf32>
    %301 = vector.extract_strided_slice %299 {offsets = [0, 32], sizes = [3, 8], strides = [1, 1]} : vector<6x96xf32> to vector<3x8xf32>
    %302 = vector.extract_strided_slice %299 {offsets = [0, 64], sizes = [3, 8], strides = [1, 1]} : vector<6x96xf32> to vector<3x8xf32>
    %cst_112 = arith.constant 0.353553385 : f32
    %303 = vector.broadcast %cst_112 : f32 to vector<3x8xf32>
    %304 = arith.mulf %300, %303 : vector<3x8xf32>
    %cst_113 = arith.constant dense<0.000000e+00> : vector<3x3xf32>
    %305 = tpu.matmul %304, %301, %cst_113 {dimension_numbers = #tpu.dot_dimension_numbers<[1], [1], [0], [0], [0, 0, 1, 0], [], []>} : vector<3x8xf32>, vector<3x8xf32>, vector<3x3xf32> -> vector<3x3xf32>
    %cst_114 = arith.constant dense<0xFF800000> : vector<3xf32>
    %306 = vector.multi_reduction <maximumf>, %305, %cst_114 [1] : vector<3x3xf32> to vector<3xf32>
    %307 = vector.shape_cast %306 : vector<3xf32> to vector<3x1xf32>
    %308 = vector.broadcast %307 : vector<3x1xf32> to vector<3x3xf32>
    %309 = arith.subf %305, %308 : vector<3x3xf32>
    %310 = math.exp %309 : vector<3x3xf32>
    %cst_115 = arith.constant dense<0.000000e+00> : vector<3xf32>
    %311 = vector.multi_reduction <add>, %310, %cst_115 [1] : vector<3x3xf32> to vector<3xf32>
    %312 = vector.shape_cast %311 : vector<3xf32> to vector<3x1xf32>
    %313 = tpu.reciprocal %312 {approx = true} : vector<3x1xf32> -> vector<3x1xf32>
    %314 = vector.broadcast %313 : vector<3x1xf32> to vector<3x3xf32>
    %315 = arith.mulf %310, %314 : vector<3x3xf32>
    %cst_116 = arith.constant dense<0.000000e+00> : vector<3x8xf32>
    %316 = tpu.matmul %315, %302, %cst_116 {dimension_numbers = #tpu.dot_dimension_numbers<[1], [0], [0], [1], [0, 0, 1, 1], [], []>} : vector<3x3xf32>, vector<3x8xf32>, vector<3x8xf32> -> vector<3x8xf32>
    %317 = vector.extract_strided_slice %299 {offsets = [0, 8], sizes = [3, 8], strides = [1, 1]} : vector<6x96xf32> to vector<3x8xf32>
    %318 = vector.extract_strided_slice %299 {offsets = [0, 40], sizes = [3, 8], strides = [1, 1]} : vector<6x96xf32> to vector<3x8xf32>
    %319 = vector.extract_strided_slice %299 {offsets = [0, 72], sizes = [3, 8], strides = [1, 1]} : vector<6x96xf32> to vector<3x8xf32>
    %cst_117 = arith.constant 0.353553385 : f32
    %320 = vector.broadcast %cst_117 : f32 to vector<3x8xf32>
    %321 = arith.mulf %317, %320 : vector<3x8xf32>
    %cst_118 = arith.constant dense<0.000000e+00> : vector<3x3xf32>
    %322 = tpu.matmul %321, %318, %cst_118 {dimension_numbers = #tpu.dot_dimension_numbers<[1], [1], [0], [0], [0, 0, 1, 0], [], []>} : vector<3x8xf32>, vector<3x8xf32>, vector<3x3xf32> -> vector<3x3xf32>
    %cst_119 = arith.constant dense<0xFF800000> : vector<3xf32>
    %323 = vector.multi_reduction <maximumf>, %322, %cst_119 [1] : vector<3x3xf32> to vector<3xf32>
    %324 = vector.shape_cast %323 : vector<3xf32> to vector<3x1xf32>
    %325 = vector.broadcast %324 : vector<3x1xf32> to vector<3x3xf32>
    %326 = arith.subf %322, %325 : vector<3x3xf32>
    %327 = math.exp %326 : vector<3x3xf32>
    %cst_120 = arith.constant dense<0.000000e+00> : vector<3xf32>
    %328 = vector.multi_reduction <add>, %327, %cst_120 [1] : vector<3x3xf32> to vector<3xf32>
    %329 = vector.shape_cast %328 : vector<3xf32> to vector<3x1xf32>
    %330 = tpu.reciprocal %329 {approx = true} : vector<3x1xf32> -> vector<3x1xf32>
    %331 = vector.broadcast %330 : vector<3x1xf32> to vector<3x3xf32>
    %332 = arith.mulf %327, %331 : vector<3x3xf32>
    %cst_121 = arith.constant dense<0.000000e+00> : vector<3x8xf32>
    %333 = tpu.matmul %332, %319, %cst_121 {dimension_numbers = #tpu.dot_dimension_numbers<[1], [0], [0], [1], [0, 0, 1, 1], [], []>} : vector<3x3xf32>, vector<3x8xf32>, vector<3x8xf32> -> vector<3x8xf32>
    %334 = vector.extract_strided_slice %299 {offsets = [0, 16], sizes = [3, 8], strides = [1, 1]} : vector<6x96xf32> to vector<3x8xf32>
    %335 = vector.extract_strided_slice %299 {offsets = [0, 48], sizes = [3, 8], strides = [1, 1]} : vector<6x96xf32> to vector<3x8xf32>
    %336 = vector.extract_strided_slice %299 {offsets = [0, 80], sizes = [3, 8], strides = [1, 1]} : vector<6x96xf32> to vector<3x8xf32>
    %cst_122 = arith.constant 0.353553385 : f32
    %337 = vector.broadcast %cst_122 : f32 to vector<3x8xf32>
    %338 = arith.mulf %334, %337 : vector<3x8xf32>
    %cst_123 = arith.constant dense<0.000000e+00> : vector<3x3xf32>
    %339 = tpu.matmul %338, %335, %cst_123 {dimension_numbers = #tpu.dot_dimension_numbers<[1], [1], [0], [0], [0, 0, 1, 0], [], []>} : vector<3x8xf32>, vector<3x8xf32>, vector<3x3xf32> -> vector<3x3xf32>
    %cst_124 = arith.constant dense<0xFF800000> : vector<3xf32>
    %340 = vector.multi_reduction <maximumf>, %339, %cst_124 [1] : vector<3x3xf32> to vector<3xf32>
    %341 = vector.shape_cast %340 : vector<3xf32> to vector<3x1xf32>
    %342 = vector.broadcast %341 : vector<3x1xf32> to vector<3x3xf32>
    %343 = arith.subf %339, %342 : vector<3x3xf32>
    %344 = math.exp %343 : vector<3x3xf32>
    %cst_125 = arith.constant dense<0.000000e+00> : vector<3xf32>
    %345 = vector.multi_reduction <add>, %344, %cst_125 [1] : vector<3x3xf32> to vector<3xf32>
    %346 = vector.shape_cast %345 : vector<3xf32> to vector<3x1xf32>
    %347 = tpu.reciprocal %346 {approx = true} : vector<3x1xf32> -> vector<3x1xf32>
    %348 = vector.broadcast %347 : vector<3x1xf32> to vector<3x3xf32>
    %349 = arith.mulf %344, %348 : vector<3x3xf32>
    %cst_126 = arith.constant dense<0.000000e+00> : vector<3x8xf32>
    %350 = tpu.matmul %349, %336, %cst_126 {dimension_numbers = #tpu.dot_dimension_numbers<[1], [0], [0], [1], [0, 0, 1, 1], [], []>} : vector<3x3xf32>, vector<3x8xf32>, vector<3x8xf32> -> vector<3x8xf32>
    %351 = vector.extract_strided_slice %299 {offsets = [0, 24], sizes = [3, 8], strides = [1, 1]} : vector<6x96xf32> to vector<3x8xf32>
    %352 = vector.extract_strided_slice %299 {offsets = [0, 56], sizes = [3, 8], strides = [1, 1]} : vector<6x96xf32> to vector<3x8xf32>
    %353 = vector.extract_strided_slice %299 {offsets = [0, 88], sizes = [3, 8], strides = [1, 1]} : vector<6x96xf32> to vector<3x8xf32>
    %cst_127 = arith.constant 0.353553385 : f32
    %354 = vector.broadcast %cst_127 : f32 to vector<3x8xf32>
    %355 = arith.mulf %351, %354 : vector<3x8xf32>
    %cst_128 = arith.constant dense<0.000000e+00> : vector<3x3xf32>
    %356 = tpu.matmul %355, %352, %cst_128 {dimension_numbers = #tpu.dot_dimension_numbers<[1], [1], [0], [0], [0, 0, 1, 0], [], []>} : vector<3x8xf32>, vector<3x8xf32>, vector<3x3xf32> -> vector<3x3xf32>
    %cst_129 = arith.constant dense<0xFF800000> : vector<3xf32>
    %357 = vector.multi_reduction <maximumf>, %356, %cst_129 [1] : vector<3x3xf32> to vector<3xf32>
    %358 = vector.shape_cast %357 : vector<3xf32> to vector<3x1xf32>
    %359 = vector.broadcast %358 : vector<3x1xf32> to vector<3x3xf32>
    %360 = arith.subf %356, %359 : vector<3x3xf32>
    %361 = math.exp %360 : vector<3x3xf32>
    %cst_130 = arith.constant dense<0.000000e+00> : vector<3xf32>
    %362 = vector.multi_reduction <add>, %361, %cst_130 [1] : vector<3x3xf32> to vector<3xf32>
    %363 = vector.shape_cast %362 : vector<3xf32> to vector<3x1xf32>
    %364 = tpu.reciprocal %363 {approx = true} : vector<3x1xf32> -> vector<3x1xf32>
    %365 = vector.broadcast %364 : vector<3x1xf32> to vector<3x3xf32>
    %366 = arith.mulf %361, %365 : vector<3x3xf32>
    %cst_131 = arith.constant dense<0.000000e+00> : vector<3x8xf32>
    %367 = tpu.matmul %366, %353, %cst_131 {dimension_numbers = #tpu.dot_dimension_numbers<[1], [0], [0], [1], [0, 0, 1, 1], [], []>} : vector<3x3xf32>, vector<3x8xf32>, vector<3x8xf32> -> vector<3x8xf32>
    %368 = tpu.concatenate %316, %333, %350, %367 in 1 : vector<3x8xf32>, vector<3x8xf32>, vector<3x8xf32>, vector<3x8xf32> -> vector<3x32xf32>
    %369 = vector.extract_strided_slice %299 {offsets = [3, 0], sizes = [3, 8], strides = [1, 1]} : vector<6x96xf32> to vector<3x8xf32>
    %370 = vector.extract_strided_slice %299 {offsets = [3, 32], sizes = [3, 8], strides = [1, 1]} : vector<6x96xf32> to vector<3x8xf32>
    %371 = vector.extract_strided_slice %299 {offsets = [3, 64], sizes = [3, 8], strides = [1, 1]} : vector<6x96xf32> to vector<3x8xf32>
    %cst_132 = arith.constant 0.353553385 : f32
    %372 = vector.broadcast %cst_132 : f32 to vector<3x8xf32>
    %373 = arith.mulf %369, %372 : vector<3x8xf32>
    %cst_133 = arith.constant dense<0.000000e+00> : vector<3x3xf32>
    %374 = tpu.matmul %373, %370, %cst_133 {dimension_numbers = #tpu.dot_dimension_numbers<[1], [1], [0], [0], [0, 0, 1, 0], [], []>} : vector<3x8xf32>, vector<3x8xf32>, vector<3x3xf32> -> vector<3x3xf32>
    %cst_134 = arith.constant dense<0xFF800000> : vector<3xf32>
    %375 = vector.multi_reduction <maximumf>, %374, %cst_134 [1] : vector<3x3xf32> to vector<3xf32>
    %376 = vector.shape_cast %375 : vector<3xf32> to vector<3x1xf32>
    %377 = vector.broadcast %376 : vector<3x1xf32> to vector<3x3xf32>
    %378 = arith.subf %374, %377 : vector<3x3xf32>
    %379 = math.exp %378 : vector<3x3xf32>
    %cst_135 = arith.constant dense<0.000000e+00> : vector<3xf32>
    %380 = vector.multi_reduction <add>, %379, %cst_135 [1] : vector<3x3xf32> to vector<3xf32>
    %381 = vector.shape_cast %380 : vector<3xf32> to vector<3x1xf32>
    %382 = tpu.reciprocal %381 {approx = true} : vector<3x1xf32> -> vector<3x1xf32>
    %383 = vector.broadcast %382 : vector<3x1xf32> to vector<3x3xf32>
    %384 = arith.mulf %379, %383 : vector<3x3xf32>
    %cst_136 = arith.constant dense<0.000000e+00> : vector<3x8xf32>
    %385 = tpu.matmul %384, %371, %cst_136 {dimension_numbers = #tpu.dot_dimension_numbers<[1], [0], [0], [1], [0, 0, 1, 1], [], []>} : vector<3x3xf32>, vector<3x8xf32>, vector<3x8xf32> -> vector<3x8xf32>
    %386 = vector.extract_strided_slice %299 {offsets = [3, 8], sizes = [3, 8], strides = [1, 1]} : vector<6x96xf32> to vector<3x8xf32>
    %387 = vector.extract_strided_slice %299 {offsets = [3, 40], sizes = [3, 8], strides = [1, 1]} : vector<6x96xf32> to vector<3x8xf32>
    %388 = vector.extract_strided_slice %299 {offsets = [3, 72], sizes = [3, 8], strides = [1, 1]} : vector<6x96xf32> to vector<3x8xf32>
    %cst_137 = arith.constant 0.353553385 : f32
    %389 = vector.broadcast %cst_137 : f32 to vector<3x8xf32>
    %390 = arith.mulf %386, %389 : vector<3x8xf32>
    %cst_138 = arith.constant dense<0.000000e+00> : vector<3x3xf32>
    %391 = tpu.matmul %390, %387, %cst_138 {dimension_numbers = #tpu.dot_dimension_numbers<[1], [1], [0], [0], [0, 0, 1, 0], [], []>} : vector<3x8xf32>, vector<3x8xf32>, vector<3x3xf32> -> vector<3x3xf32>
    %cst_139 = arith.constant dense<0xFF800000> : vector<3xf32>
    %392 = vector.multi_reduction <maximumf>, %391, %cst_139 [1] : vector<3x3xf32> to vector<3xf32>
    %393 = vector.shape_cast %392 : vector<3xf32> to vector<3x1xf32>
    %394 = vector.broadcast %393 : vector<3x1xf32> to vector<3x3xf32>
    %395 = arith.subf %391, %394 : vector<3x3xf32>
    %396 = math.exp %395 : vector<3x3xf32>
    %cst_140 = arith.constant dense<0.000000e+00> : vector<3xf32>
    %397 = vector.multi_reduction <add>, %396, %cst_140 [1] : vector<3x3xf32> to vector<3xf32>
    %398 = vector.shape_cast %397 : vector<3xf32> to vector<3x1xf32>
    %399 = tpu.reciprocal %398 {approx = true} : vector<3x1xf32> -> vector<3x1xf32>
    %400 = vector.broadcast %399 : vector<3x1xf32> to vector<3x3xf32>
    %401 = arith.mulf %396, %400 : vector<3x3xf32>
    %cst_141 = arith.constant dense<0.000000e+00> : vector<3x8xf32>
    %402 = tpu.matmul %401, %388, %cst_141 {dimension_numbers = #tpu.dot_dimension_numbers<[1], [0], [0], [1], [0, 0, 1, 1], [], []>} : vector<3x3xf32>, vector<3x8xf32>, vector<3x8xf32> -> vector<3x8xf32>
    %403 = vector.extract_strided_slice %299 {offsets = [3, 16], sizes = [3, 8], strides = [1, 1]} : vector<6x96xf32> to vector<3x8xf32>
    %404 = vector.extract_strided_slice %299 {offsets = [3, 48], sizes = [3, 8], strides = [1, 1]} : vector<6x96xf32> to vector<3x8xf32>
    %405 = vector.extract_strided_slice %299 {offsets = [3, 80], sizes = [3, 8], strides = [1, 1]} : vector<6x96xf32> to vector<3x8xf32>
    %cst_142 = arith.constant 0.353553385 : f32
    %406 = vector.broadcast %cst_142 : f32 to vector<3x8xf32>
    %407 = arith.mulf %403, %406 : vector<3x8xf32>
    %cst_143 = arith.constant dense<0.000000e+00> : vector<3x3xf32>
    %408 = tpu.matmul %407, %404, %cst_143 {dimension_numbers = #tpu.dot_dimension_numbers<[1], [1], [0], [0], [0, 0, 1, 0], [], []>} : vector<3x8xf32>, vector<3x8xf32>, vector<3x3xf32> -> vector<3x3xf32>
    %cst_144 = arith.constant dense<0xFF800000> : vector<3xf32>
    %409 = vector.multi_reduction <maximumf>, %408, %cst_144 [1] : vector<3x3xf32> to vector<3xf32>
    %410 = vector.shape_cast %409 : vector<3xf32> to vector<3x1xf32>
    %411 = vector.broadcast %410 : vector<3x1xf32> to vector<3x3xf32>
    %412 = arith.subf %408, %411 : vector<3x3xf32>
    %413 = math.exp %412 : vector<3x3xf32>
    %cst_145 = arith.constant dense<0.000000e+00> : vector<3xf32>
    %414 = vector.multi_reduction <add>, %413, %cst_145 [1] : vector<3x3xf32> to vector<3xf32>
    %415 = vector.shape_cast %414 : vector<3xf32> to vector<3x1xf32>
    %416 = tpu.reciprocal %415 {approx = true} : vector<3x1xf32> -> vector<3x1xf32>
    %417 = vector.broadcast %416 : vector<3x1xf32> to vector<3x3xf32>
    %418 = arith.mulf %413, %417 : vector<3x3xf32>
    %cst_146 = arith.constant dense<0.000000e+00> : vector<3x8xf32>
    %419 = tpu.matmul %418, %405, %cst_146 {dimension_numbers = #tpu.dot_dimension_numbers<[1], [0], [0], [1], [0, 0, 1, 1], [], []>} : vector<3x3xf32>, vector<3x8xf32>, vector<3x8xf32> -> vector<3x8xf32>
    %420 = vector.extract_strided_slice %299 {offsets = [3, 24], sizes = [3, 8], strides = [1, 1]} : vector<6x96xf32> to vector<3x8xf32>
    %421 = vector.extract_strided_slice %299 {offsets = [3, 56], sizes = [3, 8], strides = [1, 1]} : vector<6x96xf32> to vector<3x8xf32>
    %422 = vector.extract_strided_slice %299 {offsets = [3, 88], sizes = [3, 8], strides = [1, 1]} : vector<6x96xf32> to vector<3x8xf32>
    %cst_147 = arith.constant 0.353553385 : f32
    %423 = vector.broadcast %cst_147 : f32 to vector<3x8xf32>
    %424 = arith.mulf %420, %423 : vector<3x8xf32>
    %cst_148 = arith.constant dense<0.000000e+00> : vector<3x3xf32>
    %425 = tpu.matmul %424, %421, %cst_148 {dimension_numbers = #tpu.dot_dimension_numbers<[1], [1], [0], [0], [0, 0, 1, 0], [], []>} : vector<3x8xf32>, vector<3x8xf32>, vector<3x3xf32> -> vector<3x3xf32>
    %cst_149 = arith.constant dense<0xFF800000> : vector<3xf32>
    %426 = vector.multi_reduction <maximumf>, %425, %cst_149 [1] : vector<3x3xf32> to vector<3xf32>
    %427 = vector.shape_cast %426 : vector<3xf32> to vector<3x1xf32>
    %428 = vector.broadcast %427 : vector<3x1xf32> to vector<3x3xf32>
    %429 = arith.subf %425, %428 : vector<3x3xf32>
    %430 = math.exp %429 : vector<3x3xf32>
    %cst_150 = arith.constant dense<0.000000e+00> : vector<3xf32>
    %431 = vector.multi_reduction <add>, %430, %cst_150 [1] : vector<3x3xf32> to vector<3xf32>
    %432 = vector.shape_cast %431 : vector<3xf32> to vector<3x1xf32>
    %433 = tpu.reciprocal %432 {approx = true} : vector<3x1xf32> -> vector<3x1xf32>
    %434 = vector.broadcast %433 : vector<3x1xf32> to vector<3x3xf32>
    %435 = arith.mulf %430, %434 : vector<3x3xf32>
    %cst_151 = arith.constant dense<0.000000e+00> : vector<3x8xf32>
    %436 = tpu.matmul %435, %422, %cst_151 {dimension_numbers = #tpu.dot_dimension_numbers<[1], [0], [0], [1], [0, 0, 1, 1], [], []>} : vector<3x3xf32>, vector<3x8xf32>, vector<3x8xf32> -> vector<3x8xf32>
    %437 = tpu.concatenate %385, %402, %419, %436 in 1 : vector<3x8xf32>, vector<3x8xf32>, vector<3x8xf32>, vector<3x8xf32> -> vector<3x32xf32>
    %438 = tpu.concatenate %368, %437 in 0 : vector<3x32xf32>, vector<3x32xf32> -> vector<6x32xf32>
    %cst_152 = arith.constant dense<0.000000e+00> : vector<6x32xf32>
    %439 = tpu.matmul %438, %273, %cst_152 {dimension_numbers = #tpu.dot_dimension_numbers<[1], [0], [0], [1], [0, 0, 1, 1], [], []>} : vector<6x32xf32>, vector<32x32xf32>, vector<6x32xf32> -> vector<6x32xf32>
    %440 = arith.addf %254, %439 : vector<6x32xf32>
    %441 = vector.broadcast %262 : vector<1x32xf32> to vector<6x32xf32>
    %442 = arith.addf %440, %441 : vector<6x32xf32>
    %cst_153 = arith.constant dense<0.000000e+00> : vector<6xf32>
    %443 = vector.multi_reduction <add>, %442, %cst_153 [1] : vector<6x32xf32> to vector<6xf32>
    %444 = vector.shape_cast %443 : vector<6xf32> to vector<6x1xf32>
    %cst_154 = arith.constant 3.200000e+01 : f32
    %445 = vector.broadcast %cst_154 : f32 to vector<6x1xf32>
    %446 = arith.divf %444, %445 : vector<6x1xf32>
    %447 = vector.broadcast %446 : vector<6x1xf32> to vector<6x32xf32>
    %448 = arith.subf %442, %447 : vector<6x32xf32>
    %449 = arith.mulf %448, %448 : vector<6x32xf32>
    %cst_155 = arith.constant dense<0.000000e+00> : vector<6xf32>
    %450 = vector.multi_reduction <add>, %449, %cst_155 [1] : vector<6x32xf32> to vector<6xf32>
    %451 = vector.shape_cast %450 : vector<6xf32> to vector<6x1xf32>
    %cst_156 = arith.constant 3.200000e+01 : f32
    %452 = vector.broadcast %cst_156 : f32 to vector<6x1xf32>
    %453 = arith.divf %451, %452 : vector<6x1xf32>
    %cst_157 = arith.constant 9.99999974E-6 : f32
    %454 = vector.broadcast %cst_157 : f32 to vector<6x1xf32>
    %455 = arith.addf %453, %454 : vector<6x1xf32>
    %456 = math.rsqrt %455 : vector<6x1xf32>
    %457 = vector.broadcast %456 : vector<6x1xf32> to vector<6x32xf32>
    %458 = arith.mulf %448, %457 : vector<6x32xf32>
    %459 = vector.broadcast %264 : vector<1x32xf32> to vector<6x32xf32>
    %460 = arith.mulf %458, %459 : vector<6x32xf32>
    %461 = vector.broadcast %266 : vector<1x32xf32> to vector<6x32xf32>
    %462 = arith.addf %460, %461 : vector<6x32xf32>
    %cst_158 = arith.constant dense<0.000000e+00> : vector<6x128xf32>
    %463 = tpu.matmul %462, %274, %cst_158 {dimension_numbers = #tpu.dot_dimension_numbers<[1], [0], [0], [1], [0, 0, 1, 1], [], []>} : vector<6x32xf32>, vector<32x128xf32>, vector<6x128xf32> -> vector<6x128xf32>
    %464 = vector.broadcast %267 : vector<1x128xf32> to vector<6x128xf32>
    %465 = arith.addf %463, %464 : vector<6x128xf32>
    %cst_159 = arith.constant 5.000000e-01 : f32
    %466 = vector.broadcast %cst_159 : f32 to vector<6x128xf32>
    %467 = arith.mulf %466, %465 : vector<6x128xf32>
    %cst_160 = arith.constant 4.471500e-02 : f32
    %468 = vector.broadcast %cst_160 : f32 to vector<6x128xf32>
    %469 = arith.mulf %468, %465 : vector<6x128xf32>
    %470 = arith.mulf %469, %465 : vector<6x128xf32>
    %471 = arith.mulf %470, %465 : vector<6x128xf32>
    %472 = arith.addf %465, %471 : vector<6x128xf32>
    %cst_161 = arith.constant 0.797884583 : f32
    %473 = vector.broadcast %cst_161 : f32 to vector<6x128xf32>
    %474 = arith.mulf %473, %472 : vector<6x128xf32>
    %475 = math.tanh %474 : vector<6x128xf32>
    %cst_162 = arith.constant 1.000000e+00 : f32
    %476 = vector.broadcast %cst_162 : f32 to vector<6x128xf32>
    %477 = arith.addf %476, %475 : vector<6x128xf32>
    %478 = arith.mulf %467, %477 : vector<6x128xf32>
    %cst_163 = arith.constant dense<0.000000e+00> : vector<6x32xf32>
    %479 = tpu.matmul %478, %276, %cst_163 {dimension_numbers = #tpu.dot_dimension_numbers<[1], [0], [0], [1], [0, 0, 1, 1], [], []>} : vector<6x128xf32>, vector<128x32xf32>, vector<6x32xf32> -> vector<6x32xf32>
    %480 = arith.addf %442, %479 : vector<6x32xf32>
    %481 = vector.broadcast %269 : vector<1x32xf32> to vector<6x32xf32>
    %482 = arith.addf %480, %481 : vector<6x32xf32>
    %483 = vector.extract_strided_slice %0 {offsets = [2, 0], sizes = [1, 32], strides = [1, 1]} : vector<8x128xf32> to vector<1x32xf32>
    %484 = vector.extract_strided_slice %0 {offsets = [3, 0], sizes = [1, 32], strides = [1, 1]} : vector<8x128xf32> to vector<1x32xf32>
    %cst_164 = arith.constant dense<0.000000e+00> : vector<6xf32>
    %485 = vector.multi_reduction <add>, %482, %cst_164 [1] : vector<6x32xf32> to vector<6xf32>
    %486 = vector.shape_cast %485 : vector<6xf32> to vector<6x1xf32>
    %cst_165 = arith.constant 3.200000e+01 : f32
    %487 = vector.broadcast %cst_165 : f32 to vector<6x1xf32>
    %488 = arith.divf %486, %487 : vector<6x1xf32>
    %489 = vector.broadcast %488 : vector<6x1xf32> to vector<6x32xf32>
    %490 = arith.subf %482, %489 : vector<6x32xf32>
    %491 = arith.mulf %490, %490 : vector<6x32xf32>
    %cst_166 = arith.constant dense<0.000000e+00> : vector<6xf32>
    %492 = vector.multi_reduction <add>, %491, %cst_166 [1] : vector<6x32xf32> to vector<6xf32>
    %493 = vector.shape_cast %492 : vector<6xf32> to vector<6x1xf32>
    %cst_167 = arith.constant 3.200000e+01 : f32
    %494 = vector.broadcast %cst_167 : f32 to vector<6x1xf32>
    %495 = arith.divf %493, %494 : vector<6x1xf32>
    %cst_168 = arith.constant 9.99999974E-6 : f32
    %496 = vector.broadcast %cst_168 : f32 to vector<6x1xf32>
    %497 = arith.addf %495, %496 : vector<6x1xf32>
    %498 = math.rsqrt %497 : vector<6x1xf32>
    %499 = vector.broadcast %498 : vector<6x1xf32> to vector<6x32xf32>
    %500 = arith.mulf %490, %499 : vector<6x32xf32>
    %501 = vector.broadcast %483 : vector<1x32xf32> to vector<6x32xf32>
    %502 = arith.mulf %500, %501 : vector<6x32xf32>
    %503 = vector.broadcast %484 : vector<1x32xf32> to vector<6x32xf32>
    %504 = arith.addf %502, %503 : vector<6x32xf32>
    %c0_169 = arith.constant 0 : index
    %c0_170 = arith.constant 0 : index
    %505 = vector.load %arg8[%c0_169, %c0_170] : memref<32x32xf32, #tpu.memory_space<vmem>>, vector<32x32xf32>
    %cst_171 = arith.constant dense<0.000000e+00> : vector<6x32xf32>
    %506 = tpu.matmul %504, %505, %cst_171 {dimension_numbers = #tpu.dot_dimension_numbers<[1], [0], [0], [1], [0, 0, 1, 1], [], []>} : vector<6x32xf32>, vector<32x32xf32>, vector<6x32xf32> -> vector<6x32xf32>
    %507 = vector.extract_strided_slice %0 {offsets = [4, 0], sizes = [1, 32], strides = [1, 1]} : vector<8x128xf32> to vector<1x32xf32>
    %508 = vector.broadcast %507 : vector<1x32xf32> to vector<6x32xf32>
    %509 = arith.addf %506, %508 : vector<6x32xf32>
    %c0_172 = arith.constant 0 : index
    %c0_173 = arith.constant 0 : index
    %510 = vector.load %arg15[%c0_172, %c0_173] : memref<6x32xf32, #tpu.memory_space<vmem>>, vector<6x32xf32>
    tpu.vector_store %arg15[%c0_172, %c0_173], %509 {strides = array<i32>} : memref<6x32xf32, #tpu.memory_space<vmem>>, vector<6x32xf32>,
    %c0_174 = arith.constant 0 : index
    %c0_175 = arith.constant 0 : index
    %511 = vector.load %arg9[%c0_174, %c0_175] : memref<9x32xf32, #tpu.memory_space<vmem>>, vector<9x32xf32>
    %512 = vector.extract_strided_slice %509 {offsets = [0, 0], sizes = [1, 32], strides = [1, 1]} : vector<6x32xf32> to vector<1x32xf32>
    %513 = vector.extract_strided_slice %511 {offsets = [0, 0], sizes = [1, 32], strides = [1, 1]} : vector<9x32xf32> to vector<1x32xf32>
    %514 = arith.addf %512, %513 : vector<1x32xf32>
    %c0_176 = arith.constant 0 : index
    %c0_177 = arith.constant 0 : index
    %515 = vector.load %arg16[%c0_176, %c0_177] : memref<18x32xf32, #tpu.memory_space<vmem>>, vector<1x32xf32>
    tpu.vector_store %arg16[%c0_176, %c0_177], %514 {strides = array<i32>} : memref<18x32xf32, #tpu.memory_space<vmem>>, vector<1x32xf32>,
    %c0_178 = arith.constant 0 : index
    %c0_179 = arith.constant 0 : index
    %516 = memref.load %arg1[%c0_178, %c0_179] : memref<2x8xi32, #tpu.memory_space<smem>>
    %c2_i32 = arith.constant 2 : i32
    %517 = arith.cmpi slt, %516, %c2_i32 : i32
    %518 = arith.extui %517 : i1 to i32
    %519 = arith.sitofp %518 : i32 to f32
    %c2_i32_180 = arith.constant 2 : i32
    %520 = arith.cmpi slt, %516, %c2_i32_180 : i32
    %c1_i32 = arith.constant 1 : i32
    %521 = arith.addi %516, %c1_i32 : i32
    %c0_i32_181 = arith.constant 0 : i32
    %522 = arith.select %520, %521, %c0_i32_181 : i32
    %c0_i32_182 = arith.constant 0 : i32
    %523 = arith.addi %c0_i32_182, %522 : i32
    %524 = arith.index_cast %523 : i32 to index
    %c0_183 = arith.constant 0 : index
    %525 = vector.load %arg15[%524, %c0_183] : memref<6x32xf32, #tpu.memory_space<vmem>>, vector<1x32xf32>
    %526 = vector.broadcast %519 : f32 to vector<1x32xf32>
    %527 = arith.mulf %525, %526 : vector<1x32xf32>
    %cst_184 = arith.constant 1.000000e+00 : f32
    %528 = arith.subf %cst_184, %519 : f32
    %529 = vector.broadcast %528 : f32 to vector<1x32xf32>
    %530 = arith.mulf %2, %529 : vector<1x32xf32>
    %531 = arith.addf %527, %530 : vector<1x32xf32>
    %532 = vector.extract_strided_slice %511 {offsets = [1, 0], sizes = [1, 32], strides = [1, 1]} : vector<9x32xf32> to vector<1x32xf32>
    %533 = arith.addf %531, %532 : vector<1x32xf32>
    %c1_185 = arith.constant 1 : index
    %c0_186 = arith.constant 0 : index
    %534 = vector.load %arg16[%c1_185, %c0_186] : memref<18x32xf32, #tpu.memory_space<vmem>>, vector<1x32xf32>
    tpu.vector_store %arg16[%c1_185, %c0_186], %533 {strides = array<i32>} : memref<18x32xf32, #tpu.memory_space<vmem>>, vector<1x32xf32>,
    %c0_187 = arith.constant 0 : index
    %c1_188 = arith.constant 1 : index
    %535 = memref.load %arg1[%c0_187, %c1_188] : memref<2x8xi32, #tpu.memory_space<smem>>
    %c2_i32_189 = arith.constant 2 : i32
    %536 = arith.cmpi slt, %535, %c2_i32_189 : i32
    %537 = arith.extui %536 : i1 to i32
    %538 = arith.sitofp %537 : i32 to f32
    %c2_i32_190 = arith.constant 2 : i32
    %539 = arith.cmpi slt, %535, %c2_i32_190 : i32
    %c1_i32_191 = arith.constant 1 : i32
    %540 = arith.addi %535, %c1_i32_191 : i32
    %c0_i32_192 = arith.constant 0 : i32
    %541 = arith.select %539, %540, %c0_i32_192 : i32
    %c0_i32_193 = arith.constant 0 : i32
    %542 = arith.addi %c0_i32_193, %541 : i32
    %543 = arith.index_cast %542 : i32 to index
    %c0_194 = arith.constant 0 : index
    %544 = vector.load %arg15[%543, %c0_194] : memref<6x32xf32, #tpu.memory_space<vmem>>, vector<1x32xf32>
    %545 = vector.broadcast %538 : f32 to vector<1x32xf32>
    %546 = arith.mulf %544, %545 : vector<1x32xf32>
    %cst_195 = arith.constant 1.000000e+00 : f32
    %547 = arith.subf %cst_195, %538 : f32
    %548 = vector.broadcast %547 : f32 to vector<1x32xf32>
    %549 = arith.mulf %2, %548 : vector<1x32xf32>
    %550 = arith.addf %546, %549 : vector<1x32xf32>
    %551 = vector.extract_strided_slice %511 {offsets = [2, 0], sizes = [1, 32], strides = [1, 1]} : vector<9x32xf32> to vector<1x32xf32>
    %552 = arith.addf %550, %551 : vector<1x32xf32>
    %c2_196 = arith.constant 2 : index
    %c0_197 = arith.constant 0 : index
    %553 = vector.load %arg16[%c2_196, %c0_197] : memref<18x32xf32, #tpu.memory_space<vmem>>, vector<1x32xf32>
    tpu.vector_store %arg16[%c2_196, %c0_197], %552 {strides = array<i32>} : memref<18x32xf32, #tpu.memory_space<vmem>>, vector<1x32xf32>,
    %c0_198 = arith.constant 0 : index
    %c2_199 = arith.constant 2 : index
    %554 = memref.load %arg1[%c0_198, %c2_199] : memref<2x8xi32, #tpu.memory_space<smem>>
    %c2_i32_200 = arith.constant 2 : i32
    %555 = arith.cmpi slt, %554, %c2_i32_200 : i32
    %556 = arith.extui %555 : i1 to i32
    %557 = arith.sitofp %556 : i32 to f32
    %c2_i32_201 = arith.constant 2 : i32
    %558 = arith.cmpi slt, %554, %c2_i32_201 : i32
    %c1_i32_202 = arith.constant 1 : i32
    %559 = arith.addi %554, %c1_i32_202 : i32
    %c0_i32_203 = arith.constant 0 : i32
    %560 = arith.select %558, %559, %c0_i32_203 : i32
    %c0_i32_204 = arith.constant 0 : i32
    %561 = arith.addi %c0_i32_204, %560 : i32
    %562 = arith.index_cast %561 : i32 to index
    %c0_205 = arith.constant 0 : index
    %563 = vector.load %arg15[%562, %c0_205] : memref<6x32xf32, #tpu.memory_space<vmem>>, vector<1x32xf32>
    %564 = vector.broadcast %557 : f32 to vector<1x32xf32>
    %565 = arith.mulf %563, %564 : vector<1x32xf32>
    %cst_206 = arith.constant 1.000000e+00 : f32
    %566 = arith.subf %cst_206, %557 : f32
    %567 = vector.broadcast %566 : f32 to vector<1x32xf32>
    %568 = arith.mulf %2, %567 : vector<1x32xf32>
    %569 = arith.addf %565, %568 : vector<1x32xf32>
    %570 = vector.extract_strided_slice %511 {offsets = [3, 0], sizes = [1, 32], strides = [1, 1]} : vector<9x32xf32> to vector<1x32xf32>
    %571 = arith.addf %569, %570 : vector<1x32xf32>
    %c3_207 = arith.constant 3 : index
    %c0_208 = arith.constant 0 : index
    %572 = vector.load %arg16[%c3_207, %c0_208] : memref<18x32xf32, #tpu.memory_space<vmem>>, vector<1x32xf32>
    tpu.vector_store %arg16[%c3_207, %c0_208], %571 {strides = array<i32>} : memref<18x32xf32, #tpu.memory_space<vmem>>, vector<1x32xf32>,
    %c0_209 = arith.constant 0 : index
    %c3_210 = arith.constant 3 : index
    %573 = memref.load %arg1[%c0_209, %c3_210] : memref<2x8xi32, #tpu.memory_space<smem>>
    %c2_i32_211 = arith.constant 2 : i32
    %574 = arith.cmpi slt, %573, %c2_i32_211 : i32
    %575 = arith.extui %574 : i1 to i32
    %576 = arith.sitofp %575 : i32 to f32
    %c2_i32_212 = arith.constant 2 : i32
    %577 = arith.cmpi slt, %573, %c2_i32_212 : i32
    %c1_i32_213 = arith.constant 1 : i32
    %578 = arith.addi %573, %c1_i32_213 : i32
    %c0_i32_214 = arith.constant 0 : i32
    %579 = arith.select %577, %578, %c0_i32_214 : i32
    %c0_i32_215 = arith.constant 0 : i32
    %580 = arith.addi %c0_i32_215, %579 : i32
    %581 = arith.index_cast %580 : i32 to index
    %c0_216 = arith.constant 0 : index
    %582 = vector.load %arg15[%581, %c0_216] : memref<6x32xf32, #tpu.memory_space<vmem>>, vector<1x32xf32>
    %583 = vector.broadcast %576 : f32 to vector<1x32xf32>
    %584 = arith.mulf %582, %583 : vector<1x32xf32>
    %cst_217 = arith.constant 1.000000e+00 : f32
    %585 = arith.subf %cst_217, %576 : f32
    %586 = vector.broadcast %585 : f32 to vector<1x32xf32>
    %587 = arith.mulf %2, %586 : vector<1x32xf32>
    %588 = arith.addf %584, %587 : vector<1x32xf32>
    %589 = vector.extract_strided_slice %511 {offsets = [4, 0], sizes = [1, 32], strides = [1, 1]} : vector<9x32xf32> to vector<1x32xf32>
    %590 = arith.addf %588, %589 : vector<1x32xf32>
    %c4_218 = arith.constant 4 : index
    %c0_219 = arith.constant 0 : index
    %591 = vector.load %arg16[%c4_218, %c0_219] : memref<18x32xf32, #tpu.memory_space<vmem>>, vector<1x32xf32>
    tpu.vector_store %arg16[%c4_218, %c0_219], %590 {strides = array<i32>} : memref<18x32xf32, #tpu.memory_space<vmem>>, vector<1x32xf32>,
    %c0_220 = arith.constant 0 : index
    %c4_221 = arith.constant 4 : index
    %592 = memref.load %arg1[%c0_220, %c4_221] : memref<2x8xi32, #tpu.memory_space<smem>>
    %c2_i32_222 = arith.constant 2 : i32
    %593 = arith.cmpi slt, %592, %c2_i32_222 : i32
    %594 = arith.extui %593 : i1 to i32
    %595 = arith.sitofp %594 : i32 to f32
    %c2_i32_223 = arith.constant 2 : i32
    %596 = arith.cmpi slt, %592, %c2_i32_223 : i32
    %c1_i32_224 = arith.constant 1 : i32
    %597 = arith.addi %592, %c1_i32_224 : i32
    %c0_i32_225 = arith.constant 0 : i32
    %598 = arith.select %596, %597, %c0_i32_225 : i32
    %c0_i32_226 = arith.constant 0 : i32
    %599 = arith.addi %c0_i32_226, %598 : i32
    %600 = arith.index_cast %599 : i32 to index
    %c0_227 = arith.constant 0 : index
    %601 = vector.load %arg15[%600, %c0_227] : memref<6x32xf32, #tpu.memory_space<vmem>>, vector<1x32xf32>
    %602 = vector.broadcast %595 : f32 to vector<1x32xf32>
    %603 = arith.mulf %601, %602 : vector<1x32xf32>
    %cst_228 = arith.constant 1.000000e+00 : f32
    %604 = arith.subf %cst_228, %595 : f32
    %605 = vector.broadcast %604 : f32 to vector<1x32xf32>
    %606 = arith.mulf %2, %605 : vector<1x32xf32>
    %607 = arith.addf %603, %606 : vector<1x32xf32>
    %608 = vector.extract_strided_slice %511 {offsets = [5, 0], sizes = [1, 32], strides = [1, 1]} : vector<9x32xf32> to vector<1x32xf32>
    %609 = arith.addf %607, %608 : vector<1x32xf32>
    %c5_229 = arith.constant 5 : index
    %c0_230 = arith.constant 0 : index
    %610 = vector.load %arg16[%c5_229, %c0_230] : memref<18x32xf32, #tpu.memory_space<vmem>>, vector<1x32xf32>
    tpu.vector_store %arg16[%c5_229, %c0_230], %609 {strides = array<i32>} : memref<18x32xf32, #tpu.memory_space<vmem>>, vector<1x32xf32>,
    %c0_231 = arith.constant 0 : index
    %c5_232 = arith.constant 5 : index
    %611 = memref.load %arg1[%c0_231, %c5_232] : memref<2x8xi32, #tpu.memory_space<smem>>
    %c2_i32_233 = arith.constant 2 : i32
    %612 = arith.cmpi slt, %611, %c2_i32_233 : i32
    %613 = arith.extui %612 : i1 to i32
    %614 = arith.sitofp %613 : i32 to f32
    %c2_i32_234 = arith.constant 2 : i32
    %615 = arith.cmpi slt, %611, %c2_i32_234 : i32
    %c1_i32_235 = arith.constant 1 : i32
    %616 = arith.addi %611, %c1_i32_235 : i32
    %c0_i32_236 = arith.constant 0 : i32
    %617 = arith.select %615, %616, %c0_i32_236 : i32
    %c0_i32_237 = arith.constant 0 : i32
    %618 = arith.addi %c0_i32_237, %617 : i32
    %619 = arith.index_cast %618 : i32 to index
    %c0_238 = arith.constant 0 : index
    %620 = vector.load %arg15[%619, %c0_238] : memref<6x32xf32, #tpu.memory_space<vmem>>, vector<1x32xf32>
    %621 = vector.broadcast %614 : f32 to vector<1x32xf32>
    %622 = arith.mulf %620, %621 : vector<1x32xf32>
    %cst_239 = arith.constant 1.000000e+00 : f32
    %623 = arith.subf %cst_239, %614 : f32
    %624 = vector.broadcast %623 : f32 to vector<1x32xf32>
    %625 = arith.mulf %2, %624 : vector<1x32xf32>
    %626 = arith.addf %622, %625 : vector<1x32xf32>
    %627 = vector.extract_strided_slice %511 {offsets = [6, 0], sizes = [1, 32], strides = [1, 1]} : vector<9x32xf32> to vector<1x32xf32>
    %628 = arith.addf %626, %627 : vector<1x32xf32>
    %c6_240 = arith.constant 6 : index
    %c0_241 = arith.constant 0 : index
    %629 = vector.load %arg16[%c6_240, %c0_241] : memref<18x32xf32, #tpu.memory_space<vmem>>, vector<1x32xf32>
    tpu.vector_store %arg16[%c6_240, %c0_241], %628 {strides = array<i32>} : memref<18x32xf32, #tpu.memory_space<vmem>>, vector<1x32xf32>,
    %c0_242 = arith.constant 0 : index
    %c6_243 = arith.constant 6 : index
    %630 = memref.load %arg1[%c0_242, %c6_243] : memref<2x8xi32, #tpu.memory_space<smem>>
    %c2_i32_244 = arith.constant 2 : i32
    %631 = arith.cmpi slt, %630, %c2_i32_244 : i32
    %632 = arith.extui %631 : i1 to i32
    %633 = arith.sitofp %632 : i32 to f32
    %c2_i32_245 = arith.constant 2 : i32
    %634 = arith.cmpi slt, %630, %c2_i32_245 : i32
    %c1_i32_246 = arith.constant 1 : i32
    %635 = arith.addi %630, %c1_i32_246 : i32
    %c0_i32_247 = arith.constant 0 : i32
    %636 = arith.select %634, %635, %c0_i32_247 : i32
    %c0_i32_248 = arith.constant 0 : i32
    %637 = arith.addi %c0_i32_248, %636 : i32
    %638 = arith.index_cast %637 : i32 to index
    %c0_249 = arith.constant 0 : index
    %639 = vector.load %arg15[%638, %c0_249] : memref<6x32xf32, #tpu.memory_space<vmem>>, vector<1x32xf32>
    %640 = vector.broadcast %633 : f32 to vector<1x32xf32>
    %641 = arith.mulf %639, %640 : vector<1x32xf32>
    %cst_250 = arith.constant 1.000000e+00 : f32
    %642 = arith.subf %cst_250, %633 : f32
    %643 = vector.broadcast %642 : f32 to vector<1x32xf32>
    %644 = arith.mulf %2, %643 : vector<1x32xf32>
    %645 = arith.addf %641, %644 : vector<1x32xf32>
    %646 = vector.extract_strided_slice %511 {offsets = [7, 0], sizes = [1, 32], strides = [1, 1]} : vector<9x32xf32> to vector<1x32xf32>
    %647 = arith.addf %645, %646 : vector<1x32xf32>
    %c7_251 = arith.constant 7 : index
    %c0_252 = arith.constant 0 : index
    %648 = vector.load %arg16[%c7_251, %c0_252] : memref<18x32xf32, #tpu.memory_space<vmem>>, vector<1x32xf32>
    tpu.vector_store %arg16[%c7_251, %c0_252], %647 {strides = array<i32>} : memref<18x32xf32, #tpu.memory_space<vmem>>, vector<1x32xf32>,
    %c0_253 = arith.constant 0 : index
    %c7_254 = arith.constant 7 : index
    %649 = memref.load %arg1[%c0_253, %c7_254] : memref<2x8xi32, #tpu.memory_space<smem>>
    %c2_i32_255 = arith.constant 2 : i32
    %650 = arith.cmpi slt, %649, %c2_i32_255 : i32
    %651 = arith.extui %650 : i1 to i32
    %652 = arith.sitofp %651 : i32 to f32
    %c2_i32_256 = arith.constant 2 : i32
    %653 = arith.cmpi slt, %649, %c2_i32_256 : i32
    %c1_i32_257 = arith.constant 1 : i32
    %654 = arith.addi %649, %c1_i32_257 : i32
    %c0_i32_258 = arith.constant 0 : i32
    %655 = arith.select %653, %654, %c0_i32_258 : i32
    %c0_i32_259 = arith.constant 0 : i32
    %656 = arith.addi %c0_i32_259, %655 : i32
    %657 = arith.index_cast %656 : i32 to index
    %c0_260 = arith.constant 0 : index
    %658 = vector.load %arg15[%657, %c0_260] : memref<6x32xf32, #tpu.memory_space<vmem>>, vector<1x32xf32>
    %659 = vector.broadcast %652 : f32 to vector<1x32xf32>
    %660 = arith.mulf %658, %659 : vector<1x32xf32>
    %cst_261 = arith.constant 1.000000e+00 : f32
    %661 = arith.subf %cst_261, %652 : f32
    %662 = vector.broadcast %661 : f32 to vector<1x32xf32>
    %663 = arith.mulf %2, %662 : vector<1x32xf32>
    %664 = arith.addf %660, %663 : vector<1x32xf32>
    %665 = vector.extract_strided_slice %511 {offsets = [8, 0], sizes = [1, 32], strides = [1, 1]} : vector<9x32xf32> to vector<1x32xf32>
    %666 = arith.addf %664, %665 : vector<1x32xf32>
    %c8_262 = arith.constant 8 : index
    %c0_263 = arith.constant 0 : index
    %667 = vector.load %arg16[%c8_262, %c0_263] : memref<18x32xf32, #tpu.memory_space<vmem>>, vector<1x32xf32>
    tpu.vector_store %arg16[%c8_262, %c0_263], %666 {strides = array<i32>} : memref<18x32xf32, #tpu.memory_space<vmem>>, vector<1x32xf32>,
    %668 = vector.extract_strided_slice %509 {offsets = [3, 0], sizes = [1, 32], strides = [1, 1]} : vector<6x32xf32> to vector<1x32xf32>
    %669 = vector.extract_strided_slice %511 {offsets = [0, 0], sizes = [1, 32], strides = [1, 1]} : vector<9x32xf32> to vector<1x32xf32>
    %670 = arith.addf %668, %669 : vector<1x32xf32>
    %c9 = arith.constant 9 : index
    %c0_264 = arith.constant 0 : index
    %671 = vector.load %arg16[%c9, %c0_264] : memref<18x32xf32, #tpu.memory_space<vmem>>, vector<1x32xf32>
    tpu.vector_store %arg16[%c9, %c0_264], %670 {strides = array<i32>} : memref<18x32xf32, #tpu.memory_space<vmem>>, vector<1x32xf32>,
    %c1_265 = arith.constant 1 : index
    %c0_266 = arith.constant 0 : index
    %672 = memref.load %arg1[%c1_265, %c0_266] : memref<2x8xi32, #tpu.memory_space<smem>>
    %c2_i32_267 = arith.constant 2 : i32
    %673 = arith.cmpi slt, %672, %c2_i32_267 : i32
    %674 = arith.extui %673 : i1 to i32
    %675 = arith.sitofp %674 : i32 to f32
    %c2_i32_268 = arith.constant 2 : i32
    %676 = arith.cmpi slt, %672, %c2_i32_268 : i32
    %c1_i32_269 = arith.constant 1 : i32
    %677 = arith.addi %672, %c1_i32_269 : i32
    %c0_i32_270 = arith.constant 0 : i32
    %678 = arith.select %676, %677, %c0_i32_270 : i32
    %c3_i32 = arith.constant 3 : i32
    %679 = arith.addi %c3_i32, %678 : i32
    %680 = arith.index_cast %679 : i32 to index
    %c0_271 = arith.constant 0 : index
    %681 = vector.load %arg15[%680, %c0_271] : memref<6x32xf32, #tpu.memory_space<vmem>>, vector<1x32xf32>
    %682 = vector.broadcast %675 : f32 to vector<1x32xf32>
    %683 = arith.mulf %681, %682 : vector<1x32xf32>
    %cst_272 = arith.constant 1.000000e+00 : f32
    %684 = arith.subf %cst_272, %675 : f32
    %685 = vector.broadcast %684 : f32 to vector<1x32xf32>
    %686 = arith.mulf %2, %685 : vector<1x32xf32>
    %687 = arith.addf %683, %686 : vector<1x32xf32>
    %688 = vector.extract_strided_slice %511 {offsets = [1, 0], sizes = [1, 32], strides = [1, 1]} : vector<9x32xf32> to vector<1x32xf32>
    %689 = arith.addf %687, %688 : vector<1x32xf32>
    %c10 = arith.constant 10 : index
    %c0_273 = arith.constant 0 : index
    %690 = vector.load %arg16[%c10, %c0_273] : memref<18x32xf32, #tpu.memory_space<vmem>>, vector<1x32xf32>
    tpu.vector_store %arg16[%c10, %c0_273], %689 {strides = array<i32>} : memref<18x32xf32, #tpu.memory_space<vmem>>, vector<1x32xf32>,
    %c1_274 = arith.constant 1 : index
    %c1_275 = arith.constant 1 : index
    %691 = memref.load %arg1[%c1_274, %c1_275] : memref<2x8xi32, #tpu.memory_space<smem>>
    %c2_i32_276 = arith.constant 2 : i32
    %692 = arith.cmpi slt, %691, %c2_i32_276 : i32
    %693 = arith.extui %692 : i1 to i32
    %694 = arith.sitofp %693 : i32 to f32
    %c2_i32_277 = arith.constant 2 : i32
    %695 = arith.cmpi slt, %691, %c2_i32_277 : i32
    %c1_i32_278 = arith.constant 1 : i32
    %696 = arith.addi %691, %c1_i32_278 : i32
    %c0_i32_279 = arith.constant 0 : i32
    %697 = arith.select %695, %696, %c0_i32_279 : i32
    %c3_i32_280 = arith.constant 3 : i32
    %698 = arith.addi %c3_i32_280, %697 : i32
    %699 = arith.index_cast %698 : i32 to index
    %c0_281 = arith.constant 0 : index
    %700 = vector.load %arg15[%699, %c0_281] : memref<6x32xf32, #tpu.memory_space<vmem>>, vector<1x32xf32>
    %701 = vector.broadcast %694 : f32 to vector<1x32xf32>
    %702 = arith.mulf %700, %701 : vector<1x32xf32>
    %cst_282 = arith.constant 1.000000e+00 : f32
    %703 = arith.subf %cst_282, %694 : f32
    %704 = vector.broadcast %703 : f32 to vector<1x32xf32>
    %705 = arith.mulf %2, %704 : vector<1x32xf32>
    %706 = arith.addf %702, %705 : vector<1x32xf32>
    %707 = vector.extract_strided_slice %511 {offsets = [2, 0], sizes = [1, 32], strides = [1, 1]} : vector<9x32xf32> to vector<1x32xf32>
    %708 = arith.addf %706, %707 : vector<1x32xf32>
    %c11 = arith.constant 11 : index
    %c0_283 = arith.constant 0 : index
    %709 = vector.load %arg16[%c11, %c0_283] : memref<18x32xf32, #tpu.memory_space<vmem>>, vector<1x32xf32>
    tpu.vector_store %arg16[%c11, %c0_283], %708 {strides = array<i32>} : memref<18x32xf32, #tpu.memory_space<vmem>>, vector<1x32xf32>,
    %c1_284 = arith.constant 1 : index
    %c2_285 = arith.constant 2 : index
    %710 = memref.load %arg1[%c1_284, %c2_285] : memref<2x8xi32, #tpu.memory_space<smem>>
    %c2_i32_286 = arith.constant 2 : i32
    %711 = arith.cmpi slt, %710, %c2_i32_286 : i32
    %712 = arith.extui %711 : i1 to i32
    %713 = arith.sitofp %712 : i32 to f32
    %c2_i32_287 = arith.constant 2 : i32
    %714 = arith.cmpi slt, %710, %c2_i32_287 : i32
    %c1_i32_288 = arith.constant 1 : i32
    %715 = arith.addi %710, %c1_i32_288 : i32
    %c0_i32_289 = arith.constant 0 : i32
    %716 = arith.select %714, %715, %c0_i32_289 : i32
    %c3_i32_290 = arith.constant 3 : i32
    %717 = arith.addi %c3_i32_290, %716 : i32
    %718 = arith.index_cast %717 : i32 to index
    %c0_291 = arith.constant 0 : index
    %719 = vector.load %arg15[%718, %c0_291] : memref<6x32xf32, #tpu.memory_space<vmem>>, vector<1x32xf32>
    %720 = vector.broadcast %713 : f32 to vector<1x32xf32>
    %721 = arith.mulf %719, %720 : vector<1x32xf32>
    %cst_292 = arith.constant 1.000000e+00 : f32
    %722 = arith.subf %cst_292, %713 : f32
    %723 = vector.broadcast %722 : f32 to vector<1x32xf32>
    %724 = arith.mulf %2, %723 : vector<1x32xf32>
    %725 = arith.addf %721, %724 : vector<1x32xf32>
    %726 = vector.extract_strided_slice %511 {offsets = [3, 0], sizes = [1, 32], strides = [1, 1]} : vector<9x32xf32> to vector<1x32xf32>
    %727 = arith.addf %725, %726 : vector<1x32xf32>
    %c12 = arith.constant 12 : index
    %c0_293 = arith.constant 0 : index
    %728 = vector.load %arg16[%c12, %c0_293] : memref<18x32xf32, #tpu.memory_space<vmem>>, vector<1x32xf32>
    tpu.vector_store %arg16[%c12, %c0_293], %727 {strides = array<i32>} : memref<18x32xf32, #tpu.memory_space<vmem>>, vector<1x32xf32>,
    %c1_294 = arith.constant 1 : index
    %c3_295 = arith.constant 3 : index
    %729 = memref.load %arg1[%c1_294, %c3_295] : memref<2x8xi32, #tpu.memory_space<smem>>
    %c2_i32_296 = arith.constant 2 : i32
    %730 = arith.cmpi slt, %729, %c2_i32_296 : i32
    %731 = arith.extui %730 : i1 to i32
    %732 = arith.sitofp %731 : i32 to f32
    %c2_i32_297 = arith.constant 2 : i32
    %733 = arith.cmpi slt, %729, %c2_i32_297 : i32
    %c1_i32_298 = arith.constant 1 : i32
    %734 = arith.addi %729, %c1_i32_298 : i32
    %c0_i32_299 = arith.constant 0 : i32
    %735 = arith.select %733, %734, %c0_i32_299 : i32
    %c3_i32_300 = arith.constant 3 : i32
    %736 = arith.addi %c3_i32_300, %735 : i32
    %737 = arith.index_cast %736 : i32 to index
    %c0_301 = arith.constant 0 : index
    %738 = vector.load %arg15[%737, %c0_301] : memref<6x32xf32, #tpu.memory_space<vmem>>, vector<1x32xf32>
    %739 = vector.broadcast %732 : f32 to vector<1x32xf32>
    %740 = arith.mulf %738, %739 : vector<1x32xf32>
    %cst_302 = arith.constant 1.000000e+00 : f32
    %741 = arith.subf %cst_302, %732 : f32
    %742 = vector.broadcast %741 : f32 to vector<1x32xf32>
    %743 = arith.mulf %2, %742 : vector<1x32xf32>
    %744 = arith.addf %740, %743 : vector<1x32xf32>
    %745 = vector.extract_strided_slice %511 {offsets = [4, 0], sizes = [1, 32], strides = [1, 1]} : vector<9x32xf32> to vector<1x32xf32>
    %746 = arith.addf %744, %745 : vector<1x32xf32>
    %c13 = arith.constant 13 : index
    %c0_303 = arith.constant 0 : index
    %747 = vector.load %arg16[%c13, %c0_303] : memref<18x32xf32, #tpu.memory_space<vmem>>, vector<1x32xf32>
    tpu.vector_store %arg16[%c13, %c0_303], %746 {strides = array<i32>} : memref<18x32xf32, #tpu.memory_space<vmem>>, vector<1x32xf32>,
    %c1_304 = arith.constant 1 : index
    %c4_305 = arith.constant 4 : index
    %748 = memref.load %arg1[%c1_304, %c4_305] : memref<2x8xi32, #tpu.memory_space<smem>>
    %c2_i32_306 = arith.constant 2 : i32
    %749 = arith.cmpi slt, %748, %c2_i32_306 : i32
    %750 = arith.extui %749 : i1 to i32
    %751 = arith.sitofp %750 : i32 to f32
    %c2_i32_307 = arith.constant 2 : i32
    %752 = arith.cmpi slt, %748, %c2_i32_307 : i32
    %c1_i32_308 = arith.constant 1 : i32
    %753 = arith.addi %748, %c1_i32_308 : i32
    %c0_i32_309 = arith.constant 0 : i32
    %754 = arith.select %752, %753, %c0_i32_309 : i32
    %c3_i32_310 = arith.constant 3 : i32
    %755 = arith.addi %c3_i32_310, %754 : i32
    %756 = arith.index_cast %755 : i32 to index
    %c0_311 = arith.constant 0 : index
    %757 = vector.load %arg15[%756, %c0_311] : memref<6x32xf32, #tpu.memory_space<vmem>>, vector<1x32xf32>
    %758 = vector.broadcast %751 : f32 to vector<1x32xf32>
    %759 = arith.mulf %757, %758 : vector<1x32xf32>
    %cst_312 = arith.constant 1.000000e+00 : f32
    %760 = arith.subf %cst_312, %751 : f32
    %761 = vector.broadcast %760 : f32 to vector<1x32xf32>
    %762 = arith.mulf %2, %761 : vector<1x32xf32>
    %763 = arith.addf %759, %762 : vector<1x32xf32>
    %764 = vector.extract_strided_slice %511 {offsets = [5, 0], sizes = [1, 32], strides = [1, 1]} : vector<9x32xf32> to vector<1x32xf32>
    %765 = arith.addf %763, %764 : vector<1x32xf32>
    %c14 = arith.constant 14 : index
    %c0_313 = arith.constant 0 : index
    %766 = vector.load %arg16[%c14, %c0_313] : memref<18x32xf32, #tpu.memory_space<vmem>>, vector<1x32xf32>
    tpu.vector_store %arg16[%c14, %c0_313], %765 {strides = array<i32>} : memref<18x32xf32, #tpu.memory_space<vmem>>, vector<1x32xf32>,
    %c1_314 = arith.constant 1 : index
    %c5_315 = arith.constant 5 : index
    %767 = memref.load %arg1[%c1_314, %c5_315] : memref<2x8xi32, #tpu.memory_space<smem>>
    %c2_i32_316 = arith.constant 2 : i32
    %768 = arith.cmpi slt, %767, %c2_i32_316 : i32
    %769 = arith.extui %768 : i1 to i32
    %770 = arith.sitofp %769 : i32 to f32
    %c2_i32_317 = arith.constant 2 : i32
    %771 = arith.cmpi slt, %767, %c2_i32_317 : i32
    %c1_i32_318 = arith.constant 1 : i32
    %772 = arith.addi %767, %c1_i32_318 : i32
    %c0_i32_319 = arith.constant 0 : i32
    %773 = arith.select %771, %772, %c0_i32_319 : i32
    %c3_i32_320 = arith.constant 3 : i32
    %774 = arith.addi %c3_i32_320, %773 : i32
    %775 = arith.index_cast %774 : i32 to index
    %c0_321 = arith.constant 0 : index
    %776 = vector.load %arg15[%775, %c0_321] : memref<6x32xf32, #tpu.memory_space<vmem>>, vector<1x32xf32>
    %777 = vector.broadcast %770 : f32 to vector<1x32xf32>
    %778 = arith.mulf %776, %777 : vector<1x32xf32>
    %cst_322 = arith.constant 1.000000e+00 : f32
    %779 = arith.subf %cst_322, %770 : f32
    %780 = vector.broadcast %779 : f32 to vector<1x32xf32>
    %781 = arith.mulf %2, %780 : vector<1x32xf32>
    %782 = arith.addf %778, %781 : vector<1x32xf32>
    %783 = vector.extract_strided_slice %511 {offsets = [6, 0], sizes = [1, 32], strides = [1, 1]} : vector<9x32xf32> to vector<1x32xf32>
    %784 = arith.addf %782, %783 : vector<1x32xf32>
    %c15 = arith.constant 15 : index
    %c0_323 = arith.constant 0 : index
    %785 = vector.load %arg16[%c15, %c0_323] : memref<18x32xf32, #tpu.memory_space<vmem>>, vector<1x32xf32>
    tpu.vector_store %arg16[%c15, %c0_323], %784 {strides = array<i32>} : memref<18x32xf32, #tpu.memory_space<vmem>>, vector<1x32xf32>,
    %c1_324 = arith.constant 1 : index
    %c6_325 = arith.constant 6 : index
    %786 = memref.load %arg1[%c1_324, %c6_325] : memref<2x8xi32, #tpu.memory_space<smem>>
    %c2_i32_326 = arith.constant 2 : i32
    %787 = arith.cmpi slt, %786, %c2_i32_326 : i32
    %788 = arith.extui %787 : i1 to i32
    %789 = arith.sitofp %788 : i32 to f32
    %c2_i32_327 = arith.constant 2 : i32
    %790 = arith.cmpi slt, %786, %c2_i32_327 : i32
    %c1_i32_328 = arith.constant 1 : i32
    %791 = arith.addi %786, %c1_i32_328 : i32
    %c0_i32_329 = arith.constant 0 : i32
    %792 = arith.select %790, %791, %c0_i32_329 : i32
    %c3_i32_330 = arith.constant 3 : i32
    %793 = arith.addi %c3_i32_330, %792 : i32
    %794 = arith.index_cast %793 : i32 to index
    %c0_331 = arith.constant 0 : index
    %795 = vector.load %arg15[%794, %c0_331] : memref<6x32xf32, #tpu.memory_space<vmem>>, vector<1x32xf32>
    %796 = vector.broadcast %789 : f32 to vector<1x32xf32>
    %797 = arith.mulf %795, %796 : vector<1x32xf32>
    %cst_332 = arith.constant 1.000000e+00 : f32
    %798 = arith.subf %cst_332, %789 : f32
    %799 = vector.broadcast %798 : f32 to vector<1x32xf32>
    %800 = arith.mulf %2, %799 : vector<1x32xf32>
    %801 = arith.addf %797, %800 : vector<1x32xf32>
    %802 = vector.extract_strided_slice %511 {offsets = [7, 0], sizes = [1, 32], strides = [1, 1]} : vector<9x32xf32> to vector<1x32xf32>
    %803 = arith.addf %801, %802 : vector<1x32xf32>
    %c16 = arith.constant 16 : index
    %c0_333 = arith.constant 0 : index
    %804 = vector.load %arg16[%c16, %c0_333] : memref<18x32xf32, #tpu.memory_space<vmem>>, vector<1x32xf32>
    tpu.vector_store %arg16[%c16, %c0_333], %803 {strides = array<i32>} : memref<18x32xf32, #tpu.memory_space<vmem>>, vector<1x32xf32>,
    %c1_334 = arith.constant 1 : index
    %c7_335 = arith.constant 7 : index
    %805 = memref.load %arg1[%c1_334, %c7_335] : memref<2x8xi32, #tpu.memory_space<smem>>
    %c2_i32_336 = arith.constant 2 : i32
    %806 = arith.cmpi slt, %805, %c2_i32_336 : i32
    %807 = arith.extui %806 : i1 to i32
    %808 = arith.sitofp %807 : i32 to f32
    %c2_i32_337 = arith.constant 2 : i32
    %809 = arith.cmpi slt, %805, %c2_i32_337 : i32
    %c1_i32_338 = arith.constant 1 : i32
    %810 = arith.addi %805, %c1_i32_338 : i32
    %c0_i32_339 = arith.constant 0 : i32
    %811 = arith.select %809, %810, %c0_i32_339 : i32
    %c3_i32_340 = arith.constant 3 : i32
    %812 = arith.addi %c3_i32_340, %811 : i32
    %813 = arith.index_cast %812 : i32 to index
    %c0_341 = arith.constant 0 : index
    %814 = vector.load %arg15[%813, %c0_341] : memref<6x32xf32, #tpu.memory_space<vmem>>, vector<1x32xf32>
    %815 = vector.broadcast %808 : f32 to vector<1x32xf32>
    %816 = arith.mulf %814, %815 : vector<1x32xf32>
    %cst_342 = arith.constant 1.000000e+00 : f32
    %817 = arith.subf %cst_342, %808 : f32
    %818 = vector.broadcast %817 : f32 to vector<1x32xf32>
    %819 = arith.mulf %2, %818 : vector<1x32xf32>
    %820 = arith.addf %816, %819 : vector<1x32xf32>
    %821 = vector.extract_strided_slice %511 {offsets = [8, 0], sizes = [1, 32], strides = [1, 1]} : vector<9x32xf32> to vector<1x32xf32>
    %822 = arith.addf %820, %821 : vector<1x32xf32>
    %c17 = arith.constant 17 : index
    %c0_343 = arith.constant 0 : index
    %823 = vector.load %arg16[%c17, %c0_343] : memref<18x32xf32, #tpu.memory_space<vmem>>, vector<1x32xf32>
    tpu.vector_store %arg16[%c17, %c0_343], %822 {strides = array<i32>} : memref<18x32xf32, #tpu.memory_space<vmem>>, vector<1x32xf32>,
    %c0_344 = arith.constant 0 : index
    %c0_345 = arith.constant 0 : index
    %824 = vector.load %arg16[%c0_344, %c0_345] : memref<18x32xf32, #tpu.memory_space<vmem>>, vector<18x32xf32>
    %c0_346 = arith.constant 0 : index
    %c0_347 = arith.constant 0 : index
    %825 = vector.load %arg6[%c0_346, %c0_347] : memref<232x128xf32, #tpu.memory_space<vmem>>, vector<1x128xf32>
    %826 = vector.extract_strided_slice %825 {offsets = [0, 0], sizes = [1, 32], strides = [1, 1]} : vector<1x128xf32> to vector<1x32xf32>
    %c1_348 = arith.constant 1 : index
    %c0_349 = arith.constant 0 : index
    %827 = vector.load %arg6[%c1_348, %c0_349] : memref<232x128xf32, #tpu.memory_space<vmem>>, vector<1x128xf32>
    %828 = vector.extract_strided_slice %827 {offsets = [0, 0], sizes = [1, 32], strides = [1, 1]} : vector<1x128xf32> to vector<1x32xf32>
    %c2_350 = arith.constant 2 : index
    %c0_351 = arith.constant 0 : index
    %829 = vector.load %arg6[%c2_350, %c0_351] : memref<232x128xf32, #tpu.memory_space<vmem>>, vector<1x128xf32>
    %830 = vector.extract_strided_slice %829 {offsets = [0, 0], sizes = [1, 96], strides = [1, 1]} : vector<1x128xf32> to vector<1x96xf32>
    %c3_352 = arith.constant 3 : index
    %c0_353 = arith.constant 0 : index
    %831 = vector.load %arg6[%c3_352, %c0_353] : memref<232x128xf32, #tpu.memory_space<vmem>>, vector<1x128xf32>
    %832 = vector.extract_strided_slice %831 {offsets = [0, 0], sizes = [1, 32], strides = [1, 1]} : vector<1x128xf32> to vector<1x32xf32>
    %c4_354 = arith.constant 4 : index
    %c0_355 = arith.constant 0 : index
    %833 = vector.load %arg6[%c4_354, %c0_355] : memref<232x128xf32, #tpu.memory_space<vmem>>, vector<1x128xf32>
    %834 = vector.extract_strided_slice %833 {offsets = [0, 0], sizes = [1, 32], strides = [1, 1]} : vector<1x128xf32> to vector<1x32xf32>
    %c5_356 = arith.constant 5 : index
    %c0_357 = arith.constant 0 : index
    %835 = vector.load %arg6[%c5_356, %c0_357] : memref<232x128xf32, #tpu.memory_space<vmem>>, vector<1x128xf32>
    %836 = vector.extract_strided_slice %835 {offsets = [0, 0], sizes = [1, 32], strides = [1, 1]} : vector<1x128xf32> to vector<1x32xf32>
    %c6_358 = arith.constant 6 : index
    %c0_359 = arith.constant 0 : index
    %837 = vector.load %arg6[%c6_358, %c0_359] : memref<232x128xf32, #tpu.memory_space<vmem>>, vector<1x128xf32>
    %c7_360 = arith.constant 7 : index
    %c0_361 = arith.constant 0 : index
    %838 = vector.load %arg6[%c7_360, %c0_361] : memref<232x128xf32, #tpu.memory_space<vmem>>, vector<1x128xf32>
    %839 = vector.extract_strided_slice %838 {offsets = [0, 0], sizes = [1, 32], strides = [1, 1]} : vector<1x128xf32> to vector<1x32xf32>
    %c8_362 = arith.constant 8 : index
    %c0_363 = arith.constant 0 : index
    %840 = vector.load %arg6[%c8_362, %c0_363] : memref<232x128xf32, #tpu.memory_space<vmem>>, vector<32x128xf32>
    %841 = vector.extract_strided_slice %840 {offsets = [0, 0], sizes = [32, 96], strides = [1, 1]} : vector<32x128xf32> to vector<32x96xf32>
    %c40_364 = arith.constant 40 : index
    %c0_365 = arith.constant 0 : index
    %842 = vector.load %arg6[%c40_364, %c0_365] : memref<232x128xf32, #tpu.memory_space<vmem>>, vector<32x128xf32>
    %843 = vector.extract_strided_slice %842 {offsets = [0, 0], sizes = [32, 32], strides = [1, 1]} : vector<32x128xf32> to vector<32x32xf32>
    %c72_366 = arith.constant 72 : index
    %c0_367 = arith.constant 0 : index
    %844 = vector.load %arg6[%c72_366, %c0_367] : memref<232x128xf32, #tpu.memory_space<vmem>>, vector<32x128xf32>
    %c104_368 = arith.constant 104 : index
    %c0_369 = arith.constant 0 : index
    %845 = vector.load %arg6[%c104_368, %c0_369] : memref<232x128xf32, #tpu.memory_space<vmem>>, vector<128x128xf32>
    %846 = vector.extract_strided_slice %845 {offsets = [0, 0], sizes = [128, 32], strides = [1, 1]} : vector<128x128xf32> to vector<128x32xf32>
    %cst_370 = arith.constant dense<0.000000e+00> : vector<18xf32>
    %847 = vector.multi_reduction <add>, %824, %cst_370 [1] : vector<18x32xf32> to vector<18xf32>
    %848 = vector.shape_cast %847 : vector<18xf32> to vector<18x1xf32>
    %cst_371 = arith.constant 3.200000e+01 : f32
    %849 = vector.broadcast %cst_371 : f32 to vector<18x1xf32>
    %850 = arith.divf %848, %849 : vector<18x1xf32>
    %851 = vector.broadcast %850 : vector<18x1xf32> to vector<18x32xf32>
    %852 = arith.subf %824, %851 : vector<18x32xf32>
    %853 = arith.mulf %852, %852 : vector<18x32xf32>
    %cst_372 = arith.constant dense<0.000000e+00> : vector<18xf32>
    %854 = vector.multi_reduction <add>, %853, %cst_372 [1] : vector<18x32xf32> to vector<18xf32>
    %855 = vector.shape_cast %854 : vector<18xf32> to vector<18x1xf32>
    %cst_373 = arith.constant 3.200000e+01 : f32
    %856 = vector.broadcast %cst_373 : f32 to vector<18x1xf32>
    %857 = arith.divf %855, %856 : vector<18x1xf32>
    %cst_374 = arith.constant 9.99999974E-6 : f32
    %858 = vector.broadcast %cst_374 : f32 to vector<18x1xf32>
    %859 = arith.addf %857, %858 : vector<18x1xf32>
    %860 = math.rsqrt %859 : vector<18x1xf32>
    %861 = vector.broadcast %860 : vector<18x1xf32> to vector<18x32xf32>
    %862 = arith.mulf %852, %861 : vector<18x32xf32>
    %863 = vector.broadcast %826 : vector<1x32xf32> to vector<18x32xf32>
    %864 = arith.mulf %862, %863 : vector<18x32xf32>
    %865 = vector.broadcast %828 : vector<1x32xf32> to vector<18x32xf32>
    %866 = arith.addf %864, %865 : vector<18x32xf32>
    %cst_375 = arith.constant dense<0.000000e+00> : vector<18x96xf32>
    %867 = tpu.matmul %866, %841, %cst_375 {dimension_numbers = #tpu.dot_dimension_numbers<[1], [0], [0], [1], [0, 0, 1, 1], [], []>} : vector<18x32xf32>, vector<32x96xf32>, vector<18x96xf32> -> vector<18x96xf32>
    %868 = vector.broadcast %830 : vector<1x96xf32> to vector<18x96xf32>
    %869 = arith.addf %867, %868 : vector<18x96xf32>
    %870 = vector.extract_strided_slice %869 {offsets = [0, 0], sizes = [9, 8], strides = [1, 1]} : vector<18x96xf32> to vector<9x8xf32>
    %871 = vector.extract_strided_slice %869 {offsets = [0, 32], sizes = [9, 8], strides = [1, 1]} : vector<18x96xf32> to vector<9x8xf32>
    %872 = vector.extract_strided_slice %869 {offsets = [0, 64], sizes = [9, 8], strides = [1, 1]} : vector<18x96xf32> to vector<9x8xf32>
    %cst_376 = arith.constant 0.353553385 : f32
    %873 = vector.broadcast %cst_376 : f32 to vector<9x8xf32>
    %874 = arith.mulf %870, %873 : vector<9x8xf32>
    %cst_377 = arith.constant dense<0.000000e+00> : vector<9x9xf32>
    %875 = tpu.matmul %874, %871, %cst_377 {dimension_numbers = #tpu.dot_dimension_numbers<[1], [1], [0], [0], [0, 0, 1, 0], [], []>} : vector<9x8xf32>, vector<9x8xf32>, vector<9x9xf32> -> vector<9x9xf32>
    %cst_378 = arith.constant dense<0xFF800000> : vector<9xf32>
    %876 = vector.multi_reduction <maximumf>, %875, %cst_378 [1] : vector<9x9xf32> to vector<9xf32>
    %877 = vector.shape_cast %876 : vector<9xf32> to vector<9x1xf32>
    %878 = vector.broadcast %877 : vector<9x1xf32> to vector<9x9xf32>
    %879 = arith.subf %875, %878 : vector<9x9xf32>
    %880 = math.exp %879 : vector<9x9xf32>
    %cst_379 = arith.constant dense<0.000000e+00> : vector<9xf32>
    %881 = vector.multi_reduction <add>, %880, %cst_379 [1] : vector<9x9xf32> to vector<9xf32>
    %882 = vector.shape_cast %881 : vector<9xf32> to vector<9x1xf32>
    %883 = tpu.reciprocal %882 {approx = true} : vector<9x1xf32> -> vector<9x1xf32>
    %884 = vector.broadcast %883 : vector<9x1xf32> to vector<9x9xf32>
    %885 = arith.mulf %880, %884 : vector<9x9xf32>
    %cst_380 = arith.constant dense<0.000000e+00> : vector<9x8xf32>
    %886 = tpu.matmul %885, %872, %cst_380 {dimension_numbers = #tpu.dot_dimension_numbers<[1], [0], [0], [1], [0, 0, 1, 1], [], []>} : vector<9x9xf32>, vector<9x8xf32>, vector<9x8xf32> -> vector<9x8xf32>
    %887 = vector.extract_strided_slice %869 {offsets = [0, 8], sizes = [9, 8], strides = [1, 1]} : vector<18x96xf32> to vector<9x8xf32>
    %888 = vector.extract_strided_slice %869 {offsets = [0, 40], sizes = [9, 8], strides = [1, 1]} : vector<18x96xf32> to vector<9x8xf32>
    %889 = vector.extract_strided_slice %869 {offsets = [0, 72], sizes = [9, 8], strides = [1, 1]} : vector<18x96xf32> to vector<9x8xf32>
    %cst_381 = arith.constant 0.353553385 : f32
    %890 = vector.broadcast %cst_381 : f32 to vector<9x8xf32>
    %891 = arith.mulf %887, %890 : vector<9x8xf32>
    %cst_382 = arith.constant dense<0.000000e+00> : vector<9x9xf32>
    %892 = tpu.matmul %891, %888, %cst_382 {dimension_numbers = #tpu.dot_dimension_numbers<[1], [1], [0], [0], [0, 0, 1, 0], [], []>} : vector<9x8xf32>, vector<9x8xf32>, vector<9x9xf32> -> vector<9x9xf32>
    %cst_383 = arith.constant dense<0xFF800000> : vector<9xf32>
    %893 = vector.multi_reduction <maximumf>, %892, %cst_383 [1] : vector<9x9xf32> to vector<9xf32>
    %894 = vector.shape_cast %893 : vector<9xf32> to vector<9x1xf32>
    %895 = vector.broadcast %894 : vector<9x1xf32> to vector<9x9xf32>
    %896 = arith.subf %892, %895 : vector<9x9xf32>
    %897 = math.exp %896 : vector<9x9xf32>
    %cst_384 = arith.constant dense<0.000000e+00> : vector<9xf32>
    %898 = vector.multi_reduction <add>, %897, %cst_384 [1] : vector<9x9xf32> to vector<9xf32>
    %899 = vector.shape_cast %898 : vector<9xf32> to vector<9x1xf32>
    %900 = tpu.reciprocal %899 {approx = true} : vector<9x1xf32> -> vector<9x1xf32>
    %901 = vector.broadcast %900 : vector<9x1xf32> to vector<9x9xf32>
    %902 = arith.mulf %897, %901 : vector<9x9xf32>
    %cst_385 = arith.constant dense<0.000000e+00> : vector<9x8xf32>
    %903 = tpu.matmul %902, %889, %cst_385 {dimension_numbers = #tpu.dot_dimension_numbers<[1], [0], [0], [1], [0, 0, 1, 1], [], []>} : vector<9x9xf32>, vector<9x8xf32>, vector<9x8xf32> -> vector<9x8xf32>
    %904 = vector.extract_strided_slice %869 {offsets = [0, 16], sizes = [9, 8], strides = [1, 1]} : vector<18x96xf32> to vector<9x8xf32>
    %905 = vector.extract_strided_slice %869 {offsets = [0, 48], sizes = [9, 8], strides = [1, 1]} : vector<18x96xf32> to vector<9x8xf32>
    %906 = vector.extract_strided_slice %869 {offsets = [0, 80], sizes = [9, 8], strides = [1, 1]} : vector<18x96xf32> to vector<9x8xf32>
    %cst_386 = arith.constant 0.353553385 : f32
    %907 = vector.broadcast %cst_386 : f32 to vector<9x8xf32>
    %908 = arith.mulf %904, %907 : vector<9x8xf32>
    %cst_387 = arith.constant dense<0.000000e+00> : vector<9x9xf32>
    %909 = tpu.matmul %908, %905, %cst_387 {dimension_numbers = #tpu.dot_dimension_numbers<[1], [1], [0], [0], [0, 0, 1, 0], [], []>} : vector<9x8xf32>, vector<9x8xf32>, vector<9x9xf32> -> vector<9x9xf32>
    %cst_388 = arith.constant dense<0xFF800000> : vector<9xf32>
    %910 = vector.multi_reduction <maximumf>, %909, %cst_388 [1] : vector<9x9xf32> to vector<9xf32>
    %911 = vector.shape_cast %910 : vector<9xf32> to vector<9x1xf32>
    %912 = vector.broadcast %911 : vector<9x1xf32> to vector<9x9xf32>
    %913 = arith.subf %909, %912 : vector<9x9xf32>
    %914 = math.exp %913 : vector<9x9xf32>
    %cst_389 = arith.constant dense<0.000000e+00> : vector<9xf32>
    %915 = vector.multi_reduction <add>, %914, %cst_389 [1] : vector<9x9xf32> to vector<9xf32>
    %916 = vector.shape_cast %915 : vector<9xf32> to vector<9x1xf32>
    %917 = tpu.reciprocal %916 {approx = true} : vector<9x1xf32> -> vector<9x1xf32>
    %918 = vector.broadcast %917 : vector<9x1xf32> to vector<9x9xf32>
    %919 = arith.mulf %914, %918 : vector<9x9xf32>
    %cst_390 = arith.constant dense<0.000000e+00> : vector<9x8xf32>
    %920 = tpu.matmul %919, %906, %cst_390 {dimension_numbers = #tpu.dot_dimension_numbers<[1], [0], [0], [1], [0, 0, 1, 1], [], []>} : vector<9x9xf32>, vector<9x8xf32>, vector<9x8xf32> -> vector<9x8xf32>
    %921 = vector.extract_strided_slice %869 {offsets = [0, 24], sizes = [9, 8], strides = [1, 1]} : vector<18x96xf32> to vector<9x8xf32>
    %922 = vector.extract_strided_slice %869 {offsets = [0, 56], sizes = [9, 8], strides = [1, 1]} : vector<18x96xf32> to vector<9x8xf32>
    %923 = vector.extract_strided_slice %869 {offsets = [0, 88], sizes = [9, 8], strides = [1, 1]} : vector<18x96xf32> to vector<9x8xf32>
    %cst_391 = arith.constant 0.353553385 : f32
    %924 = vector.broadcast %cst_391 : f32 to vector<9x8xf32>
    %925 = arith.mulf %921, %924 : vector<9x8xf32>
    %cst_392 = arith.constant dense<0.000000e+00> : vector<9x9xf32>
    %926 = tpu.matmul %925, %922, %cst_392 {dimension_numbers = #tpu.dot_dimension_numbers<[1], [1], [0], [0], [0, 0, 1, 0], [], []>} : vector<9x8xf32>, vector<9x8xf32>, vector<9x9xf32> -> vector<9x9xf32>
    %cst_393 = arith.constant dense<0xFF800000> : vector<9xf32>
    %927 = vector.multi_reduction <maximumf>, %926, %cst_393 [1] : vector<9x9xf32> to vector<9xf32>
    %928 = vector.shape_cast %927 : vector<9xf32> to vector<9x1xf32>
    %929 = vector.broadcast %928 : vector<9x1xf32> to vector<9x9xf32>
    %930 = arith.subf %926, %929 : vector<9x9xf32>
    %931 = math.exp %930 : vector<9x9xf32>
    %cst_394 = arith.constant dense<0.000000e+00> : vector<9xf32>
    %932 = vector.multi_reduction <add>, %931, %cst_394 [1] : vector<9x9xf32> to vector<9xf32>
    %933 = vector.shape_cast %932 : vector<9xf32> to vector<9x1xf32>
    %934 = tpu.reciprocal %933 {approx = true} : vector<9x1xf32> -> vector<9x1xf32>
    %935 = vector.broadcast %934 : vector<9x1xf32> to vector<9x9xf32>
    %936 = arith.mulf %931, %935 : vector<9x9xf32>
    %cst_395 = arith.constant dense<0.000000e+00> : vector<9x8xf32>
    %937 = tpu.matmul %936, %923, %cst_395 {dimension_numbers = #tpu.dot_dimension_numbers<[1], [0], [0], [1], [0, 0, 1, 1], [], []>} : vector<9x9xf32>, vector<9x8xf32>, vector<9x8xf32> -> vector<9x8xf32>
    %938 = tpu.concatenate %886, %903, %920, %937 in 1 : vector<9x8xf32>, vector<9x8xf32>, vector<9x8xf32>, vector<9x8xf32> -> vector<9x32xf32>
    %939 = vector.extract_strided_slice %869 {offsets = [9, 0], sizes = [9, 8], strides = [1, 1]} : vector<18x96xf32> to vector<9x8xf32>
    %940 = vector.extract_strided_slice %869 {offsets = [9, 32], sizes = [9, 8], strides = [1, 1]} : vector<18x96xf32> to vector<9x8xf32>
    %941 = vector.extract_strided_slice %869 {offsets = [9, 64], sizes = [9, 8], strides = [1, 1]} : vector<18x96xf32> to vector<9x8xf32>
    %cst_396 = arith.constant 0.353553385 : f32
    %942 = vector.broadcast %cst_396 : f32 to vector<9x8xf32>
    %943 = arith.mulf %939, %942 : vector<9x8xf32>
    %cst_397 = arith.constant dense<0.000000e+00> : vector<9x9xf32>
    %944 = tpu.matmul %943, %940, %cst_397 {dimension_numbers = #tpu.dot_dimension_numbers<[1], [1], [0], [0], [0, 0, 1, 0], [], []>} : vector<9x8xf32>, vector<9x8xf32>, vector<9x9xf32> -> vector<9x9xf32>
    %cst_398 = arith.constant dense<0xFF800000> : vector<9xf32>
    %945 = vector.multi_reduction <maximumf>, %944, %cst_398 [1] : vector<9x9xf32> to vector<9xf32>
    %946 = vector.shape_cast %945 : vector<9xf32> to vector<9x1xf32>
    %947 = vector.broadcast %946 : vector<9x1xf32> to vector<9x9xf32>
    %948 = arith.subf %944, %947 : vector<9x9xf32>
    %949 = math.exp %948 : vector<9x9xf32>
    %cst_399 = arith.constant dense<0.000000e+00> : vector<9xf32>
    %950 = vector.multi_reduction <add>, %949, %cst_399 [1] : vector<9x9xf32> to vector<9xf32>
    %951 = vector.shape_cast %950 : vector<9xf32> to vector<9x1xf32>
    %952 = tpu.reciprocal %951 {approx = true} : vector<9x1xf32> -> vector<9x1xf32>
    %953 = vector.broadcast %952 : vector<9x1xf32> to vector<9x9xf32>
    %954 = arith.mulf %949, %953 : vector<9x9xf32>
    %cst_400 = arith.constant dense<0.000000e+00> : vector<9x8xf32>
    %955 = tpu.matmul %954, %941, %cst_400 {dimension_numbers = #tpu.dot_dimension_numbers<[1], [0], [0], [1], [0, 0, 1, 1], [], []>} : vector<9x9xf32>, vector<9x8xf32>, vector<9x8xf32> -> vector<9x8xf32>
    %956 = vector.extract_strided_slice %869 {offsets = [9, 8], sizes = [9, 8], strides = [1, 1]} : vector<18x96xf32> to vector<9x8xf32>
    %957 = vector.extract_strided_slice %869 {offsets = [9, 40], sizes = [9, 8], strides = [1, 1]} : vector<18x96xf32> to vector<9x8xf32>
    %958 = vector.extract_strided_slice %869 {offsets = [9, 72], sizes = [9, 8], strides = [1, 1]} : vector<18x96xf32> to vector<9x8xf32>
    %cst_401 = arith.constant 0.353553385 : f32
    %959 = vector.broadcast %cst_401 : f32 to vector<9x8xf32>
    %960 = arith.mulf %956, %959 : vector<9x8xf32>
    %cst_402 = arith.constant dense<0.000000e+00> : vector<9x9xf32>
    %961 = tpu.matmul %960, %957, %cst_402 {dimension_numbers = #tpu.dot_dimension_numbers<[1], [1], [0], [0], [0, 0, 1, 0], [], []>} : vector<9x8xf32>, vector<9x8xf32>, vector<9x9xf32> -> vector<9x9xf32>
    %cst_403 = arith.constant dense<0xFF800000> : vector<9xf32>
    %962 = vector.multi_reduction <maximumf>, %961, %cst_403 [1] : vector<9x9xf32> to vector<9xf32>
    %963 = vector.shape_cast %962 : vector<9xf32> to vector<9x1xf32>
    %964 = vector.broadcast %963 : vector<9x1xf32> to vector<9x9xf32>
    %965 = arith.subf %961, %964 : vector<9x9xf32>
    %966 = math.exp %965 : vector<9x9xf32>
    %cst_404 = arith.constant dense<0.000000e+00> : vector<9xf32>
    %967 = vector.multi_reduction <add>, %966, %cst_404 [1] : vector<9x9xf32> to vector<9xf32>
    %968 = vector.shape_cast %967 : vector<9xf32> to vector<9x1xf32>
    %969 = tpu.reciprocal %968 {approx = true} : vector<9x1xf32> -> vector<9x1xf32>
    %970 = vector.broadcast %969 : vector<9x1xf32> to vector<9x9xf32>
    %971 = arith.mulf %966, %970 : vector<9x9xf32>
    %cst_405 = arith.constant dense<0.000000e+00> : vector<9x8xf32>
    %972 = tpu.matmul %971, %958, %cst_405 {dimension_numbers = #tpu.dot_dimension_numbers<[1], [0], [0], [1], [0, 0, 1, 1], [], []>} : vector<9x9xf32>, vector<9x8xf32>, vector<9x8xf32> -> vector<9x8xf32>
    %973 = vector.extract_strided_slice %869 {offsets = [9, 16], sizes = [9, 8], strides = [1, 1]} : vector<18x96xf32> to vector<9x8xf32>
    %974 = vector.extract_strided_slice %869 {offsets = [9, 48], sizes = [9, 8], strides = [1, 1]} : vector<18x96xf32> to vector<9x8xf32>
    %975 = vector.extract_strided_slice %869 {offsets = [9, 80], sizes = [9, 8], strides = [1, 1]} : vector<18x96xf32> to vector<9x8xf32>
    %cst_406 = arith.constant 0.353553385 : f32
    %976 = vector.broadcast %cst_406 : f32 to vector<9x8xf32>
    %977 = arith.mulf %973, %976 : vector<9x8xf32>
    %cst_407 = arith.constant dense<0.000000e+00> : vector<9x9xf32>
    %978 = tpu.matmul %977, %974, %cst_407 {dimension_numbers = #tpu.dot_dimension_numbers<[1], [1], [0], [0], [0, 0, 1, 0], [], []>} : vector<9x8xf32>, vector<9x8xf32>, vector<9x9xf32> -> vector<9x9xf32>
    %cst_408 = arith.constant dense<0xFF800000> : vector<9xf32>
    %979 = vector.multi_reduction <maximumf>, %978, %cst_408 [1] : vector<9x9xf32> to vector<9xf32>
    %980 = vector.shape_cast %979 : vector<9xf32> to vector<9x1xf32>
    %981 = vector.broadcast %980 : vector<9x1xf32> to vector<9x9xf32>
    %982 = arith.subf %978, %981 : vector<9x9xf32>
    %983 = math.exp %982 : vector<9x9xf32>
    %cst_409 = arith.constant dense<0.000000e+00> : vector<9xf32>
    %984 = vector.multi_reduction <add>, %983, %cst_409 [1] : vector<9x9xf32> to vector<9xf32>
    %985 = vector.shape_cast %984 : vector<9xf32> to vector<9x1xf32>
    %986 = tpu.reciprocal %985 {approx = true} : vector<9x1xf32> -> vector<9x1xf32>
    %987 = vector.broadcast %986 : vector<9x1xf32> to vector<9x9xf32>
    %988 = arith.mulf %983, %987 : vector<9x9xf32>
    %cst_410 = arith.constant dense<0.000000e+00> : vector<9x8xf32>
    %989 = tpu.matmul %988, %975, %cst_410 {dimension_numbers = #tpu.dot_dimension_numbers<[1], [0], [0], [1], [0, 0, 1, 1], [], []>} : vector<9x9xf32>, vector<9x8xf32>, vector<9x8xf32> -> vector<9x8xf32>
    %990 = vector.extract_strided_slice %869 {offsets = [9, 24], sizes = [9, 8], strides = [1, 1]} : vector<18x96xf32> to vector<9x8xf32>
    %991 = vector.extract_strided_slice %869 {offsets = [9, 56], sizes = [9, 8], strides = [1, 1]} : vector<18x96xf32> to vector<9x8xf32>
    %992 = vector.extract_strided_slice %869 {offsets = [9, 88], sizes = [9, 8], strides = [1, 1]} : vector<18x96xf32> to vector<9x8xf32>
    %cst_411 = arith.constant 0.353553385 : f32
    %993 = vector.broadcast %cst_411 : f32 to vector<9x8xf32>
    %994 = arith.mulf %990, %993 : vector<9x8xf32>
    %cst_412 = arith.constant dense<0.000000e+00> : vector<9x9xf32>
    %995 = tpu.matmul %994, %991, %cst_412 {dimension_numbers = #tpu.dot_dimension_numbers<[1], [1], [0], [0], [0, 0, 1, 0], [], []>} : vector<9x8xf32>, vector<9x8xf32>, vector<9x9xf32> -> vector<9x9xf32>
    %cst_413 = arith.constant dense<0xFF800000> : vector<9xf32>
    %996 = vector.multi_reduction <maximumf>, %995, %cst_413 [1] : vector<9x9xf32> to vector<9xf32>
    %997 = vector.shape_cast %996 : vector<9xf32> to vector<9x1xf32>
    %998 = vector.broadcast %997 : vector<9x1xf32> to vector<9x9xf32>
    %999 = arith.subf %995, %998 : vector<9x9xf32>
    %1000 = math.exp %999 : vector<9x9xf32>
    %cst_414 = arith.constant dense<0.000000e+00> : vector<9xf32>
    %1001 = vector.multi_reduction <add>, %1000, %cst_414 [1] : vector<9x9xf32> to vector<9xf32>
    %1002 = vector.shape_cast %1001 : vector<9xf32> to vector<9x1xf32>
    %1003 = tpu.reciprocal %1002 {approx = true} : vector<9x1xf32> -> vector<9x1xf32>
    %1004 = vector.broadcast %1003 : vector<9x1xf32> to vector<9x9xf32>
    %1005 = arith.mulf %1000, %1004 : vector<9x9xf32>
    %cst_415 = arith.constant dense<0.000000e+00> : vector<9x8xf32>
    %1006 = tpu.matmul %1005, %992, %cst_415 {dimension_numbers = #tpu.dot_dimension_numbers<[1], [0], [0], [1], [0, 0, 1, 1], [], []>} : vector<9x9xf32>, vector<9x8xf32>, vector<9x8xf32> -> vector<9x8xf32>
    %1007 = tpu.concatenate %955, %972, %989, %1006 in 1 : vector<9x8xf32>, vector<9x8xf32>, vector<9x8xf32>, vector<9x8xf32> -> vector<9x32xf32>
    %1008 = tpu.concatenate %938, %1007 in 0 : vector<9x32xf32>, vector<9x32xf32> -> vector<18x32xf32>
    %cst_416 = arith.constant dense<0.000000e+00> : vector<18x32xf32>
    %1009 = tpu.matmul %1008, %843, %cst_416 {dimension_numbers = #tpu.dot_dimension_numbers<[1], [0], [0], [1], [0, 0, 1, 1], [], []>} : vector<18x32xf32>, vector<32x32xf32>, vector<18x32xf32> -> vector<18x32xf32>
    %1010 = arith.addf %824, %1009 : vector<18x32xf32>
    %1011 = vector.broadcast %832 : vector<1x32xf32> to vector<18x32xf32>
    %1012 = arith.addf %1010, %1011 : vector<18x32xf32>
    %cst_417 = arith.constant dense<0.000000e+00> : vector<18xf32>
    %1013 = vector.multi_reduction <add>, %1012, %cst_417 [1] : vector<18x32xf32> to vector<18xf32>
    %1014 = vector.shape_cast %1013 : vector<18xf32> to vector<18x1xf32>
    %cst_418 = arith.constant 3.200000e+01 : f32
    %1015 = vector.broadcast %cst_418 : f32 to vector<18x1xf32>
    %1016 = arith.divf %1014, %1015 : vector<18x1xf32>
    %1017 = vector.broadcast %1016 : vector<18x1xf32> to vector<18x32xf32>
    %1018 = arith.subf %1012, %1017 : vector<18x32xf32>
    %1019 = arith.mulf %1018, %1018 : vector<18x32xf32>
    %cst_419 = arith.constant dense<0.000000e+00> : vector<18xf32>
    %1020 = vector.multi_reduction <add>, %1019, %cst_419 [1] : vector<18x32xf32> to vector<18xf32>
    %1021 = vector.shape_cast %1020 : vector<18xf32> to vector<18x1xf32>
    %cst_420 = arith.constant 3.200000e+01 : f32
    %1022 = vector.broadcast %cst_420 : f32 to vector<18x1xf32>
    %1023 = arith.divf %1021, %1022 : vector<18x1xf32>
    %cst_421 = arith.constant 9.99999974E-6 : f32
    %1024 = vector.broadcast %cst_421 : f32 to vector<18x1xf32>
    %1025 = arith.addf %1023, %1024 : vector<18x1xf32>
    %1026 = math.rsqrt %1025 : vector<18x1xf32>
    %1027 = vector.broadcast %1026 : vector<18x1xf32> to vector<18x32xf32>
    %1028 = arith.mulf %1018, %1027 : vector<18x32xf32>
    %1029 = vector.broadcast %834 : vector<1x32xf32> to vector<18x32xf32>
    %1030 = arith.mulf %1028, %1029 : vector<18x32xf32>
    %1031 = vector.broadcast %836 : vector<1x32xf32> to vector<18x32xf32>
    %1032 = arith.addf %1030, %1031 : vector<18x32xf32>
    %cst_422 = arith.constant dense<0.000000e+00> : vector<18x128xf32>
    %1033 = tpu.matmul %1032, %844, %cst_422 {dimension_numbers = #tpu.dot_dimension_numbers<[1], [0], [0], [1], [0, 0, 1, 1], [], []>} : vector<18x32xf32>, vector<32x128xf32>, vector<18x128xf32> -> vector<18x128xf32>
    %1034 = vector.broadcast %837 : vector<1x128xf32> to vector<18x128xf32>
    %1035 = arith.addf %1033, %1034 : vector<18x128xf32>
    %cst_423 = arith.constant 5.000000e-01 : f32
    %1036 = vector.broadcast %cst_423 : f32 to vector<18x128xf32>
    %1037 = arith.mulf %1036, %1035 : vector<18x128xf32>
    %cst_424 = arith.constant 4.471500e-02 : f32
    %1038 = vector.broadcast %cst_424 : f32 to vector<18x128xf32>
    %1039 = arith.mulf %1038, %1035 : vector<18x128xf32>
    %1040 = arith.mulf %1039, %1035 : vector<18x128xf32>
    %1041 = arith.mulf %1040, %1035 : vector<18x128xf32>
    %1042 = arith.addf %1035, %1041 : vector<18x128xf32>
    %cst_425 = arith.constant 0.797884583 : f32
    %1043 = vector.broadcast %cst_425 : f32 to vector<18x128xf32>
    %1044 = arith.mulf %1043, %1042 : vector<18x128xf32>
    %1045 = math.tanh %1044 : vector<18x128xf32>
    %cst_426 = arith.constant 1.000000e+00 : f32
    %1046 = vector.broadcast %cst_426 : f32 to vector<18x128xf32>
    %1047 = arith.addf %1046, %1045 : vector<18x128xf32>
    %1048 = arith.mulf %1037, %1047 : vector<18x128xf32>
    %cst_427 = arith.constant dense<0.000000e+00> : vector<18x32xf32>
    %1049 = tpu.matmul %1048, %846, %cst_427 {dimension_numbers = #tpu.dot_dimension_numbers<[1], [0], [0], [1], [0, 0, 1, 1], [], []>} : vector<18x128xf32>, vector<128x32xf32>, vector<18x32xf32> -> vector<18x32xf32>
    %1050 = arith.addf %1012, %1049 : vector<18x32xf32>
    %1051 = vector.broadcast %839 : vector<1x32xf32> to vector<18x32xf32>
    %1052 = arith.addf %1050, %1051 : vector<18x32xf32>
    %1053 = vector.extract_strided_slice %0 {offsets = [5, 0], sizes = [1, 32], strides = [1, 1]} : vector<8x128xf32> to vector<1x32xf32>
    %1054 = vector.extract_strided_slice %0 {offsets = [6, 0], sizes = [1, 32], strides = [1, 1]} : vector<8x128xf32> to vector<1x32xf32>
    %cst_428 = arith.constant dense<0.000000e+00> : vector<18xf32>
    %1055 = vector.multi_reduction <add>, %1052, %cst_428 [1] : vector<18x32xf32> to vector<18xf32>
    %1056 = vector.shape_cast %1055 : vector<18xf32> to vector<18x1xf32>
    %cst_429 = arith.constant 3.200000e+01 : f32
    %1057 = vector.broadcast %cst_429 : f32 to vector<18x1xf32>
    %1058 = arith.divf %1056, %1057 : vector<18x1xf32>
    %1059 = vector.broadcast %1058 : vector<18x1xf32> to vector<18x32xf32>
    %1060 = arith.subf %1052, %1059 : vector<18x32xf32>
    %1061 = arith.mulf %1060, %1060 : vector<18x32xf32>
    %cst_430 = arith.constant dense<0.000000e+00> : vector<18xf32>
    %1062 = vector.multi_reduction <add>, %1061, %cst_430 [1] : vector<18x32xf32> to vector<18xf32>
    %1063 = vector.shape_cast %1062 : vector<18xf32> to vector<18x1xf32>
    %cst_431 = arith.constant 3.200000e+01 : f32
    %1064 = vector.broadcast %cst_431 : f32 to vector<18x1xf32>
    %1065 = arith.divf %1063, %1064 : vector<18x1xf32>
    %cst_432 = arith.constant 9.99999974E-6 : f32
    %1066 = vector.broadcast %cst_432 : f32 to vector<18x1xf32>
    %1067 = arith.addf %1065, %1066 : vector<18x1xf32>
    %1068 = math.rsqrt %1067 : vector<18x1xf32>
    %1069 = vector.broadcast %1068 : vector<18x1xf32> to vector<18x32xf32>
    %1070 = arith.mulf %1060, %1069 : vector<18x32xf32>
    %1071 = vector.broadcast %1053 : vector<1x32xf32> to vector<18x32xf32>
    %1072 = arith.mulf %1070, %1071 : vector<18x32xf32>
    %1073 = vector.broadcast %1054 : vector<1x32xf32> to vector<18x32xf32>
    %1074 = arith.addf %1072, %1073 : vector<18x32xf32>
    %c0_433 = arith.constant 0 : index
    %c0_434 = arith.constant 0 : index
    %1075 = vector.load %arg10[%c0_433, %c0_434] : memref<32x64xf32, #tpu.memory_space<vmem>>, vector<32x64xf32>
    %cst_435 = arith.constant dense<0.000000e+00> : vector<18x64xf32>
    %1076 = tpu.matmul %1074, %1075, %cst_435 {dimension_numbers = #tpu.dot_dimension_numbers<[1], [0], [0], [1], [0, 0, 1, 1], [], []>} : vector<18x32xf32>, vector<32x64xf32>, vector<18x64xf32> -> vector<18x64xf32>
    %1077 = vector.extract_strided_slice %0 {offsets = [7, 0], sizes = [1, 64], strides = [1, 1]} : vector<8x128xf32> to vector<1x64xf32>
    %1078 = vector.broadcast %1077 : vector<1x64xf32> to vector<18x64xf32>
    %1079 = arith.addf %1076, %1078 : vector<18x64xf32>
    %1080 = vector.extract_strided_slice %1079 {offsets = [1, 0], sizes = [8, 64], strides = [1, 1]} : vector<18x64xf32> to vector<8x64xf32>
    %1081 = vector.extract_strided_slice %1079 {offsets = [10, 0], sizes = [8, 64], strides = [1, 1]} : vector<18x64xf32> to vector<8x64xf32>
    %1082 = tpu.concatenate %1080, %1081 in 0 : vector<8x64xf32>, vector<8x64xf32> -> vector<16x64xf32>
    %c0_436 = arith.constant 0 : index
    %c0_437 = arith.constant 0 : index
    %1083 = vector.load %arg12[%c0_436, %c0_437] : memref<16x64xf32, #tpu.memory_space<vmem>>, vector<16x64xf32>
    tpu.vector_store %arg12[%c0_436, %c0_437], %1082 {strides = array<i32>} : memref<16x64xf32, #tpu.memory_space<vmem>>, vector<16x64xf32>,
    %1084 = arith.subf %1082, %3 : vector<16x64xf32>
    %1085 = arith.mulf %1084, %1084 : vector<16x64xf32>
    %cst_438 = arith.constant dense<0.000000e+00> : vector<16xf32>
    %1086 = vector.multi_reduction <add>, %1085, %cst_438 [1] : vector<16x64xf32> to vector<16xf32>
    %1087 = vector.shape_cast %1086 : vector<16xf32> to vector<16x1xf32>
    %cst_439 = arith.constant 6.400000e+01 : f32
    %1088 = vector.broadcast %cst_439 : f32 to vector<16x1xf32>
    %1089 = arith.divf %1087, %1088 : vector<16x1xf32>
    %c0_440 = arith.constant 0 : index
    %c0_441 = arith.constant 0 : index
    %1090 = vector.load %arg11[%c0_440, %c0_441] : memref<16x1xf32, #tpu.memory_space<vmem>>, vector<16x1xf32>
    %1091 = arith.mulf %1089, %1090 : vector<16x1xf32>
    %cst_442 = arith.constant dense<0.000000e+00> : vector<1xf32>
    %1092 = vector.multi_reduction <add>, %1091, %cst_442 [0] : vector<16x1xf32> to vector<1xf32>
    %1093 = vector.shape_cast %1092 : vector<1xf32> to vector<1x1xf32>
    %cst_443 = arith.constant dense<0.000000e+00> : vector<1xf32>
    %1094 = vector.multi_reduction <add>, %1090, %cst_443 [0] : vector<16x1xf32> to vector<1xf32>
    %1095 = vector.shape_cast %1094 : vector<1xf32> to vector<1x1xf32>
    %1096 = arith.divf %1093, %1095 : vector<1x1xf32>
    %c0_444 = arith.constant 0 : index
    %c0_445 = arith.constant 0 : index
    %1097 = vector.load %arg13[%c0_444, %c0_445] : memref<1x1xf32, #tpu.memory_space<vmem>>, vector<1x1xf32>
    tpu.vector_store %arg13[%c0_444, %c0_445], %1096 {strides = array<i32>} : memref<1x1xf32, #tpu.memory_space<vmem>>, vector<1x1xf32>,
    return
  }
}

</mosaic_0001>

<llo_original>
// kernel: mae_forward.2
$region0: #{mae_forward.2}
  #allocation0 [shape = 'u32[]', space=smem, size = 0x4, offset = 0x4, fixed_abs, tag = 'smem constant byte address 0x4 - core index']
  #allocation1 [shape = 'u32[72,128]{1,0:T(1,128)}', space=vmem, size = 0x9000, scoped, tag = 'internal scratch']
  %s0 = inlined_call_operand.vmem [shape: f32[64,32], index: 0, kind: input, shape index: {}]
  %s1 = inlined_call_operand.vmem [shape: f32[32,256], index: 1, kind: input, shape index: {}]
  %s2 = inlined_call_operand.vmem [shape: f32[128,16], index: 2, kind: input, shape index: {}]
  %s3 = inlined_call_operand.vmem [shape: f32[1,16], index: 3, kind: input, shape index: {}]
  %s4 = inlined_call_operand.vmem [shape: f32[1,16], index: 4, kind: input, shape index: {}]
  %s5 = inlined_call_operand.vmem [shape: f32[64,16], index: 5, kind: output, shape index: {}]
  %s6 = sld [smem:[#allocation0]]
  $region30: #{mae_forward.2} parent=0
    _
  %s8 = ssub.s32 1, %s6
  %s9 = scalar_select 0, %s8, %s6
  // Predicated region
  $region2: #{mae_forward.2} parent=0 // pred_check
    _
  $region3: #{mae_forward.2} parent=0 // pred_check_branch
    %11 = sbr.rel (0) target = $region5
  $region4: #{mae_forward.2} parent=0 // pred_region
    _
  $region5: #{mae_forward.2} parent=0 // pred_fallthru
    _
  // Predicated region
  $region6: #{mae_forward.2} parent=0 // pred_check
    _
  $region7: #{mae_forward.2} parent=0 // pred_check_branch
    %13 = sbr.rel (0) target = $region9
  $region8: #{mae_forward.2} parent=0 // pred_region
    _
  $region9: #{mae_forward.2} parent=0 // pred_fallthru
    _
  // Predicated region
  $region10: #{mae_forward.2} parent=0 // pred_check
    _
  $region11: #{mae_forward.2} parent=0 // pred_check_branch
    %15 = sbr.rel (0) target = $region13
  $region12: #{mae_forward.2} parent=0 // pred_region
    _
  $region13: #{mae_forward.2} parent=0 // pred_fallthru
    _
  // Predicated region
  $region14: #{mae_forward.2} parent=0 // pred_check
    _
  $region15: #{mae_forward.2} parent=0 // pred_check_branch
    %17 = sbr.rel (0) target = $region17
  $region16: #{mae_forward.2} parent=0 // pred_region
    _
  $region17: #{mae_forward.2} parent=0 // pred_fallthru
    _
  // Predicated region
  $region18: #{mae_forward.2} parent=0 // pred_check
    _
  $region19: #{mae_forward.2} parent=0 // pred_check_branch
    %19 = sbr.rel (0) target = $region21
  $region20: #{mae_forward.2} parent=0 // pred_region
    _
  $region21: #{mae_forward.2} parent=0 // pred_fallthru
    _
  %v20 = vld [vmem:[%s0] sm:$0xff]
  %v21 = vld [vmem:[%s0 + $0x8] sm:$0xff]
  %v22 = vld [vmem:[%s0 + $0x10] sm:$0xff]
  %v23 = vld [vmem:[%s0 + $0x18] sm:$0xff]
  %v24 = vld [vmem:[%s0 + $0x20] sm:$0xff]
  %v25 = vld [vmem:[%s0 + $0x28] sm:$0xff]
  %v26 = vld [vmem:[%s0 + $0x30] sm:$0xff]
  %v27 = vld [vmem:[%s0 + $0x38] sm:$0xff]
  %v28 = vld [vmem:[%s1] sm:$0xff]
  %v29 = vld [vmem:[%s1 + $0x8] sm:$0xff]
  %v30 = vld [vmem:[%s1 + $0x10] sm:$0xff]
  %v31 = vld [vmem:[%s1 + $0x18] sm:$0xff]
  %v32 = vld [vmem:[%s1 + $0x20] sm:$0xff]
  %v33 = vld [vmem:[%s1 + $0x28] sm:$0xff]
  %v34 = vld [vmem:[%s1 + $0x30] sm:$0xff]
  %v35 = vld [vmem:[%s1 + $0x38] sm:$0xff]
  %vm36 = vcmask 261120
  %v38 = vsel %vm36, %v20, 0
  %v41 = vsel %vm36, %v21, 0
  %v44 = vsel %vm36, %v22, 0
  %v47 = vsel %vm36, %v23, 0
  %v50 = vsel %vm36, %v24, 0
  %v53 = vsel %vm36, %v25, 0
  %v56 = vsel %vm36, %v26, 0
  %v59 = vsel %vm36, %v27, 0
  %61 = vmatpush.msra.mxu0 0.0
  %62 = vmatpush.msra.mxu0 0.0
  %63 = vmatpush.msra.mxu0 0.0
  %64 = vmatpush.msra.mxu0 0.0
  %65 = vmatpush.msra.mxu0 0.0
  %66 = vmatpush.msra.mxu0 0.0
  %67 = vmatpush.msra.mxu0 0.0
  %68 = vmatpush.msra.mxu0 0.0
  %69 = vmatpush.msra.mxu0 0.0
  %70 = vmatpush.msra.mxu0 0.0
  %71 = vmatpush.msra.mxu0 0.0
  %72 = vmatpush.msra.mxu0 0.0
  %73 = vmatpush.msra.mxu0 %v34
  %74 = vmatpush.msra.mxu0 %v32
  %75 = vmatpush.msra.mxu0 %v30
  %76 = vmatpush.msra.mxu0 %v28
  %77 = vmatmul.f32.gmra.mxu0 %v38
  %v78 = vpop.f32.mrf.mxu0
  %v79 = vadd.f32 0.0, %v78
  %80 = vmatmul.f32.gmra.mxu0 %v41
  %v81 = vpop.f32.mrf.mxu0
  %v82 = vadd.f32 0.0, %v81
  %83 = vmatmul.f32.gmra.mxu0 %v44
  %v84 = vpop.f32.mrf.mxu0
  %v85 = vadd.f32 0.0, %v84
  %86 = vmatmul.f32.gmra.mxu0 %v47
  %v87 = vpop.f32.mrf.mxu0
  %v88 = vadd.f32 0.0, %v87
  %89 = vmatmul.f32.gmra.mxu0 %v50
  %v90 = vpop.f32.mrf.mxu0
  %v91 = vadd.f32 0.0, %v90
  %92 = vmatmul.f32.gmra.mxu0 %v53
  %v93 = vpop.f32.mrf.mxu0
  %v94 = vadd.f32 0.0, %v93
  %95 = vmatmul.f32.gmra.mxu0 %v56
  %v96 = vpop.f32.mrf.mxu0
  %v97 = vadd.f32 0.0, %v96
  %98 = vmatmul.f32.gmra.mxu0 %v59
  %v99 = vpop.f32.mrf.mxu0
  %v100 = vadd.f32 0.0, %v99
  %101 = vdwg.mxu0
  %102 = vmatpush.msra.mxu0 0.0
  %103 = vmatpush.msra.mxu0 0.0
  %104 = vmatpush.msra.mxu0 0.0
  %105 = vmatpush.msra.mxu0 0.0
  %106 = vmatpush.msra.mxu0 0.0
  %107 = vmatpush.msra.mxu0 0.0
  %108 = vmatpush.msra.mxu0 0.0
  %109 = vmatpush.msra.mxu0 0.0
  %110 = vmatpush.msra.mxu0 0.0
  %111 = vmatpush.msra.mxu0 0.0
  %112 = vmatpush.msra.mxu0 0.0
  %113 = vmatpush.msra.mxu0 0.0
  %114 = vmatpush.msra.mxu0 %v35
  %115 = vmatpush.msra.mxu0 %v33
  %116 = vmatpush.msra.mxu0 %v31
  %117 = vmatpush.msra.mxu0 %v29
  %118 = vmatmul.f32.gmra.mxu0 %v38
  %v119 = vpop.f32.mrf.mxu0
  %v120 = vadd.f32 0.0, %v119
  %121 = vmatmul.f32.gmra.mxu0 %v41
  %v122 = vpop.f32.mrf.mxu0
  %v123 = vadd.f32 0.0, %v122
  %124 = vmatmul.f32.gmra.mxu0 %v44
  %v125 = vpop.f32.mrf.mxu0
  %v126 = vadd.f32 0.0, %v125
  %127 = vmatmul.f32.gmra.mxu0 %v47
  %v128 = vpop.f32.mrf.mxu0
  %v129 = vadd.f32 0.0, %v128
  %130 = vmatmul.f32.gmra.mxu0 %v50
  %v131 = vpop.f32.mrf.mxu0
  %v132 = vadd.f32 0.0, %v131
  %133 = vmatmul.f32.gmra.mxu0 %v53
  %v134 = vpop.f32.mrf.mxu0
  %v135 = vadd.f32 0.0, %v134
  %136 = vmatmul.f32.gmra.mxu0 %v56
  %v137 = vpop.f32.mrf.mxu0
  %v138 = vadd.f32 0.0, %v137
  %139 = vmatmul.f32.gmra.mxu0 %v59
  %v140 = vpop.f32.mrf.mxu0
  %v141 = vadd.f32 0.0, %v140
  %142 = vdwg.mxu0
  %v143 = vmul.f32 %v79, %v79
  %v144 = vmul.f32 %v82, %v82
  %v145 = vmul.f32 %v85, %v85
  %v146 = vmul.f32 %v88, %v88
  %v147 = vmul.f32 %v91, %v91
  %v148 = vmul.f32 %v94, %v94
  %v149 = vmul.f32 %v97, %v97
  %v150 = vmul.f32 %v100, %v100
  %v151 = vmul.f32 %v120, %v120
  %v152 = vmul.f32 %v123, %v123
  %v153 = vmul.f32 %v126, %v126
  %v154 = vmul.f32 %v129, %v129
  %v155 = vmul.f32 %v132, %v132
  %v156 = vmul.f32 %v135, %v135
  %v157 = vmul.f32 %v138, %v138
  %v158 = vmul.f32 %v141, %v141
  %v159 = vadd.f32 %v143, %v151
  %v160 = vadd.f32 %v144, %v152
  %v161 = vadd.f32 %v145, %v153
  %v162 = vadd.f32 %v146, %v154
  %v163 = vadd.f32 %v147, %v155
  %v164 = vadd.f32 %v148, %v156
  %v165 = vadd.f32 %v149, %v157
  %v166 = vadd.f32 %v150, %v158
  %v167 = vld [vmem:[%s2] sm:$0xff]
  %v168 = vld [vmem:[%s2 + $0x8] sm:$0xff]
  %v169 = vld [vmem:[%s2 + $0x10] sm:$0xff]
  %v170 = vld [vmem:[%s2 + $0x18] sm:$0xff]
  %v171 = vld [vmem:[%s2 + $0x20] sm:$0xff]
  %v172 = vld [vmem:[%s2 + $0x28] sm:$0xff]
  %v173 = vld [vmem:[%s2 + $0x30] sm:$0xff]
  %v174 = vld [vmem:[%s2 + $0x38] sm:$0xff]
  %v175 = vld [vmem:[%s2 + $0x40] sm:$0xff]
  %v176 = vld [vmem:[%s2 + $0x48] sm:$0xff]
  %v177 = vld [vmem:[%s2 + $0x50] sm:$0xff]
  %v178 = vld [vmem:[%s2 + $0x58] sm:$0xff]
  %v179 = vld [vmem:[%s2 + $0x60] sm:$0xff]
  %v180 = vld [vmem:[%s2 + $0x68] sm:$0xff]
  %v181 = vld [vmem:[%s2 + $0x70] sm:$0xff]
  %v182 = vld [vmem:[%s2 + $0x78] sm:$0xff]
  %183 = vmatpush.msra.mxu0 %v182
  %184 = vmatpush.msra.mxu0 %v181
  %185 = vmatpush.msra.mxu0 %v180
  %186 = vmatpush.msra.mxu0 %v179
  %187 = vmatpush.msra.mxu0 %v178
  %188 = vmatpush.msra.mxu0 %v177
  %189 = vmatpush.msra.mxu0 %v176
  %190 = vmatpush.msra.mxu0 %v175
  %191 = vmatpush.msra.mxu0 %v174
  %192 = vmatpush.msra.mxu0 %v173
  %193 = vmatpush.msra.mxu0 %v172
  %194 = vmatpush.msra.mxu0 %v171
  %195 = vmatpush.msra.mxu0 %v170
  %196 = vmatpush.msra.mxu0 %v169
  %197 = vmatpush.msra.mxu0 %v168
  %198 = vmatpush.msra.mxu0 %v167
  %199 = vmatmul.f32.gmra.mxu0 %v159
  %v200 = vpop.f32.mrf.mxu0
  %v201 = vadd.f32 1e-05, %v200
  %202 = vmatmul.f32.gmra.mxu0 %v160
  %v203 = vpop.f32.mrf.mxu0
  %v204 = vadd.f32 1e-05, %v203
  %205 = vmatmul.f32.gmra.mxu0 %v161
  %v206 = vpop.f32.mrf.mxu0
  %v207 = vadd.f32 1e-05, %v206
  %208 = vmatmul.f32.gmra.mxu0 %v162
  %v209 = vpop.f32.mrf.mxu0
  %v210 = vadd.f32 1e-05, %v209
  %211 = vmatmul.f32.gmra.mxu0 %v163
  %v212 = vpop.f32.mrf.mxu0
  %v213 = vadd.f32 1e-05, %v212
  %214 = vmatmul.f32.gmra.mxu0 %v164
  %v215 = vpop.f32.mrf.mxu0
  %v216 = vadd.f32 1e-05, %v215
  %217 = vmatmul.f32.gmra.mxu0 %v165
  %v218 = vpop.f32.mrf.mxu0
  %v219 = vadd.f32 1e-05, %v218
  %220 = vmatmul.f32.gmra.mxu0 %v166
  %v221 = vpop.f32.mrf.mxu0
  %v222 = vadd.f32 1e-05, %v221
  %223 = vdwg.mxu0
  %v224 = vlog2.pop %v201
  %v225 = vmul.f32 %v224, 0.6931472
  %v226 = vlog2.pop %v204
  %v227 = vmul.f32 %v226, 0.6931472
  %v228 = vlog2.pop %v207
  %v229 = vmul.f32 %v228, 0.6931472
  %v230 = vlog2.pop %v210
  %v231 = vmul.f32 %v230, 0.6931472
  %v232 = vlog2.pop %v213
  %v233 = vmul.f32 %v232, 0.6931472
  %v234 = vlog2.pop %v216
  %v235 = vmul.f32 %v234, 0.6931472
  %v236 = vlog2.pop %v219
  %v237 = vmul.f32 %v236, 0.6931472
  %v238 = vlog2.pop %v222
  %v239 = vmul.f32 %v238, 0.6931472
  %v240 = vld [vmem:[%s3] sm:$0x1]
  %v242 = vperm.slane %v240, 0
  %v244 = vmul.f32 %v225, %v242
  %v245 = vmul.f32 %v227, %v242
  %v246 = vmul.f32 %v229, %v242
  %v247 = vmul.f32 %v231, %v242
  %v248 = vmul.f32 %v233, %v242
  %v249 = vmul.f32 %v235, %v242
  %v250 = vmul.f32 %v237, %v242
  %v251 = vmul.f32 %v239, %v242
  %v252 = vld [vmem:[%s4] sm:$0x1]
  %v254 = vperm.slane %v252, 0
  %v256 = vadd.f32 %v244, %v254
  %v257 = vadd.f32 %v245, %v254
  %v258 = vadd.f32 %v246, %v254
  %v259 = vadd.f32 %v247, %v254
  %v260 = vadd.f32 %v248, %v254
  %v261 = vadd.f32 %v249, %v254
  %v262 = vadd.f32 %v250, %v254
  %v263 = vadd.f32 %v251, %v254
  %vm264 = vcmask 130048
  %265 = vst.msk [vmem:[%s5] sm:$0xff] %vm264, %v256
  %266 = vst.msk [vmem:[%s5 + $0x8] sm:$0xff] %vm264, %v257
  %267 = vst.msk [vmem:[%s5 + $0x10] sm:$0xff] %vm264, %v258
  %268 = vst.msk [vmem:[%s5 + $0x18] sm:$0xff] %vm264, %v259
  %269 = vst.msk [vmem:[%s5 + $0x20] sm:$0xff] %vm264, %v260
  %270 = vst.msk [vmem:[%s5 + $0x28] sm:$0xff] %vm264, %v261
  %271 = vst.msk [vmem:[%s5 + $0x30] sm:$0xff] %vm264, %v262
  %272 = vst.msk [vmem:[%s5 + $0x38] sm:$0xff] %vm264, %v263
  // Predicated region
  $region22: #{mae_forward.2} parent=0 // pred_check
    _
  $region23: #{mae_forward.2} parent=0 // pred_check_branch
    %274 = sbr.rel (0) target = $region25
  $region24: #{mae_forward.2} parent=0 // pred_region
    _
  $region25: #{mae_forward.2} parent=0 // pred_fallthru
    _
  // Predicated region
  $region26: #{mae_forward.2} parent=0 // pred_check
    _
  $region27: #{mae_forward.2} parent=0 // pred_check_branch
    %276 = sbr.rel (0) target = $region29
  $region28: #{mae_forward.2} parent=0 // pred_region
    _
  $region29: #{mae_forward.2} parent=0 // pred_fallthru
    _

// kernel: mae_forward.3
$region0: #{mae_forward.3}
  #allocation0 [shape = 'u32[]', space=smem, size = 0x4, offset = 0x4, fixed_abs, tag = 'smem constant byte address 0x4 - core index']
  #allocation1 [shape = 'u32[72,128]{1,0:T(1,128)}', space=vmem, size = 0x9000, scoped, tag = 'internal scratch']
  #allocation2 [shape = 'f32[16,32]{1,0:T(8,128)}', space=vmem, size = 0x2000, scoped, tag = 'scratch operand']
  #allocation3 [shape = 'f32[6,32]{1,0:T(8,128)}', space=vmem, size = 0x1000, scoped, tag = 'scratch operand']
  #allocation4 [shape = 'f32[18,32]{1,0:T(8,128)}', space=vmem, size = 0x3000, scoped, tag = 'scratch operand']
  #allocation5 [shape = 's32[1]{0}', space=sflag, size = 0x4, scoped, tag = 'scoped memory for mae_forward.3']
  #allocation6 [shape = 'u8[1024]{0}', space=smem, size = 0x400, scoped, tag = 'prefetched SMEM operand 0']
  #allocation7 [shape = 'u8[1024]{0}', space=smem, size = 0x400, scoped, tag = 'prefetched SMEM operand 1']
  %s0 = inlined_call_operand.vmem [shape: s32[2,2], index: 0, kind: input, shape index: {}]
  %s1 = inlined_call_operand.vmem [shape: s32[2,8], index: 1, kind: input, shape index: {}]
  %s2 = inlined_call_operand.vmem [shape: f32[16,64], index: 2, kind: input, shape index: {}]
  %s3 = inlined_call_operand.vmem [shape: f32[64,32], index: 3, kind: input, shape index: {}]
  %s4 = inlined_call_operand.vmem [shape: f32[8,32], index: 4, kind: input, shape index: {}]
  %s5 = inlined_call_operand.vmem [shape: f32[464,128], index: 5, kind: input, shape index: {}]
  %s6 = inlined_call_operand.vmem [shape: f32[232,128], index: 6, kind: input, shape index: {}]
  %s7 = inlined_call_operand.vmem [shape: f32[8,128], index: 7, kind: input, shape index: {}]
  %s8 = inlined_call_operand.vmem [shape: f32[32,32], index: 8, kind: input, shape index: {}]
  %s9 = inlined_call_operand.vmem [shape: f32[9,32], index: 9, kind: input, shape index: {}]
  %s10 = inlined_call_operand.vmem [shape: f32[32,64], index: 10, kind: input, shape index: {}]
  %s11 = inlined_call_operand.vmem [shape: f32[16,1], index: 11, kind: input, shape index: {}]
  %s12 = inlined_call_operand.hbm [shape: f32[16,64], index: 12, kind: output, shape index: {0}]
  %s13 = inlined_call_operand.hbm [shape: f32[1,1], index: 13, kind: output, shape index: {1}]
  %14 = xla_tuple %s12, %s13
  %s15 = sld [smem:[#allocation0]]
  $region58: #{mae_forward.3} parent=0
    _
  %s17 = ssub.s32 1, %s15
  %s18 = scalar_select 0, %s17, %s15
  %s20 = sshll.u32 %s0, 4
  %s21 = int_to_ptr.vmem [resolvable:$true] %s20
  %23 = dma.vmem_to_smem %s21, 32, [#allocation6], [#allocation5]
  %s25 = sshll.u32 %s1, 4
  %s26 = int_to_ptr.vmem [resolvable:$true] %s25
  %28 = dma.vmem_to_smem %s26, 32, [#allocation7], [#allocation5]
  %30 = dma.done [#allocation5], 64
  %31 = sfence
  $region1: #{mae_forward.3} parent=0
    #allocation8 [shape = 'u8[8192]{0}', space=vmem, size = 0x2000, scoped, tag = 'output window, operand 0, single buffered']
    #allocation9 [shape = 's32[1]{0}', space=sflag, size = 0x4, scoped, tag = 'scoped memory for mae_forward.3']
    #allocation10 [shape = 'u8[512]{0}', space=vmem, size = 0x400, scoped, tag = 'output window, operand 1, single buffered']
    #allocation11 [shape = 's32[1]{0}', space=sflag, size = 0x4, scoped, tag = 'scoped memory for mae_forward.3']
    %32 = vsyncpa [#allocation9], 0
    %33 = vsyncpa [#allocation11], 0
    // Predicated region
    $region2: #{mae_forward.3} parent=1 // pred_check
      _
    $region3: #{mae_forward.3} parent=1 // pred_check_branch
      %35 = sbr.rel (0) target = $region5
    $region4: #{mae_forward.3} parent=1 // pred_region
      _
    $region5: #{mae_forward.3} parent=1 // pred_fallthru
      _
    // Predicated region
    $region6: #{mae_forward.3} parent=1 // pred_check
      _
    $region7: #{mae_forward.3} parent=1 // pred_check_branch
      %37 = sbr.rel (0) target = $region9
    $region8: #{mae_forward.3} parent=1 // pred_region
      _
    $region9: #{mae_forward.3} parent=1 // pred_fallthru
      _
    // Predicated region
    $region10: #{mae_forward.3} parent=1 // pred_check
      _
    $region11: #{mae_forward.3} parent=1 // pred_check_branch
      %39 = sbr.rel (0) target = $region13
    $region12: #{mae_forward.3} parent=1 // pred_region
      _
    $region13: #{mae_forward.3} parent=1 // pred_fallthru
      _
    // Predicated region
    $region14: #{mae_forward.3} parent=1 // pred_check
      _
    $region15: #{mae_forward.3} parent=1 // pred_check_branch
      %41 = sbr.rel (0) target = $region17
    $region16: #{mae_forward.3} parent=1 // pred_region
      _
    $region17: #{mae_forward.3} parent=1 // pred_fallthru
      _
    // Predicated region
    $region18: #{mae_forward.3} parent=1 // pred_check
      _
    $region19: #{mae_forward.3} parent=1 // pred_check_branch
      %43 = sbr.rel (0) target = $region21
    $region20: #{mae_forward.3} parent=1 // pred_region
      _
    $region21: #{mae_forward.3} parent=1 // pred_fallthru
      _
    // Predicated region
    $region22: #{mae_forward.3} parent=1 // pred_check
      _
    $region23: #{mae_forward.3} parent=1 // pred_check_branch
      %45 = sbr.rel (0) target = $region25
    $region24: #{mae_forward.3} parent=1 // pred_region
      _
    $region25: #{mae_forward.3} parent=1 // pred_fallthru
      _
    // Predicated region
    $region26: #{mae_forward.3} parent=1 // pred_check
      _
    $region27: #{mae_forward.3} parent=1 // pred_check_branch
      %47 = sbr.rel (0) target = $region29
    $region28: #{mae_forward.3} parent=1 // pred_region
      _
    $region29: #{mae_forward.3} parent=1 // pred_fallthru
      _
    // Predicated region
    $region30: #{mae_forward.3} parent=1 // pred_check
      _
    $region31: #{mae_forward.3} parent=1 // pred_check_branch
      %49 = sbr.rel (0) target = $region33
    $region32: #{mae_forward.3} parent=1 // pred_region
      _
    $region33: #{mae_forward.3} parent=1 // pred_fallthru
      _
    // Predicated region
    $region34: #{mae_forward.3} parent=1 // pred_check
      _
    $region35: #{mae_forward.3} parent=1 // pred_check_branch
      %51 = sbr.rel (0) target = $region37
    $region36: #{mae_forward.3} parent=1 // pred_region
      _
    $region37: #{mae_forward.3} parent=1 // pred_fallthru
      _
    // Predicated region
    $region38: #{mae_forward.3} parent=1 // pred_check
      _
    $region39: #{mae_forward.3} parent=1 // pred_check_branch
      %53 = sbr.rel (0) target = $region41
    $region40: #{mae_forward.3} parent=1 // pred_region
      _
    $region41: #{mae_forward.3} parent=1 // pred_fallthru
      _
    %v54 = vld [vmem:[%s7] sm:$0xff]
    %v55 = vld [vmem:[%s2] sm:$0xff]
    %v56 = vld [vmem:[%s2 + $0x8] sm:$0xff]
    %v57 = vld [vmem:[%s4] sm:$0xff]
    %v58 = vld [vmem:[%s3] sm:$0xff]
    %v59 = vld [vmem:[%s3 + $0x8] sm:$0xff]
    %v60 = vld [vmem:[%s3 + $0x10] sm:$0xff]
    %v61 = vld [vmem:[%s3 + $0x18] sm:$0xff]
    %v62 = vld [vmem:[%s3 + $0x20] sm:$0xff]
    %v63 = vld [vmem:[%s3 + $0x28] sm:$0xff]
    %v64 = vld [vmem:[%s3 + $0x30] sm:$0xff]
    %v65 = vld [vmem:[%s3 + $0x38] sm:$0xff]
    %vm66 = vcmask 523264
    %v68 = vsel %vm66, %v55, 0
    %v71 = vsel %vm66, %v56, 0
    %73 = vmatpush.msra.mxu0 0.0
    %74 = vmatpush.msra.mxu0 0.0
    %75 = vmatpush.msra.mxu0 0.0
    %76 = vmatpush.msra.mxu0 0.0
    %77 = vmatpush.msra.mxu0 0.0
    %78 = vmatpush.msra.mxu0 0.0
    %79 = vmatpush.msra.mxu0 0.0
    %80 = vmatpush.msra.mxu0 0.0
    %81 = vmatpush.msra.mxu0 %v65
    %82 = vmatpush.msra.mxu0 %v64
    %83 = vmatpush.msra.mxu0 %v63
    %84 = vmatpush.msra.mxu0 %v62
    %85 = vmatpush.msra.mxu0 %v61
    %86 = vmatpush.msra.mxu0 %v60
    %87 = vmatpush.msra.mxu0 %v59
    %88 = vmatpush.msra.mxu0 %v58
    %89 = vmatmul.f32.gmra.mxu0 %v68
    %v90 = vpop.f32.mrf.mxu0
    %v91 = vadd.f32 %v57, %v90
    %92 = vmatmul.f32.gmra.mxu0 %v71
    %v93 = vpop.f32.mrf.mxu0
    %v94 = vadd.f32 %v57, %v93
    %95 = vdwg.mxu0
    %vm96 = vcmask 261120
    %97 = vst.msk [vmem:[#allocation2] sm:$0xff] %vm96, %v91
    %98 = vst.msk [vmem:[#allocation2 + $0x8] sm:$0xff] %vm96, %v94
    %s99 = sld [smem:[#allocation6]]
    %s100 = scalar_lea.vmem [#allocation2], %s99
    %v101 = vld [vmem:[%s100] sm:$0x1]
    %s102 = sld [smem:[#allocation6 + $0x1]]
    %s103 = scalar_lea.vmem [#allocation2], %s102
    %v104 = vld [vmem:[%s103] sm:$0x1]
    %s105 = sld [smem:[#allocation6 + $0x80]]
    %s106 = sadd.s32 %s105, 8
    %s107 = scalar_lea.vmem [#allocation2], %s106
    %v108 = vld [vmem:[%s107] sm:$0x1]
    %s109 = sld [smem:[#allocation6 + $0x81]]
    %s110 = sadd.s32 %s109, 8
    %s111 = scalar_lea.vmem [#allocation2], %s110
    %v112 = vld [vmem:[%s111] sm:$0x1]
    %v114 = vrot.slane %v101, 7
    %v117 = vrot.slane %v104, 6
    %v120 = vrot.slane %v54, 5
    %v123 = vrot.slane %v108, 4
    %v126 = vrot.slane %v112, 3
    %vm128 = vcmask 1040384
    %v129 = vsel %vm128, %v54, %v114
    %vm130 = vcmask 1041408
    %v131 = vsel %vm130, %v129, %v117
    %vm132 = vcmask 1042432
    %v133 = vsel %vm132, %v131, %v120
    %vm134 = vcmask 1043456
    %v135 = vsel %vm134, %v133, %v123
    %vm136 = vcmask 1044480
    %v137 = vsel %vm136, %v135, %v126
    %v138 = vld [vmem:[%s5] sm:$0x1]
    %v139 = vld [vmem:[%s5 + $0x1] sm:$0x1]
    %v140 = vld [vmem:[%s5 + $0x2] sm:$0x1]
    %v141 = vld [vmem:[%s5 + $0x3] sm:$0x1]
    %v142 = vld [vmem:[%s5 + $0x4] sm:$0x1]
    %v143 = vld [vmem:[%s5 + $0x5] sm:$0x1]
    %v144 = vld [vmem:[%s5 + $0x6] sm:$0x1]
    %v145 = vld [vmem:[%s5 + $0x7] sm:$0x1]
    %v146 = vld [vmem:[%s5 + $0x8] sm:$0xff]
    %v147 = vld [vmem:[%s5 + $0x10] sm:$0xff]
    %v148 = vld [vmem:[%s5 + $0x18] sm:$0xff]
    %v149 = vld [vmem:[%s5 + $0x20] sm:$0xff]
    %v150 = vld [vmem:[%s5 + $0x28] sm:$0xff]
    %v151 = vld [vmem:[%s5 + $0x30] sm:$0xff]
    %v152 = vld [vmem:[%s5 + $0x38] sm:$0xff]
    %v153 = vld [vmem:[%s5 + $0x40] sm:$0xff]
    %v154 = vld [vmem:[%s5 + $0x48] sm:$0xff]
    %v155 = vld [vmem:[%s5 + $0x50] sm:$0xff]
    %v156 = vld [vmem:[%s5 + $0x58] sm:$0xff]
    %v157 = vld [vmem:[%s5 + $0x60] sm:$0xff]
    %v158 = vld [vmem:[%s5 + $0x68] sm:$0xff]
    %v159 = vld [vmem:[%s5 + $0x70] sm:$0xff]
    %v160 = vld [vmem:[%s5 + $0x78] sm:$0xff]
    %v161 = vld [vmem:[%s5 + $0x80] sm:$0xff]
    %v162 = vld [vmem:[%s5 + $0x88] sm:$0xff]
    %v163 = vld [vmem:[%s5 + $0x90] sm:$0xff]
    %v164 = vld [vmem:[%s5 + $0x98] sm:$0xff]
    %v165 = vld [vmem:[%s5 + $0xa0] sm:$0xff]
    %v166 = vld [vmem:[%s5 + $0xa8] sm:$0xff]
    %v167 = vld [vmem:[%s5 + $0xb0] sm:$0xff]
    %v168 = vld [vmem:[%s5 + $0xb8] sm:$0xff]
    %v169 = vld [vmem:[%s5 + $0xc0] sm:$0xff]
    %v170 = vld [vmem:[%s5 + $0xc8] sm:$0xff]
    %v171 = vld [vmem:[%s5 + $0xd0] sm:$0xff]
    %v172 = vld [vmem:[%s5 + $0xd8] sm:$0xff]
    %v173 = vld [vmem:[%s5 + $0xe0] sm:$0xff]
    %vm174 = vcmask 259072
    %v175 = vsel %vm174, %v137, 0.0
    %176 = vadd.xlane.f32.xlu0 %v175
    %v177 = vpop.xlane.xlu0 %176
    %v178 = vrcp.pop 32.0
    %v179 = vmul.f32 32.0, %v178
    %v180 = vsub.f32 1.0, %v179
    %v181 = vmul.f32 %v178, %v180
    %v182 = vadd.f32 %v178, %v181
    %vm183 = vweird.f32 %v178
    %v184 = vsel %vm183, %v178, %v182
    %v185 = vmul.f32 %v177, %v184
    %v186 = vsub.f32 %v137, %v185
    %v187 = vmul.f32 %v186, %v186
    %v188 = vsel %vm174, %v187, 0.0
    %189 = vadd.xlane.f32.xlu0 %v188
    %v190 = vpop.xlane.xlu0 %189
    %v191 = vmul.f32 %v190, %v184
    %v192 = vadd.f32 %v191, 1e-05
    %v193 = vrsqrt.pop %v192
    %v194 = vmul.f32 %v193, %v192
    %v195 = vmul.f32 %v194, %v193
    %v196 = vmul.f32 0.5, %v195
    %v197 = vsub.f32 1.5, %v196
    %v198 = vmul.f32 %v193, %v197
    %vm199 = vweird.f32 %v192
    %vm200 = vweird.f32 %v193
    %vm201 = vmor %vm199, %vm200
    %v202 = vsel %vm201, %v193, %v198
    %v203 = vmul.f32 %v186, %v202
    %v204 = vperm.slane %v138, 0
    %v205 = vmul.f32 %v203, %v204
    %v206 = vperm.slane %v139, 0
    %v207 = vadd.f32 %v205, %v206
    %v208 = vperm.slane %v140, 0
    %v210 = vsel %vm96, %v207, 0
    %212 = vmatpush.msra.mxu0 0.0
    %213 = vmatpush.msra.mxu0 0.0
    %214 = vmatpush.msra.mxu0 0.0
    %215 = vmatpush.msra.mxu0 0.0
    %216 = vmatpush.msra.mxu0 0.0
    %217 = vmatpush.msra.mxu0 0.0
    %218 = vmatpush.msra.mxu0 0.0
    %219 = vmatpush.msra.mxu0 0.0
    %220 = vmatpush.msra.mxu0 0.0
    %221 = vmatpush.msra.mxu0 0.0
    %222 = vmatpush.msra.mxu0 0.0
    %223 = vmatpush.msra.mxu0 0.0
    %224 = vmatpush.msra.mxu0 %v149
    %225 = vmatpush.msra.mxu0 %v148
    %226 = vmatpush.msra.mxu0 %v147
    %227 = vmatpush.msra.mxu0 %v146
    %228 = vmatmul.f32.gmra.mxu0 %v210
    %v229 = vpop.f32.mrf.mxu0
    %v230 = vadd.f32 %v208, %v229
    %231 = vdwg.mxu0
    %v232 = vmul.f32 %v230, 0.35355338
    %234 = vrot.lane.b32.xlu0 %v230, 96
    %v235 = vpop.permute.xlu0 %234
    %vm236 = vcmask 64512
    %v238 = vsel %vm236, %v232, 0
    %v240 = vsel %vm236, %v235, 0
    %242 = vmatpush.xpose.msra.mxu0 0.0
    %243 = vmatpush.xpose.msra.mxu0 0.0
    %244 = vmatpush.xpose.msra.mxu0 0.0
    %245 = vmatpush.xpose.msra.mxu0 0.0
    %246 = vmatpush.xpose.msra.mxu0 0.0
    %247 = vmatpush.xpose.msra.mxu0 0.0
    %248 = vmatpush.xpose.msra.mxu0 0.0
    %249 = vmatpush.xpose.msra.mxu0 0.0
    %250 = vmatpush.xpose.msra.mxu0 0.0
    %251 = vmatpush.xpose.msra.mxu0 0.0
    %252 = vmatpush.xpose.msra.mxu0 0.0
    %253 = vmatpush.xpose.msra.mxu0 0.0
    %254 = vmatpush.xpose.msra.mxu0 0.0
    %255 = vmatpush.xpose.msra.mxu0 0.0
    %256 = vmatpush.xpose.msra.mxu0 0.0
    %257 = vmatpush.xpose.msra.mxu0 %v240
    %258 = vmatmul.f32.gmra.mxu0 %v238
    %v259 = vpop.f32.mrf.mxu0
    %v260 = vadd.f32 0.0, %v259
    %261 = vdwg.mxu0
    %vm262 = vcmask 18432
    %v263 = vsel %vm262, %v260, -inf
    %264 = vmax.xlane.f32.xlu0 %v263
    %v265 = vpop.xlane.xlu0 %264
    %v266 = vsub.f32 %v260, %v265
    %v267 = vmul.f32 %v266, 1.442695
    %v268 = vpow.pop %v267
    %v269 = vsel %vm262, %v268, 0.0
    %270 = vadd.xlane.f32.xlu0 %v269
    %v271 = vpop.xlane.xlu0 %270
    %v272 = vrcp.pop %v271
    %v273 = vmul.f32 %v268, %v272
    %274 = vrot.lane.b32.xlu0 %v230, 64
    %v275 = vpop.permute.xlu0 %274
    %vm276 = vcmask 23552
    %v278 = vsel %vm276, %v273, 0
    %v280 = vsel %vm132, %v275, 0
    %282 = vmatpush.msra.mxu0 0.0
    %283 = vmatpush.msra.mxu0 0.0
    %284 = vmatpush.msra.mxu0 0.0
    %285 = vmatpush.msra.mxu0 0.0
    %286 = vmatpush.msra.mxu0 0.0
    %287 = vmatpush.msra.mxu0 0.0
    %288 = vmatpush.msra.mxu0 0.0
    %289 = vmatpush.msra.mxu0 0.0
    %290 = vmatpush.msra.mxu0 0.0
    %291 = vmatpush.msra.mxu0 0.0
    %292 = vmatpush.msra.mxu0 0.0
    %293 = vmatpush.msra.mxu0 0.0
    %294 = vmatpush.msra.mxu0 0.0
    %295 = vmatpush.msra.mxu0 0.0
    %296 = vmatpush.msra.mxu0 0.0
    %297 = vmatpush.msra.mxu0 %v280
    %298 = vmatmul.f32.gmra.mxu0 %v278
    %v299 = vpop.f32.mrf.mxu0
    %v300 = vadd.f32 0.0, %v299
    %301 = vdwg.mxu0
    %302 = vrot.lane.b32.xlu0 %v232, 120
    %v303 = vpop.permute.xlu0 %302
    %304 = vrot.lane.b32.xlu0 %v230, 88
    %v305 = vpop.permute.xlu0 %304
    %v306 = vsel %vm236, %v303, 0
    %v308 = vsel %vm236, %v305, 0
    %310 = vmatpush.xpose.msra.mxu0 0.0
    %311 = vmatpush.xpose.msra.mxu0 0.0
    %312 = vmatpush.xpose.msra.mxu0 0.0
    %313 = vmatpush.xpose.msra.mxu0 0.0
    %314 = vmatpush.xpose.msra.mxu0 0.0
    %315 = vmatpush.xpose.msra.mxu0 0.0
    %316 = vmatpush.xpose.msra.mxu0 0.0
    %317 = vmatpush.xpose.msra.mxu0 0.0
    %318 = vmatpush.xpose.msra.mxu0 0.0
    %319 = vmatpush.xpose.msra.mxu0 0.0
    %320 = vmatpush.xpose.msra.mxu0 0.0
    %321 = vmatpush.xpose.msra.mxu0 0.0
    %322 = vmatpush.xpose.msra.mxu0 0.0
    %323 = vmatpush.xpose.msra.mxu0 0.0
    %324 = vmatpush.xpose.msra.mxu0 0.0
    %325 = vmatpush.xpose.msra.mxu0 %v308
    %326 = vmatmul.f32.gmra.mxu0 %v306
    %v327 = vpop.f32.mrf.mxu0
    %v328 = vadd.f32 0.0, %v327
    %329 = vdwg.mxu0
    %v330 = vsel %vm262, %v328, -inf
    %331 = vmax.xlane.f32.xlu0 %v330
    %v332 = vpop.xlane.xlu0 %331
    %v333 = vsub.f32 %v328, %v332
    %v334 = vmul.f32 %v333, 1.442695
    %v335 = vpow.pop %v334
    %v336 = vsel %vm262, %v335, 0.0
    %337 = vadd.xlane.f32.xlu0 %v336
    %v338 = vpop.xlane.xlu0 %337
    %v339 = vrcp.pop %v338
    %v340 = vmul.f32 %v335, %v339
    %341 = vrot.lane.b32.xlu0 %v230, 56
    %v342 = vpop.permute.xlu0 %341
    %v344 = vsel %vm276, %v340, 0
    %v346 = vsel %vm132, %v342, 0
    %348 = vmatpush.msra.mxu0 0.0
    %349 = vmatpush.msra.mxu0 0.0
    %350 = vmatpush.msra.mxu0 0.0
    %351 = vmatpush.msra.mxu0 0.0
    %352 = vmatpush.msra.mxu0 0.0
    %353 = vmatpush.msra.mxu0 0.0
    %354 = vmatpush.msra.mxu0 0.0
    %355 = vmatpush.msra.mxu0 0.0
    %356 = vmatpush.msra.mxu0 0.0
    %357 = vmatpush.msra.mxu0 0.0
    %358 = vmatpush.msra.mxu0 0.0
    %359 = vmatpush.msra.mxu0 0.0
    %360 = vmatpush.msra.mxu0 0.0
    %361 = vmatpush.msra.mxu0 0.0
    %362 = vmatpush.msra.mxu0 0.0
    %363 = vmatpush.msra.mxu0 %v346
    %364 = vmatmul.f32.gmra.mxu0 %v344
    %v365 = vpop.f32.mrf.mxu0
    %v366 = vadd.f32 0.0, %v365
    %367 = vdwg.mxu0
    %368 = vrot.lane.b32.xlu0 %v232, 112
    %v369 = vpop.permute.xlu0 %368
    %370 = vrot.lane.b32.xlu0 %v230, 80
    %v371 = vpop.permute.xlu0 %370
    %v372 = vsel %vm236, %v369, 0
    %v374 = vsel %vm236, %v371, 0
    %376 = vmatpush.xpose.msra.mxu0 0.0
    %377 = vmatpush.xpose.msra.mxu0 0.0
    %378 = vmatpush.xpose.msra.mxu0 0.0
    %379 = vmatpush.xpose.msra.mxu0 0.0
    %380 = vmatpush.xpose.msra.mxu0 0.0
    %381 = vmatpush.xpose.msra.mxu0 0.0
    %382 = vmatpush.xpose.msra.mxu0 0.0
    %383 = vmatpush.xpose.msra.mxu0 0.0
    %384 = vmatpush.xpose.msra.mxu0 0.0
    %385 = vmatpush.xpose.msra.mxu0 0.0
    %386 = vmatpush.xpose.msra.mxu0 0.0
    %387 = vmatpush.xpose.msra.mxu0 0.0
    %388 = vmatpush.xpose.msra.mxu0 0.0
    %389 = vmatpush.xpose.msra.mxu0 0.0
    %390 = vmatpush.xpose.msra.mxu0 0.0
    %391 = vmatpush.xpose.msra.mxu0 %v374
    %392 = vmatmul.f32.gmra.mxu0 %v372
    %v393 = vpop.f32.mrf.mxu0
    %v394 = vadd.f32 0.0, %v393
    %395 = vdwg.mxu0
    %v396 = vsel %vm262, %v394, -inf
    %397 = vmax.xlane.f32.xlu0 %v396
    %v398 = vpop.xlane.xlu0 %397
    %v399 = vsub.f32 %v394, %v398
    %v400 = vmul.f32 %v399, 1.442695
    %v401 = vpow.pop %v400
    %v402 = vsel %vm262, %v401, 0.0
    %403 = vadd.xlane.f32.xlu0 %v402
    %v404 = vpop.xlane.xlu0 %403
    %v405 = vrcp.pop %v404
    %v406 = vmul.f32 %v401, %v405
    %407 = vrot.lane.b32.xlu0 %v230, 48
    %v408 = vpop.permute.xlu0 %407
    %v410 = vsel %vm276, %v406, 0
    %v412 = vsel %vm132, %v408, 0
    %414 = vmatpush.msra.mxu0 0.0
    %415 = vmatpush.msra.mxu0 0.0
    %416 = vmatpush.msra.mxu0 0.0
    %417 = vmatpush.msra.mxu0 0.0
    %418 = vmatpush.msra.mxu0 0.0
    %419 = vmatpush.msra.mxu0 0.0
    %420 = vmatpush.msra.mxu0 0.0
    %421 = vmatpush.msra.mxu0 0.0
    %422 = vmatpush.msra.mxu0 0.0
    %423 = vmatpush.msra.mxu0 0.0
    %424 = vmatpush.msra.mxu0 0.0
    %425 = vmatpush.msra.mxu0 0.0
    %426 = vmatpush.msra.mxu0 0.0
    %427 = vmatpush.msra.mxu0 0.0
    %428 = vmatpush.msra.mxu0 0.0
    %429 = vmatpush.msra.mxu0 %v412
    %430 = vmatmul.f32.gmra.mxu0 %v410
    %v431 = vpop.f32.mrf.mxu0
    %v432 = vadd.f32 0.0, %v431
    %433 = vdwg.mxu0
    %434 = vrot.lane.b32.xlu0 %v232, 104
    %v435 = vpop.permute.xlu0 %434
    %436 = vrot.lane.b32.xlu0 %v230, 72
    %v437 = vpop.permute.xlu0 %436
    %v438 = vsel %vm236, %v435, 0
    %v440 = vsel %vm236, %v437, 0
    %442 = vmatpush.xpose.msra.mxu0 0.0
    %443 = vmatpush.xpose.msra.mxu0 0.0
    %444 = vmatpush.xpose.msra.mxu0 0.0
    %445 = vmatpush.xpose.msra.mxu0 0.0
    %446 = vmatpush.xpose.msra.mxu0 0.0
    %447 = vmatpush.xpose.msra.mxu0 0.0
    %448 = vmatpush.xpose.msra.mxu0 0.0
    %449 = vmatpush.xpose.msra.mxu0 0.0
    %450 = vmatpush.xpose.msra.mxu0 0.0
    %451 = vmatpush.xpose.msra.mxu0 0.0
    %452 = vmatpush.xpose.msra.mxu0 0.0
    %453 = vmatpush.xpose.msra.mxu0 0.0
    %454 = vmatpush.xpose.msra.mxu0 0.0
    %455 = vmatpush.xpose.msra.mxu0 0.0
    %456 = vmatpush.xpose.msra.mxu0 0.0
    %457 = vmatpush.xpose.msra.mxu0 %v440
    %458 = vmatmul.f32.gmra.mxu0 %v438
    %v459 = vpop.f32.mrf.mxu0
    %v460 = vadd.f32 0.0, %v459
    %461 = vdwg.mxu0
    %v462 = vsel %vm262, %v460, -inf
    %463 = vmax.xlane.f32.xlu0 %v462
    %v464 = vpop.xlane.xlu0 %463
    %v465 = vsub.f32 %v460, %v464
    %v466 = vmul.f32 %v465, 1.442695
    %v467 = vpow.pop %v466
    %v468 = vsel %vm262, %v467, 0.0
    %469 = vadd.xlane.f32.xlu0 %v468
    %v470 = vpop.xlane.xlu0 %469
    %v471 = vrcp.pop %v470
    %v472 = vmul.f32 %v467, %v471
    %473 = vrot.lane.b32.xlu0 %v230, 40
    %v474 = vpop.permute.xlu0 %473
    %v476 = vsel %vm276, %v472, 0
    %v478 = vsel %vm132, %v474, 0
    %480 = vmatpush.msra.mxu0 0.0
    %481 = vmatpush.msra.mxu0 0.0
    %482 = vmatpush.msra.mxu0 0.0
    %483 = vmatpush.msra.mxu0 0.0
    %484 = vmatpush.msra.mxu0 0.0
    %485 = vmatpush.msra.mxu0 0.0
    %486 = vmatpush.msra.mxu0 0.0
    %487 = vmatpush.msra.mxu0 0.0
    %488 = vmatpush.msra.mxu0 0.0
    %489 = vmatpush.msra.mxu0 0.0
    %490 = vmatpush.msra.mxu0 0.0
    %491 = vmatpush.msra.mxu0 0.0
    %492 = vmatpush.msra.mxu0 0.0
    %493 = vmatpush.msra.mxu0 0.0
    %494 = vmatpush.msra.mxu0 0.0
    %495 = vmatpush.msra.mxu0 %v478
    %496 = vmatmul.f32.gmra.mxu0 %v476
    %v497 = vpop.f32.mrf.mxu0
    %v498 = vadd.f32 0.0, %v497
    %499 = vdwg.mxu0
    %501 = vrot.lane.b32.xlu0 %v366, 8
    %v502 = vpop.permute.xlu0 %501
    %505 = vrot.lane.b32.xlu0 %v432, 16
    %v506 = vpop.permute.xlu0 %505
    %509 = vrot.lane.b32.xlu0 %v498, 24
    %v510 = vpop.permute.xlu0 %509
    %v512 = vsel %vm236, %v300, %v502
    %vm513 = vcmask 130048
    %v514 = vsel %vm513, %v512, %v506
    %vm515 = vcmask 195584
    %v516 = vsel %vm515, %v514, %v510
    %v517 = vrot.slane %v232, 3
    %v518 = vrot.slane %v230, 3
    %519 = vrot.lane.b32.xlu0 %v518, 96
    %v520 = vpop.permute.xlu0 %519
    %v521 = vsel %vm236, %v517, 0
    %v523 = vsel %vm236, %v520, 0
    %525 = vmatpush.xpose.msra.mxu0 0.0
    %526 = vmatpush.xpose.msra.mxu0 0.0
    %527 = vmatpush.xpose.msra.mxu0 0.0
    %528 = vmatpush.xpose.msra.mxu0 0.0
    %529 = vmatpush.xpose.msra.mxu0 0.0
    %530 = vmatpush.xpose.msra.mxu0 0.0
    %531 = vmatpush.xpose.msra.mxu0 0.0
    %532 = vmatpush.xpose.msra.mxu0 0.0
    %533 = vmatpush.xpose.msra.mxu0 0.0
    %534 = vmatpush.xpose.msra.mxu0 0.0
    %535 = vmatpush.xpose.msra.mxu0 0.0
    %536 = vmatpush.xpose.msra.mxu0 0.0
    %537 = vmatpush.xpose.msra.mxu0 0.0
    %538 = vmatpush.xpose.msra.mxu0 0.0
    %539 = vmatpush.xpose.msra.mxu0 0.0
    %540 = vmatpush.xpose.msra.mxu0 %v523
    %541 = vmatmul.f32.gmra.mxu0 %v521
    %v542 = vpop.f32.mrf.mxu0
    %v543 = vadd.f32 0.0, %v542
    %544 = vdwg.mxu0
    %v545 = vsel %vm262, %v543, -inf
    %546 = vmax.xlane.f32.xlu0 %v545
    %v547 = vpop.xlane.xlu0 %546
    %v548 = vsub.f32 %v543, %v547
    %v549 = vmul.f32 %v548, 1.442695
    %v550 = vpow.pop %v549
    %v551 = vsel %vm262, %v550, 0.0
    %552 = vadd.xlane.f32.xlu0 %v551
    %v553 = vpop.xlane.xlu0 %552
    %v554 = vrcp.pop %v553
    %v555 = vmul.f32 %v550, %v554
    %556 = vrot.lane.b32.xlu0 %v518, 64
    %v557 = vpop.permute.xlu0 %556
    %v559 = vsel %vm276, %v555, 0
    %v561 = vsel %vm132, %v557, 0
    %563 = vmatpush.msra.mxu0 0.0
    %564 = vmatpush.msra.mxu0 0.0
    %565 = vmatpush.msra.mxu0 0.0
    %566 = vmatpush.msra.mxu0 0.0
    %567 = vmatpush.msra.mxu0 0.0
    %568 = vmatpush.msra.mxu0 0.0
    %569 = vmatpush.msra.mxu0 0.0
    %570 = vmatpush.msra.mxu0 0.0
    %571 = vmatpush.msra.mxu0 0.0
    %572 = vmatpush.msra.mxu0 0.0
    %573 = vmatpush.msra.mxu0 0.0
    %574 = vmatpush.msra.mxu0 0.0
    %575 = vmatpush.msra.mxu0 0.0
    %576 = vmatpush.msra.mxu0 0.0
    %577 = vmatpush.msra.mxu0 0.0
    %578 = vmatpush.msra.mxu0 %v561
    %579 = vmatmul.f32.gmra.mxu0 %v559
    %v580 = vpop.f32.mrf.mxu0
    %v581 = vadd.f32 0.0, %v580
    %582 = vdwg.mxu0
    %583 = vrot.lane.b32.xlu0 %v517, 120
    %v584 = vpop.permute.xlu0 %583
    %585 = vrot.lane.b32.xlu0 %v518, 88
    %v586 = vpop.permute.xlu0 %585
    %v587 = vsel %vm236, %v584, 0
    %v589 = vsel %vm236, %v586, 0
    %591 = vmatpush.xpose.msra.mxu0 0.0
    %592 = vmatpush.xpose.msra.mxu0 0.0
    %593 = vmatpush.xpose.msra.mxu0 0.0
    %594 = vmatpush.xpose.msra.mxu0 0.0
    %595 = vmatpush.xpose.msra.mxu0 0.0
    %596 = vmatpush.xpose.msra.mxu0 0.0
    %597 = vmatpush.xpose.msra.mxu0 0.0
    %598 = vmatpush.xpose.msra.mxu0 0.0
    %599 = vmatpush.xpose.msra.mxu0 0.0
    %600 = vmatpush.xpose.msra.mxu0 0.0
    %601 = vmatpush.xpose.msra.mxu0 0.0
    %602 = vmatpush.xpose.msra.mxu0 0.0
    %603 = vmatpush.xpose.msra.mxu0 0.0
    %604 = vmatpush.xpose.msra.mxu0 0.0
    %605 = vmatpush.xpose.msra.mxu0 0.0
    %606 = vmatpush.xpose.msra.mxu0 %v589
    %607 = vmatmul.f32.gmra.mxu0 %v587
    %v608 = vpop.f32.mrf.mxu0
    %v609 = vadd.f32 0.0, %v608
    %610 = vdwg.mxu0
    %v611 = vsel %vm262, %v609, -inf
    %612 = vmax.xlane.f32.xlu0 %v611
    %v613 = vpop.xlane.xlu0 %612
    %v614 = vsub.f32 %v609, %v613
    %v615 = vmul.f32 %v614, 1.442695
    %v616 = vpow.pop %v615
    %v617 = vsel %vm262, %v616, 0.0
    %618 = vadd.xlane.f32.xlu0 %v617
    %v619 = vpop.xlane.xlu0 %618
    %v620 = vrcp.pop %v619
    %v621 = vmul.f32 %v616, %v620
    %622 = vrot.lane.b32.xlu0 %v518, 56
    %v623 = vpop.permute.xlu0 %622
    %v625 = vsel %vm276, %v621, 0
    %v627 = vsel %vm132, %v623, 0
    %629 = vmatpush.msra.mxu0 0.0
    %630 = vmatpush.msra.mxu0 0.0
    %631 = vmatpush.msra.mxu0 0.0
    %632 = vmatpush.msra.mxu0 0.0
    %633 = vmatpush.msra.mxu0 0.0
    %634 = vmatpush.msra.mxu0 0.0
    %635 = vmatpush.msra.mxu0 0.0
    %636 = vmatpush.msra.mxu0 0.0
    %637 = vmatpush.msra.mxu0 0.0
    %638 = vmatpush.msra.mxu0 0.0
    %639 = vmatpush.msra.mxu0 0.0
    %640 = vmatpush.msra.mxu0 0.0
    %641 = vmatpush.msra.mxu0 0.0
    %642 = vmatpush.msra.mxu0 0.0
    %643 = vmatpush.msra.mxu0 0.0
    %644 = vmatpush.msra.mxu0 %v627
    %645 = vmatmul.f32.gmra.mxu0 %v625
    %v646 = vpop.f32.mrf.mxu0
    %v647 = vadd.f32 0.0, %v646
    %648 = vdwg.mxu0
    %649 = vrot.lane.b32.xlu0 %v517, 112
    %v650 = vpop.permute.xlu0 %649
    %651 = vrot.lane.b32.xlu0 %v518, 80
    %v652 = vpop.permute.xlu0 %651
    %v653 = vsel %vm236, %v650, 0
    %v655 = vsel %vm236, %v652, 0
    %657 = vmatpush.xpose.msra.mxu0 0.0
    %658 = vmatpush.xpose.msra.mxu0 0.0
    %659 = vmatpush.xpose.msra.mxu0 0.0
    %660 = vmatpush.xpose.msra.mxu0 0.0
    %661 = vmatpush.xpose.msra.mxu0 0.0
    %662 = vmatpush.xpose.msra.mxu0 0.0
    %663 = vmatpush.xpose.msra.mxu0 0.0
    %664 = vmatpush.xpose.msra.mxu0 0.0
    %665 = vmatpush.xpose.msra.mxu0 0.0
    %666 = vmatpush.xpose.msra.mxu0 0.0
    %667 = vmatpush.xpose.msra.mxu0 0.0
    %668 = vmatpush.xpose.msra.mxu0 0.0
    %669 = vmatpush.xpose.msra.mxu0 0.0
    %670 = vmatpush.xpose.msra.mxu0 0.0
    %671 = vmatpush.xpose.msra.mxu0 0.0
    %672 = vmatpush.xpose.msra.mxu0 %v655
    %673 = vmatmul.f32.gmra.mxu0 %v653
    %v674 = vpop.f32.mrf.mxu0
    %v675 = vadd.f32 0.0, %v674
    %676 = vdwg.mxu0
    %v677 = vsel %vm262, %v675, -inf
    %678 = vmax.xlane.f32.xlu0 %v677
    %v679 = vpop.xlane.xlu0 %678
    %v680 = vsub.f32 %v675, %v679
    %v681 = vmul.f32 %v680, 1.442695
    %v682 = vpow.pop %v681
    %v683 = vsel %vm262, %v682, 0.0
    %684 = vadd.xlane.f32.xlu0 %v683
    %v685 = vpop.xlane.xlu0 %684
    %v686 = vrcp.pop %v685
    %v687 = vmul.f32 %v682, %v686
    %688 = vrot.lane.b32.xlu0 %v518, 48
    %v689 = vpop.permute.xlu0 %688
    %v691 = vsel %vm276, %v687, 0
    %v693 = vsel %vm132, %v689, 0
    %695 = vmatpush.msra.mxu0 0.0
    %696 = vmatpush.msra.mxu0 0.0
    %697 = vmatpush.msra.mxu0 0.0
    %698 = vmatpush.msra.mxu0 0.0
    %699 = vmatpush.msra.mxu0 0.0
    %700 = vmatpush.msra.mxu0 0.0
    %701 = vmatpush.msra.mxu0 0.0
    %702 = vmatpush.msra.mxu0 0.0
    %703 = vmatpush.msra.mxu0 0.0
    %704 = vmatpush.msra.mxu0 0.0
    %705 = vmatpush.msra.mxu0 0.0
    %706 = vmatpush.msra.mxu0 0.0
    %707 = vmatpush.msra.mxu0 0.0
    %708 = vmatpush.msra.mxu0 0.0
    %709 = vmatpush.msra.mxu0 0.0
    %710 = vmatpush.msra.mxu0 %v693
    %711 = vmatmul.f32.gmra.mxu0 %v691
    %v712 = vpop.f32.mrf.mxu0
    %v713 = vadd.f32 0.0, %v712
    %714 = vdwg.mxu0
    %715 = vrot.lane.b32.xlu0 %v517, 104
    %v716 = vpop.permute.xlu0 %715
    %717 = vrot.lane.b32.xlu0 %v518, 72
    %v718 = vpop.permute.xlu0 %717
    %v719 = vsel %vm236, %v716, 0
    %v721 = vsel %vm236, %v718, 0
    %723 = vmatpush.xpose.msra.mxu0 0.0
    %724 = vmatpush.xpose.msra.mxu0 0.0
    %725 = vmatpush.xpose.msra.mxu0 0.0
    %726 = vmatpush.xpose.msra.mxu0 0.0
    %727 = vmatpush.xpose.msra.mxu0 0.0
    %728 = vmatpush.xpose.msra.mxu0 0.0
    %729 = vmatpush.xpose.msra.mxu0 0.0
    %730 = vmatpush.xpose.msra.mxu0 0.0
    %731 = vmatpush.xpose.msra.mxu0 0.0
    %732 = vmatpush.xpose.msra.mxu0 0.0
    %733 = vmatpush.xpose.msra.mxu0 0.0
    %734 = vmatpush.xpose.msra.mxu0 0.0
    %735 = vmatpush.xpose.msra.mxu0 0.0
    %736 = vmatpush.xpose.msra.mxu0 0.0
    %737 = vmatpush.xpose.msra.mxu0 0.0
    %738 = vmatpush.xpose.msra.mxu0 %v721
    %739 = vmatmul.f32.gmra.mxu0 %v719
    %v740 = vpop.f32.mrf.mxu0
    %v741 = vadd.f32 0.0, %v740
    %742 = vdwg.mxu0
    %v743 = vsel %vm262, %v741, -inf
    %744 = vmax.xlane.f32.xlu0 %v743
    %v745 = vpop.xlane.xlu0 %744
    %v746 = vsub.f32 %v741, %v745
    %v747 = vmul.f32 %v746, 1.442695
    %v748 = vpow.pop %v747
    %v749 = vsel %vm262, %v748, 0.0
    %750 = vadd.xlane.f32.xlu0 %v749
    %v751 = vpop.xlane.xlu0 %750
    %v752 = vrcp.pop %v751
    %v753 = vmul.f32 %v748, %v752
    %754 = vrot.lane.b32.xlu0 %v518, 40
    %v755 = vpop.permute.xlu0 %754
    %v757 = vsel %vm276, %v753, 0
    %v759 = vsel %vm132, %v755, 0
    %761 = vmatpush.msra.mxu0 0.0
    %762 = vmatpush.msra.mxu0 0.0
    %763 = vmatpush.msra.mxu0 0.0
    %764 = vmatpush.msra.mxu0 0.0
    %765 = vmatpush.msra.mxu0 0.0
    %766 = vmatpush.msra.mxu0 0.0
    %767 = vmatpush.msra.mxu0 0.0
    %768 = vmatpush.msra.mxu0 0.0
    %769 = vmatpush.msra.mxu0 0.0
    %770 = vmatpush.msra.mxu0 0.0
    %771 = vmatpush.msra.mxu0 0.0
    %772 = vmatpush.msra.mxu0 0.0
    %773 = vmatpush.msra.mxu0 0.0
    %774 = vmatpush.msra.mxu0 0.0
    %775 = vmatpush.msra.mxu0 0.0
    %776 = vmatpush.msra.mxu0 %v759
    %777 = vmatmul.f32.gmra.mxu0 %v757
    %v778 = vpop.f32.mrf.mxu0
    %v779 = vadd.f32 0.0, %v778
    %780 = vdwg.mxu0
    %782 = vrot.lane.b32.xlu0 %v647, 8
    %v783 = vpop.permute.xlu0 %782
    %786 = vrot.lane.b32.xlu0 %v713, 16
    %v787 = vpop.permute.xlu0 %786
    %790 = vrot.lane.b32.xlu0 %v779, 24
    %v791 = vpop.permute.xlu0 %790
    %v793 = vsel %vm236, %v581, %v783
    %v794 = vsel %vm513, %v793, %v787
    %v795 = vsel %vm515, %v794, %v791
    %v797 = vrot.slane %v795, 5
    %v799 = vsel %vm132, %v516, %v797
    %v801 = vsel %vm96, %v799, 0
    %803 = vmatpush.msra.mxu0 0.0
    %804 = vmatpush.msra.mxu0 0.0
    %805 = vmatpush.msra.mxu0 0.0
    %806 = vmatpush.msra.mxu0 0.0
    %807 = vmatpush.msra.mxu0 0.0
    %808 = vmatpush.msra.mxu0 0.0
    %809 = vmatpush.msra.mxu0 0.0
    %810 = vmatpush.msra.mxu0 0.0
    %811 = vmatpush.msra.mxu0 0.0
    %812 = vmatpush.msra.mxu0 0.0
    %813 = vmatpush.msra.mxu0 0.0
    %814 = vmatpush.msra.mxu0 0.0
    %815 = vmatpush.msra.mxu0 %v153
    %816 = vmatpush.msra.mxu0 %v152
    %817 = vmatpush.msra.mxu0 %v151
    %818 = vmatpush.msra.mxu0 %v150
    %819 = vmatmul.f32.gmra.mxu0 %v801
    %v820 = vpop.f32.mrf.mxu0
    %v821 = vadd.f32 0.0, %v820
    %822 = vdwg.mxu0
    %v823 = vadd.f32 %v137, %v821
    %v824 = vperm.slane %v141, 0
    %v825 = vadd.f32 %v823, %v824
    %v826 = vsel %vm174, %v825, 0.0
    %827 = vadd.xlane.f32.xlu0 %v826
    %v828 = vpop.xlane.xlu0 %827
    %v829 = vmul.f32 %v828, %v184
    %v830 = vsub.f32 %v825, %v829
    %v831 = vmul.f32 %v830, %v830
    %v832 = vsel %vm174, %v831, 0.0
    %833 = vadd.xlane.f32.xlu0 %v832
    %v834 = vpop.xlane.xlu0 %833
    %v835 = vmul.f32 %v834, %v184
    %v836 = vadd.f32 %v835, 1e-05
    %v837 = vrsqrt.pop %v836
    %v838 = vmul.f32 %v837, %v836
    %v839 = vmul.f32 %v838, %v837
    %v840 = vmul.f32 0.5, %v839
    %v841 = vsub.f32 1.5, %v840
    %v842 = vmul.f32 %v837, %v841
    %vm843 = vweird.f32 %v836
    %vm844 = vweird.f32 %v837
    %vm845 = vmor %vm843, %vm844
    %v846 = vsel %vm845, %v837, %v842
    %v847 = vmul.f32 %v830, %v846
    %v848 = vperm.slane %v142, 0
    %v849 = vmul.f32 %v847, %v848
    %v850 = vperm.slane %v143, 0
    %v851 = vadd.f32 %v849, %v850
    %v852 = vperm.slane %v144, 0
    %v854 = vsel %vm96, %v851, 0
    %856 = vmatpush.msra.mxu0 0.0
    %857 = vmatpush.msra.mxu0 0.0
    %858 = vmatpush.msra.mxu0 0.0
    %859 = vmatpush.msra.mxu0 0.0
    %860 = vmatpush.msra.mxu0 0.0
    %861 = vmatpush.msra.mxu0 0.0
    %862 = vmatpush.msra.mxu0 0.0
    %863 = vmatpush.msra.mxu0 0.0
    %864 = vmatpush.msra.mxu0 0.0
    %865 = vmatpush.msra.mxu0 0.0
    %866 = vmatpush.msra.mxu0 0.0
    %867 = vmatpush.msra.mxu0 0.0
    %868 = vmatpush.msra.mxu0 %v157
    %869 = vmatpush.msra.mxu0 %v156
    %870 = vmatpush.msra.mxu0 %v155
    %871 = vmatpush.msra.mxu0 %v154
    %872 = vmatmul.f32.gmra.mxu0 %v854
    %v873 = vpop.f32.mrf.mxu0
    %v874 = vadd.f32 %v852, %v873
    %875 = vdwg.mxu0
    %v876 = vmul.f32 %v874, 0.5
    %v877 = vmul.f32 %v874, 0.044715
    %v878 = vmul.f32 %v877, %v874
    %v879 = vmul.f32 %v878, %v874
    %v880 = vadd.f32 %v874, %v879
    %v881 = vmul.f32 %v880, 0.7978846
    %v882 = vtanh.pop %v881
    %v883 = vadd.f32 %v882, 1.0
    %v884 = vmul.f32 %v876, %v883
    %885 = vmatpush.msra.mxu0 %v173
    %886 = vmatpush.msra.mxu0 %v172
    %887 = vmatpush.msra.mxu0 %v171
    %888 = vmatpush.msra.mxu0 %v170
    %889 = vmatpush.msra.mxu0 %v169
    %890 = vmatpush.msra.mxu0 %v168
    %891 = vmatpush.msra.mxu0 %v167
    %892 = vmatpush.msra.mxu0 %v166
    %893 = vmatpush.msra.mxu0 %v165
    %894 = vmatpush.msra.mxu0 %v164
    %895 = vmatpush.msra.mxu0 %v163
    %896 = vmatpush.msra.mxu0 %v162
    %897 = vmatpush.msra.mxu0 %v161
    %898 = vmatpush.msra.mxu0 %v160
    %899 = vmatpush.msra.mxu0 %v159
    %900 = vmatpush.msra.mxu0 %v158
    %901 = vmatmul.f32.gmra.mxu0 %v884
    %v902 = vpop.f32.mrf.mxu0
    %v903 = vadd.f32 0.0, %v902
    %904 = vdwg.mxu0
    %v905 = vadd.f32 %v825, %v903
    %v906 = vperm.slane %v145, 0
    %v907 = vadd.f32 %v905, %v906
    %v908 = vld [vmem:[%s5 + $0xe8] sm:$0x1]
    %v909 = vld [vmem:[%s5 + $0xe9] sm:$0x1]
    %v910 = vld [vmem:[%s5 + $0xea] sm:$0x1]
    %v911 = vld [vmem:[%s5 + $0xeb] sm:$0x1]
    %v912 = vld [vmem:[%s5 + $0xec] sm:$0x1]
    %v913 = vld [vmem:[%s5 + $0xed] sm:$0x1]
    %v914 = vld [vmem:[%s5 + $0xee] sm:$0x1]
    %v915 = vld [vmem:[%s5 + $0xef] sm:$0x1]
    %v916 = vld [vmem:[%s5 + $0xf0] sm:$0xff]
    %v917 = vld [vmem:[%s5 + $0xf8] sm:$0xff]
    %v918 = vld [vmem:[%s5 + $0x100] sm:$0xff]
    %v919 = vld [vmem:[%s5 + $0x108] sm:$0xff]
    %v920 = vld [vmem:[%s5 + $0x110] sm:$0xff]
    %v921 = vld [vmem:[%s5 + $0x118] sm:$0xff]
    %v922 = vld [vmem:[%s5 + $0x120] sm:$0xff]
    %v923 = vld [vmem:[%s5 + $0x128] sm:$0xff]
    %v924 = vld [vmem:[%s5 + $0x130] sm:$0xff]
    %v925 = vld [vmem:[%s5 + $0x138] sm:$0xff]
    %v926 = vld [vmem:[%s5 + $0x140] sm:$0xff]
    %v927 = vld [vmem:[%s5 + $0x148] sm:$0xff]
    %v928 = vld [vmem:[%s5 + $0x150] sm:$0xff]
    %v929 = vld [vmem:[%s5 + $0x158] sm:$0xff]
    %v930 = vld [vmem:[%s5 + $0x160] sm:$0xff]
    %v931 = vld [vmem:[%s5 + $0x168] sm:$0xff]
    %v932 = vld [vmem:[%s5 + $0x170] sm:$0xff]
    %v933 = vld [vmem:[%s5 + $0x178] sm:$0xff]
    %v934 = vld [vmem:[%s5 + $0x180] sm:$0xff]
    %v935 = vld [vmem:[%s5 + $0x188] sm:$0xff]
    %v936 = vld [vmem:[%s5 + $0x190] sm:$0xff]
    %v937 = vld [vmem:[%s5 + $0x198] sm:$0xff]
    %v938 = vld [vmem:[%s5 + $0x1a0] sm:$0xff]
    %v939 = vld [vmem:[%s5 + $0x1a8] sm:$0xff]
    %v940 = vld [vmem:[%s5 + $0x1b0] sm:$0xff]
    %v941 = vld [vmem:[%s5 + $0x1b8] sm:$0xff]
    %v942 = vld [vmem:[%s5 + $0x1c0] sm:$0xff]
    %v943 = vld [vmem:[%s5 + $0x1c8] sm:$0xff]
    %v944 = vsel %vm174, %v907, 0.0
    %945 = vadd.xlane.f32.xlu0 %v944
    %v946 = vpop.xlane.xlu0 %945
    %v947 = vmul.f32 %v946, %v184
    %v948 = vsub.f32 %v907, %v947
    %v949 = vmul.f32 %v948, %v948
    %v950 = vsel %vm174, %v949, 0.0
    %951 = vadd.xlane.f32.xlu0 %v950
    %v952 = vpop.xlane.xlu0 %951
    %v953 = vmul.f32 %v952, %v184
    %v954 = vadd.f32 %v953, 1e-05
    %v955 = vrsqrt.pop %v954
    %v956 = vmul.f32 %v955, %v954
    %v957 = vmul.f32 %v956, %v955
    %v958 = vmul.f32 0.5, %v957
    %v959 = vsub.f32 1.5, %v958
    %v960 = vmul.f32 %v955, %v959
    %vm961 = vweird.f32 %v954
    %vm962 = vweird.f32 %v955
    %vm963 = vmor %vm961, %vm962
    %v964 = vsel %vm963, %v955, %v960
    %v965 = vmul.f32 %v948, %v964
    %v966 = vperm.slane %v908, 0
    %v967 = vmul.f32 %v965, %v966
    %v968 = vperm.slane %v909, 0
    %v969 = vadd.f32 %v967, %v968
    %v970 = vperm.slane %v910, 0
    %v972 = vsel %vm96, %v969, 0
    %974 = vmatpush.msra.mxu0 0.0
    %975 = vmatpush.msra.mxu0 0.0
    %976 = vmatpush.msra.mxu0 0.0
    %977 = vmatpush.msra.mxu0 0.0
    %978 = vmatpush.msra.mxu0 0.0
    %979 = vmatpush.msra.mxu0 0.0
    %980 = vmatpush.msra.mxu0 0.0
    %981 = vmatpush.msra.mxu0 0.0
    %982 = vmatpush.msra.mxu0 0.0
    %983 = vmatpush.msra.mxu0 0.0
    %984 = vmatpush.msra.mxu0 0.0
    %985 = vmatpush.msra.mxu0 0.0
    %986 = vmatpush.msra.mxu0 %v919
    %987 = vmatpush.msra.mxu0 %v918
    %988 = vmatpush.msra.mxu0 %v917
    %989 = vmatpush.msra.mxu0 %v916
    %990 = vmatmul.f32.gmra.mxu0 %v972
    %v991 = vpop.f32.mrf.mxu0
    %v992 = vadd.f32 %v970, %v991
    %993 = vdwg.mxu0
    %v994 = vmul.f32 %v992, 0.35355338
    %996 = vrot.lane.b32.xlu0 %v992, 96
    %v997 = vpop.permute.xlu0 %996
    %v999 = vsel %vm236, %v994, 0
    %v1001 = vsel %vm236, %v997, 0
    %1003 = vmatpush.xpose.msra.mxu0 0.0
    %1004 = vmatpush.xpose.msra.mxu0 0.0
    %1005 = vmatpush.xpose.msra.mxu0 0.0
    %1006 = vmatpush.xpose.msra.mxu0 0.0
    %1007 = vmatpush.xpose.msra.mxu0 0.0
    %1008 = vmatpush.xpose.msra.mxu0 0.0
    %1009 = vmatpush.xpose.msra.mxu0 0.0
    %1010 = vmatpush.xpose.msra.mxu0 0.0
    %1011 = vmatpush.xpose.msra.mxu0 0.0
    %1012 = vmatpush.xpose.msra.mxu0 0.0
    %1013 = vmatpush.xpose.msra.mxu0 0.0
    %1014 = vmatpush.xpose.msra.mxu0 0.0
    %1015 = vmatpush.xpose.msra.mxu0 0.0
    %1016 = vmatpush.xpose.msra.mxu0 0.0
    %1017 = vmatpush.xpose.msra.mxu0 0.0
    %1018 = vmatpush.xpose.msra.mxu0 %v1001
    %1019 = vmatmul.f32.gmra.mxu0 %v999
    %v1020 = vpop.f32.mrf.mxu0
    %v1021 = vadd.f32 0.0, %v1020
    %1022 = vdwg.mxu0
    %v1023 = vsel %vm262, %v1021, -inf
    %1024 = vmax.xlane.f32.xlu0 %v1023
    %v1025 = vpop.xlane.xlu0 %1024
    %v1026 = vsub.f32 %v1021, %v1025
    %v1027 = vmul.f32 %v1026, 1.442695
    %v1028 = vpow.pop %v1027
    %v1029 = vsel %vm262, %v1028, 0.0
    %1030 = vadd.xlane.f32.xlu0 %v1029
    %v1031 = vpop.xlane.xlu0 %1030
    %v1032 = vrcp.pop %v1031
    %v1033 = vmul.f32 %v1028, %v1032
    %1034 = vrot.lane.b32.xlu0 %v992, 64
    %v1035 = vpop.permute.xlu0 %1034
    %v1037 = vsel %vm276, %v1033, 0
    %v1039 = vsel %vm132, %v1035, 0
    %1041 = vmatpush.msra.mxu0 0.0
    %1042 = vmatpush.msra.mxu0 0.0
    %1043 = vmatpush.msra.mxu0 0.0
    %1044 = vmatpush.msra.mxu0 0.0
    %1045 = vmatpush.msra.mxu0 0.0
    %1046 = vmatpush.msra.mxu0 0.0
    %1047 = vmatpush.msra.mxu0 0.0
    %1048 = vmatpush.msra.mxu0 0.0
    %1049 = vmatpush.msra.mxu0 0.0
    %1050 = vmatpush.msra.mxu0 0.0
    %1051 = vmatpush.msra.mxu0 0.0
    %1052 = vmatpush.msra.mxu0 0.0
    %1053 = vmatpush.msra.mxu0 0.0
    %1054 = vmatpush.msra.mxu0 0.0
    %1055 = vmatpush.msra.mxu0 0.0
    %1056 = vmatpush.msra.mxu0 %v1039
    %1057 = vmatmul.f32.gmra.mxu0 %v1037
    %v1058 = vpop.f32.mrf.mxu0
    %v1059 = vadd.f32 0.0, %v1058
    %1060 = vdwg.mxu0
    %1061 = vrot.lane.b32.xlu0 %v994, 120
    %v1062 = vpop.permute.xlu0 %1061
    %1063 = vrot.lane.b32.xlu0 %v992, 88
    %v1064 = vpop.permute.xlu0 %1063
    %v1065 = vsel %vm236, %v1062, 0
    %v1067 = vsel %vm236, %v1064, 0
    %1069 = vmatpush.xpose.msra.mxu0 0.0
    %1070 = vmatpush.xpose.msra.mxu0 0.0
    %1071 = vmatpush.xpose.msra.mxu0 0.0
    %1072 = vmatpush.xpose.msra.mxu0 0.0
    %1073 = vmatpush.xpose.msra.mxu0 0.0
    %1074 = vmatpush.xpose.msra.mxu0 0.0
    %1075 = vmatpush.xpose.msra.mxu0 0.0
    %1076 = vmatpush.xpose.msra.mxu0 0.0
    %1077 = vmatpush.xpose.msra.mxu0 0.0
    %1078 = vmatpush.xpose.msra.mxu0 0.0
    %1079 = vmatpush.xpose.msra.mxu0 0.0
    %1080 = vmatpush.xpose.msra.mxu0 0.0
    %1081 = vmatpush.xpose.msra.mxu0 0.0
    %1082 = vmatpush.xpose.msra.mxu0 0.0
    %1083 = vmatpush.xpose.msra.mxu0 0.0
    %1084 = vmatpush.xpose.msra.mxu0 %v1067
    %1085 = vmatmul.f32.gmra.mxu0 %v1065
    %v1086 = vpop.f32.mrf.mxu0
    %v1087 = vadd.f32 0.0, %v1086
    %1088 = vdwg.mxu0
    %v1089 = vsel %vm262, %v1087, -inf
    %1090 = vmax.xlane.f32.xlu0 %v1089
    %v1091 = vpop.xlane.xlu0 %1090
    %v1092 = vsub.f32 %v1087, %v1091
    %v1093 = vmul.f32 %v1092, 1.442695
    %v1094 = vpow.pop %v1093
    %v1095 = vsel %vm262, %v1094, 0.0
    %1096 = vadd.xlane.f32.xlu0 %v1095
    %v1097 = vpop.xlane.xlu0 %1096
    %v1098 = vrcp.pop %v1097
    %v1099 = vmul.f32 %v1094, %v1098
    %1100 = vrot.lane.b32.xlu0 %v992, 56
    %v1101 = vpop.permute.xlu0 %1100
    %v1103 = vsel %vm276, %v1099, 0
    %v1105 = vsel %vm132, %v1101, 0
    %1107 = vmatpush.msra.mxu0 0.0
    %1108 = vmatpush.msra.mxu0 0.0
    %1109 = vmatpush.msra.mxu0 0.0
    %1110 = vmatpush.msra.mxu0 0.0
    %1111 = vmatpush.msra.mxu0 0.0
    %1112 = vmatpush.msra.mxu0 0.0
    %1113 = vmatpush.msra.mxu0 0.0
    %1114 = vmatpush.msra.mxu0 0.0
    %1115 = vmatpush.msra.mxu0 0.0
    %1116 = vmatpush.msra.mxu0 0.0
    %1117 = vmatpush.msra.mxu0 0.0
    %1118 = vmatpush.msra.mxu0 0.0
    %1119 = vmatpush.msra.mxu0 0.0
    %1120 = vmatpush.msra.mxu0 0.0
    %1121 = vmatpush.msra.mxu0 0.0
    %1122 = vmatpush.msra.mxu0 %v1105
    %1123 = vmatmul.f32.gmra.mxu0 %v1103
    %v1124 = vpop.f32.mrf.mxu0
    %v1125 = vadd.f32 0.0, %v1124
    %1126 = vdwg.mxu0
    %1127 = vrot.lane.b32.xlu0 %v994, 112
    %v1128 = vpop.permute.xlu0 %1127
    %1129 = vrot.lane.b32.xlu0 %v992, 80
    %v1130 = vpop.permute.xlu0 %1129
    %v1131 = vsel %vm236, %v1128, 0
    %v1133 = vsel %vm236, %v1130, 0
    %1135 = vmatpush.xpose.msra.mxu0 0.0
    %1136 = vmatpush.xpose.msra.mxu0 0.0
    %1137 = vmatpush.xpose.msra.mxu0 0.0
    %1138 = vmatpush.xpose.msra.mxu0 0.0
    %1139 = vmatpush.xpose.msra.mxu0 0.0
    %1140 = vmatpush.xpose.msra.mxu0 0.0
    %1141 = vmatpush.xpose.msra.mxu0 0.0
    %1142 = vmatpush.xpose.msra.mxu0 0.0
    %1143 = vmatpush.xpose.msra.mxu0 0.0
    %1144 = vmatpush.xpose.msra.mxu0 0.0
    %1145 = vmatpush.xpose.msra.mxu0 0.0
    %1146 = vmatpush.xpose.msra.mxu0 0.0
    %1147 = vmatpush.xpose.msra.mxu0 0.0
    %1148 = vmatpush.xpose.msra.mxu0 0.0
    %1149 = vmatpush.xpose.msra.mxu0 0.0
    %1150 = vmatpush.xpose.msra.mxu0 %v1133
    %1151 = vmatmul.f32.gmra.mxu0 %v1131
    %v1152 = vpop.f32.mrf.mxu0
    %v1153 = vadd.f32 0.0, %v1152
    %1154 = vdwg.mxu0
    %v1155 = vsel %vm262, %v1153, -inf
    %1156 = vmax.xlane.f32.xlu0 %v1155
    %v1157 = vpop.xlane.xlu0 %1156
    %v1158 = vsub.f32 %v1153, %v1157
    %v1159 = vmul.f32 %v1158, 1.442695
    %v1160 = vpow.pop %v1159
    %v1161 = vsel %vm262, %v1160, 0.0
    %1162 = vadd.xlane.f32.xlu0 %v1161
    %v1163 = vpop.xlane.xlu0 %1162
    %v1164 = vrcp.pop %v1163
    %v1165 = vmul.f32 %v1160, %v1164
    %1166 = vrot.lane.b32.xlu0 %v992, 48
    %v1167 = vpop.permute.xlu0 %1166
    %v1169 = vsel %vm276, %v1165, 0
    %v1171 = vsel %vm132, %v1167, 0
    %1173 = vmatpush.msra.mxu0 0.0
    %1174 = vmatpush.msra.mxu0 0.0
    %1175 = vmatpush.msra.mxu0 0.0
    %1176 = vmatpush.msra.mxu0 0.0
    %1177 = vmatpush.msra.mxu0 0.0
    %1178 = vmatpush.msra.mxu0 0.0
    %1179 = vmatpush.msra.mxu0 0.0
    %1180 = vmatpush.msra.mxu0 0.0
    %1181 = vmatpush.msra.mxu0 0.0
    %1182 = vmatpush.msra.mxu0 0.0
    %1183 = vmatpush.msra.mxu0 0.0
    %1184 = vmatpush.msra.mxu0 0.0
    %1185 = vmatpush.msra.mxu0 0.0
    %1186 = vmatpush.msra.mxu0 0.0
    %1187 = vmatpush.msra.mxu0 0.0
    %1188 = vmatpush.msra.mxu0 %v1171
    %1189 = vmatmul.f32.gmra.mxu0 %v1169
    %v1190 = vpop.f32.mrf.mxu0
    %v1191 = vadd.f32 0.0, %v1190
    %1192 = vdwg.mxu0
    %1193 = vrot.lane.b32.xlu0 %v994, 104
    %v1194 = vpop.permute.xlu0 %1193
    %1195 = vrot.lane.b32.xlu0 %v992, 72
    %v1196 = vpop.permute.xlu0 %1195
    %v1197 = vsel %vm236, %v1194, 0
    %v1199 = vsel %vm236, %v1196, 0
    %1201 = vmatpush.xpose.msra.mxu0 0.0
    %1202 = vmatpush.xpose.msra.mxu0 0.0
    %1203 = vmatpush.xpose.msra.mxu0 0.0
    %1204 = vmatpush.xpose.msra.mxu0 0.0
    %1205 = vmatpush.xpose.msra.mxu0 0.0
    %1206 = vmatpush.xpose.msra.mxu0 0.0
    %1207 = vmatpush.xpose.msra.mxu0 0.0
    %1208 = vmatpush.xpose.msra.mxu0 0.0
    %1209 = vmatpush.xpose.msra.mxu0 0.0
    %1210 = vmatpush.xpose.msra.mxu0 0.0
    %1211 = vmatpush.xpose.msra.mxu0 0.0
    %1212 = vmatpush.xpose.msra.mxu0 0.0
    %1213 = vmatpush.xpose.msra.mxu0 0.0
    %1214 = vmatpush.xpose.msra.mxu0 0.0
    %1215 = vmatpush.xpose.msra.mxu0 0.0
    %1216 = vmatpush.xpose.msra.mxu0 %v1199
    %1217 = vmatmul.f32.gmra.mxu0 %v1197
    %v1218 = vpop.f32.mrf.mxu0
    %v1219 = vadd.f32 0.0, %v1218
    %1220 = vdwg.mxu0
    %v1221 = vsel %vm262, %v1219, -inf
    %1222 = vmax.xlane.f32.xlu0 %v1221
    %v1223 = vpop.xlane.xlu0 %1222
    %v1224 = vsub.f32 %v1219, %v1223
    %v1225 = vmul.f32 %v1224, 1.442695
    %v1226 = vpow.pop %v1225
    %v1227 = vsel %vm262, %v1226, 0.0
    %1228 = vadd.xlane.f32.xlu0 %v1227
    %v1229 = vpop.xlane.xlu0 %1228
    %v1230 = vrcp.pop %v1229
    %v1231 = vmul.f32 %v1226, %v1230
    %1232 = vrot.lane.b32.xlu0 %v992, 40
    %v1233 = vpop.permute.xlu0 %1232
    %v1235 = vsel %vm276, %v1231, 0
    %v1237 = vsel %vm132, %v1233, 0
    %1239 = vmatpush.msra.mxu0 0.0
    %1240 = vmatpush.msra.mxu0 0.0
    %1241 = vmatpush.msra.mxu0 0.0
    %1242 = vmatpush.msra.mxu0 0.0
    %1243 = vmatpush.msra.mxu0 0.0
    %1244 = vmatpush.msra.mxu0 0.0
    %1245 = vmatpush.msra.mxu0 0.0
    %1246 = vmatpush.msra.mxu0 0.0
    %1247 = vmatpush.msra.mxu0 0.0
    %1248 = vmatpush.msra.mxu0 0.0
    %1249 = vmatpush.msra.mxu0 0.0
    %1250 = vmatpush.msra.mxu0 0.0
    %1251 = vmatpush.msra.mxu0 0.0
    %1252 = vmatpush.msra.mxu0 0.0
    %1253 = vmatpush.msra.mxu0 0.0
    %1254 = vmatpush.msra.mxu0 %v1237
    %1255 = vmatmul.f32.gmra.mxu0 %v1235
    %v1256 = vpop.f32.mrf.mxu0
    %v1257 = vadd.f32 0.0, %v1256
    %1258 = vdwg.mxu0
    %1260 = vrot.lane.b32.xlu0 %v1125, 8
    %v1261 = vpop.permute.xlu0 %1260
    %1264 = vrot.lane.b32.xlu0 %v1191, 16
    %v1265 = vpop.permute.xlu0 %1264
    %1268 = vrot.lane.b32.xlu0 %v1257, 24
    %v1269 = vpop.permute.xlu0 %1268
    %v1271 = vsel %vm236, %v1059, %v1261
    %v1272 = vsel %vm513, %v1271, %v1265
    %v1273 = vsel %vm515, %v1272, %v1269
    %v1274 = vrot.slane %v994, 3
    %v1275 = vrot.slane %v992, 3
    %1276 = vrot.lane.b32.xlu0 %v1275, 96
    %v1277 = vpop.permute.xlu0 %1276
    %v1278 = vsel %vm236, %v1274, 0
    %v1280 = vsel %vm236, %v1277, 0
    %1282 = vmatpush.xpose.msra.mxu0 0.0
    %1283 = vmatpush.xpose.msra.mxu0 0.0
    %1284 = vmatpush.xpose.msra.mxu0 0.0
    %1285 = vmatpush.xpose.msra.mxu0 0.0
    %1286 = vmatpush.xpose.msra.mxu0 0.0
    %1287 = vmatpush.xpose.msra.mxu0 0.0
    %1288 = vmatpush.xpose.msra.mxu0 0.0
    %1289 = vmatpush.xpose.msra.mxu0 0.0
    %1290 = vmatpush.xpose.msra.mxu0 0.0
    %1291 = vmatpush.xpose.msra.mxu0 0.0
    %1292 = vmatpush.xpose.msra.mxu0 0.0
    %1293 = vmatpush.xpose.msra.mxu0 0.0
    %1294 = vmatpush.xpose.msra.mxu0 0.0
    %1295 = vmatpush.xpose.msra.mxu0 0.0
    %1296 = vmatpush.xpose.msra.mxu0 0.0
    %1297 = vmatpush.xpose.msra.mxu0 %v1280
    %1298 = vmatmul.f32.gmra.mxu0 %v1278
    %v1299 = vpop.f32.mrf.mxu0
    %v1300 = vadd.f32 0.0, %v1299
    %1301 = vdwg.mxu0
    %v1302 = vsel %vm262, %v1300, -inf
    %1303 = vmax.xlane.f32.xlu0 %v1302
    %v1304 = vpop.xlane.xlu0 %1303
    %v1305 = vsub.f32 %v1300, %v1304
    %v1306 = vmul.f32 %v1305, 1.442695
    %v1307 = vpow.pop %v1306
    %v1308 = vsel %vm262, %v1307, 0.0
    %1309 = vadd.xlane.f32.xlu0 %v1308
    %v1310 = vpop.xlane.xlu0 %1309
    %v1311 = vrcp.pop %v1310
    %v1312 = vmul.f32 %v1307, %v1311
    %1313 = vrot.lane.b32.xlu0 %v1275, 64
    %v1314 = vpop.permute.xlu0 %1313
    %v1316 = vsel %vm276, %v1312, 0
    %v1318 = vsel %vm132, %v1314, 0
    %1320 = vmatpush.msra.mxu0 0.0
    %1321 = vmatpush.msra.mxu0 0.0
    %1322 = vmatpush.msra.mxu0 0.0
    %1323 = vmatpush.msra.mxu0 0.0
    %1324 = vmatpush.msra.mxu0 0.0
    %1325 = vmatpush.msra.mxu0 0.0
    %1326 = vmatpush.msra.mxu0 0.0
    %1327 = vmatpush.msra.mxu0 0.0
    %1328 = vmatpush.msra.mxu0 0.0
    %1329 = vmatpush.msra.mxu0 0.0
    %1330 = vmatpush.msra.mxu0 0.0
    %1331 = vmatpush.msra.mxu0 0.0
    %1332 = vmatpush.msra.mxu0 0.0
    %1333 = vmatpush.msra.mxu0 0.0
    %1334 = vmatpush.msra.mxu0 0.0
    %1335 = vmatpush.msra.mxu0 %v1318
    %1336 = vmatmul.f32.gmra.mxu0 %v1316
    %v1337 = vpop.f32.mrf.mxu0
    %v1338 = vadd.f32 0.0, %v1337
    %1339 = vdwg.mxu0
    %1340 = vrot.lane.b32.xlu0 %v1274, 120
    %v1341 = vpop.permute.xlu0 %1340
    %1342 = vrot.lane.b32.xlu0 %v1275, 88
    %v1343 = vpop.permute.xlu0 %1342
    %v1344 = vsel %vm236, %v1341, 0
    %v1346 = vsel %vm236, %v1343, 0
    %1348 = vmatpush.xpose.msra.mxu0 0.0
    %1349 = vmatpush.xpose.msra.mxu0 0.0
    %1350 = vmatpush.xpose.msra.mxu0 0.0
    %1351 = vmatpush.xpose.msra.mxu0 0.0
    %1352 = vmatpush.xpose.msra.mxu0 0.0
    %1353 = vmatpush.xpose.msra.mxu0 0.0
    %1354 = vmatpush.xpose.msra.mxu0 0.0
    %1355 = vmatpush.xpose.msra.mxu0 0.0
    %1356 = vmatpush.xpose.msra.mxu0 0.0
    %1357 = vmatpush.xpose.msra.mxu0 0.0
    %1358 = vmatpush.xpose.msra.mxu0 0.0
    %1359 = vmatpush.xpose.msra.mxu0 0.0
    %1360 = vmatpush.xpose.msra.mxu0 0.0
    %1361 = vmatpush.xpose.msra.mxu0 0.0
    %1362 = vmatpush.xpose.msra.mxu0 0.0
    %1363 = vmatpush.xpose.msra.mxu0 %v1346
    %1364 = vmatmul.f32.gmra.mxu0 %v1344
    %v1365 = vpop.f32.mrf.mxu0
    %v1366 = vadd.f32 0.0, %v1365
    %1367 = vdwg.mxu0
    %v1368 = vsel %vm262, %v1366, -inf
    %1369 = vmax.xlane.f32.xlu0 %v1368
    %v1370 = vpop.xlane.xlu0 %1369
    %v1371 = vsub.f32 %v1366, %v1370
    %v1372 = vmul.f32 %v1371, 1.442695
    %v1373 = vpow.pop %v1372
    %v1374 = vsel %vm262, %v1373, 0.0
    %1375 = vadd.xlane.f32.xlu0 %v1374
    %v1376 = vpop.xlane.xlu0 %1375
    %v1377 = vrcp.pop %v1376
    %v1378 = vmul.f32 %v1373, %v1377
    %1379 = vrot.lane.b32.xlu0 %v1275, 56
    %v1380 = vpop.permute.xlu0 %1379
    %v1382 = vsel %vm276, %v1378, 0
    %v1384 = vsel %vm132, %v1380, 0
    %1386 = vmatpush.msra.mxu0 0.0
    %1387 = vmatpush.msra.mxu0 0.0
    %1388 = vmatpush.msra.mxu0 0.0
    %1389 = vmatpush.msra.mxu0 0.0
    %1390 = vmatpush.msra.mxu0 0.0
    %1391 = vmatpush.msra.mxu0 0.0
    %1392 = vmatpush.msra.mxu0 0.0
    %1393 = vmatpush.msra.mxu0 0.0
    %1394 = vmatpush.msra.mxu0 0.0
    %1395 = vmatpush.msra.mxu0 0.0
    %1396 = vmatpush.msra.mxu0 0.0
    %1397 = vmatpush.msra.mxu0 0.0
    %1398 = vmatpush.msra.mxu0 0.0
    %1399 = vmatpush.msra.mxu0 0.0
    %1400 = vmatpush.msra.mxu0 0.0
    %1401 = vmatpush.msra.mxu0 %v1384
    %1402 = vmatmul.f32.gmra.mxu0 %v1382
    %v1403 = vpop.f32.mrf.mxu0
    %v1404 = vadd.f32 0.0, %v1403
    %1405 = vdwg.mxu0
    %1406 = vrot.lane.b32.xlu0 %v1274, 112
    %v1407 = vpop.permute.xlu0 %1406
    %1408 = vrot.lane.b32.xlu0 %v1275, 80
    %v1409 = vpop.permute.xlu0 %1408
    %v1410 = vsel %vm236, %v1407, 0
    %v1412 = vsel %vm236, %v1409, 0
    %1414 = vmatpush.xpose.msra.mxu0 0.0
    %1415 = vmatpush.xpose.msra.mxu0 0.0
    %1416 = vmatpush.xpose.msra.mxu0 0.0
    %1417 = vmatpush.xpose.msra.mxu0 0.0
    %1418 = vmatpush.xpose.msra.mxu0 0.0
    %1419 = vmatpush.xpose.msra.mxu0 0.0
    %1420 = vmatpush.xpose.msra.mxu0 0.0
    %1421 = vmatpush.xpose.msra.mxu0 0.0
    %1422 = vmatpush.xpose.msra.mxu0 0.0
    %1423 = vmatpush.xpose.msra.mxu0 0.0
    %1424 = vmatpush.xpose.msra.mxu0 0.0
    %1425 = vmatpush.xpose.msra.mxu0 0.0
    %1426 = vmatpush.xpose.msra.mxu0 0.0
    %1427 = vmatpush.xpose.msra.mxu0 0.0
    %1428 = vmatpush.xpose.msra.mxu0 0.0
    %1429 = vmatpush.xpose.msra.mxu0 %v1412
    %1430 = vmatmul.f32.gmra.mxu0 %v1410
    %v1431 = vpop.f32.mrf.mxu0
    %v1432 = vadd.f32 0.0, %v1431
    %1433 = vdwg.mxu0
    %v1434 = vsel %vm262, %v1432, -inf
    %1435 = vmax.xlane.f32.xlu0 %v1434
    %v1436 = vpop.xlane.xlu0 %1435
    %v1437 = vsub.f32 %v1432, %v1436
    %v1438 = vmul.f32 %v1437, 1.442695
    %v1439 = vpow.pop %v1438
    %v1440 = vsel %vm262, %v1439, 0.0
    %1441 = vadd.xlane.f32.xlu0 %v1440
    %v1442 = vpop.xlane.xlu0 %1441
    %v1443 = vrcp.pop %v1442
    %v1444 = vmul.f32 %v1439, %v1443
    %1445 = vrot.lane.b32.xlu0 %v1275, 48
    %v1446 = vpop.permute.xlu0 %1445
    %v1448 = vsel %vm276, %v1444, 0
    %v1450 = vsel %vm132, %v1446, 0
    %1452 = vmatpush.msra.mxu0 0.0
    %1453 = vmatpush.msra.mxu0 0.0
    %1454 = vmatpush.msra.mxu0 0.0
    %1455 = vmatpush.msra.mxu0 0.0
    %1456 = vmatpush.msra.mxu0 0.0
    %1457 = vmatpush.msra.mxu0 0.0
    %1458 = vmatpush.msra.mxu0 0.0
    %1459 = vmatpush.msra.mxu0 0.0
    %1460 = vmatpush.msra.mxu0 0.0
    %1461 = vmatpush.msra.mxu0 0.0
    %1462 = vmatpush.msra.mxu0 0.0
    %1463 = vmatpush.msra.mxu0 0.0
    %1464 = vmatpush.msra.mxu0 0.0
    %1465 = vmatpush.msra.mxu0 0.0
    %1466 = vmatpush.msra.mxu0 0.0
    %1467 = vmatpush.msra.mxu0 %v1450
    %1468 = vmatmul.f32.gmra.mxu0 %v1448
    %v1469 = vpop.f32.mrf.mxu0
    %v1470 = vadd.f32 0.0, %v1469
    %1471 = vdwg.mxu0
    %1472 = vrot.lane.b32.xlu0 %v1274, 104
    %v1473 = vpop.permute.xlu0 %1472
    %1474 = vrot.lane.b32.xlu0 %v1275, 72
    %v1475 = vpop.permute.xlu0 %1474
    %v1476 = vsel %vm236, %v1473, 0
    %v1478 = vsel %vm236, %v1475, 0
    %1480 = vmatpush.xpose.msra.mxu0 0.0
    %1481 = vmatpush.xpose.msra.mxu0 0.0
    %1482 = vmatpush.xpose.msra.mxu0 0.0
    %1483 = vmatpush.xpose.msra.mxu0 0.0
    %1484 = vmatpush.xpose.msra.mxu0 0.0
    %1485 = vmatpush.xpose.msra.mxu0 0.0
    %1486 = vmatpush.xpose.msra.mxu0 0.0
    %1487 = vmatpush.xpose.msra.mxu0 0.0
    %1488 = vmatpush.xpose.msra.mxu0 0.0
    %1489 = vmatpush.xpose.msra.mxu0 0.0
    %1490 = vmatpush.xpose.msra.mxu0 0.0
    %1491 = vmatpush.xpose.msra.mxu0 0.0
    %1492 = vmatpush.xpose.msra.mxu0 0.0
    %1493 = vmatpush.xpose.msra.mxu0 0.0
    %1494 = vmatpush.xpose.msra.mxu0 0.0
    %1495 = vmatpush.xpose.msra.mxu0 %v1478
    %1496 = vmatmul.f32.gmra.mxu0 %v1476
    %v1497 = vpop.f32.mrf.mxu0
    %v1498 = vadd.f32 0.0, %v1497
    %1499 = vdwg.mxu0
    %v1500 = vsel %vm262, %v1498, -inf
    %1501 = vmax.xlane.f32.xlu0 %v1500
    %v1502 = vpop.xlane.xlu0 %1501
    %v1503 = vsub.f32 %v1498, %v1502
    %v1504 = vmul.f32 %v1503, 1.442695
    %v1505 = vpow.pop %v1504
    %v1506 = vsel %vm262, %v1505, 0.0
    %1507 = vadd.xlane.f32.xlu0 %v1506
    %v1508 = vpop.xlane.xlu0 %1507
    %v1509 = vrcp.pop %v1508
    %v1510 = vmul.f32 %v1505, %v1509
    %1511 = vrot.lane.b32.xlu0 %v1275, 40
    %v1512 = vpop.permute.xlu0 %1511
    %v1514 = vsel %vm276, %v1510, 0
    %v1516 = vsel %vm132, %v1512, 0
    %1518 = vmatpush.msra.mxu0 0.0
    %1519 = vmatpush.msra.mxu0 0.0
    %1520 = vmatpush.msra.mxu0 0.0
    %1521 = vmatpush.msra.mxu0 0.0
    %1522 = vmatpush.msra.mxu0 0.0
    %1523 = vmatpush.msra.mxu0 0.0
    %1524 = vmatpush.msra.mxu0 0.0
    %1525 = vmatpush.msra.mxu0 0.0
    %1526 = vmatpush.msra.mxu0 0.0
    %1527 = vmatpush.msra.mxu0 0.0
    %1528 = vmatpush.msra.mxu0 0.0
    %1529 = vmatpush.msra.mxu0 0.0
    %1530 = vmatpush.msra.mxu0 0.0
    %1531 = vmatpush.msra.mxu0 0.0
    %1532 = vmatpush.msra.mxu0 0.0
    %1533 = vmatpush.msra.mxu0 %v1516
    %1534 = vmatmul.f32.gmra.mxu0 %v1514
    %v1535 = vpop.f32.mrf.mxu0
    %v1536 = vadd.f32 0.0, %v1535
    %1537 = vdwg.mxu0
    %1539 = vrot.lane.b32.xlu0 %v1404, 8
    %v1540 = vpop.permute.xlu0 %1539
    %1543 = vrot.lane.b32.xlu0 %v1470, 16
    %v1544 = vpop.permute.xlu0 %1543
    %1547 = vrot.lane.b32.xlu0 %v1536, 24
    %v1548 = vpop.permute.xlu0 %1547
    %v1550 = vsel %vm236, %v1338, %v1540
    %v1551 = vsel %vm513, %v1550, %v1544
    %v1552 = vsel %vm515, %v1551, %v1548
    %v1554 = vrot.slane %v1552, 5
    %v1556 = vsel %vm132, %v1273, %v1554
    %v1558 = vsel %vm96, %v1556, 0
    %1560 = vmatpush.msra.mxu0 0.0
    %1561 = vmatpush.msra.mxu0 0.0
    %1562 = vmatpush.msra.mxu0 0.0
    %1563 = vmatpush.msra.mxu0 0.0
    %1564 = vmatpush.msra.mxu0 0.0
    %1565 = vmatpush.msra.mxu0 0.0
    %1566 = vmatpush.msra.mxu0 0.0
    %1567 = vmatpush.msra.mxu0 0.0
    %1568 = vmatpush.msra.mxu0 0.0
    %1569 = vmatpush.msra.mxu0 0.0
    %1570 = vmatpush.msra.mxu0 0.0
    %1571 = vmatpush.msra.mxu0 0.0
    %1572 = vmatpush.msra.mxu0 %v923
    %1573 = vmatpush.msra.mxu0 %v922
    %1574 = vmatpush.msra.mxu0 %v921
    %1575 = vmatpush.msra.mxu0 %v920
    %1576 = vmatmul.f32.gmra.mxu0 %v1558
    %v1577 = vpop.f32.mrf.mxu0
    %v1578 = vadd.f32 0.0, %v1577
    %1579 = vdwg.mxu0
    %v1580 = vadd.f32 %v907, %v1578
    %v1581 = vperm.slane %v911, 0
    %v1582 = vadd.f32 %v1580, %v1581
    %v1583 = vsel %vm174, %v1582, 0.0
    %1584 = vadd.xlane.f32.xlu0 %v1583
    %v1585 = vpop.xlane.xlu0 %1584
    %v1586 = vmul.f32 %v1585, %v184
    %v1587 = vsub.f32 %v1582, %v1586
    %v1588 = vmul.f32 %v1587, %v1587
    %v1589 = vsel %vm174, %v1588, 0.0
    %1590 = vadd.xlane.f32.xlu0 %v1589
    %v1591 = vpop.xlane.xlu0 %1590
    %v1592 = vmul.f32 %v1591, %v184
    %v1593 = vadd.f32 %v1592, 1e-05
    %v1594 = vrsqrt.pop %v1593
    %v1595 = vmul.f32 %v1594, %v1593
    %v1596 = vmul.f32 %v1595, %v1594
    %v1597 = vmul.f32 0.5, %v1596
    %v1598 = vsub.f32 1.5, %v1597
    %v1599 = vmul.f32 %v1594, %v1598
    %vm1600 = vweird.f32 %v1593
    %vm1601 = vweird.f32 %v1594
    %vm1602 = vmor %vm1600, %vm1601
    %v1603 = vsel %vm1602, %v1594, %v1599
    %v1604 = vmul.f32 %v1587, %v1603
    %v1605 = vperm.slane %v912, 0
    %v1606 = vmul.f32 %v1604, %v1605
    %v1607 = vperm.slane %v913, 0
    %v1608 = vadd.f32 %v1606, %v1607
    %v1609 = vperm.slane %v914, 0
    %v1611 = vsel %vm96, %v1608, 0
    %1613 = vmatpush.msra.mxu0 0.0
    %1614 = vmatpush.msra.mxu0 0.0
    %1615 = vmatpush.msra.mxu0 0.0
    %1616 = vmatpush.msra.mxu0 0.0
    %1617 = vmatpush.msra.mxu0 0.0
    %1618 = vmatpush.msra.mxu0 0.0
    %1619 = vmatpush.msra.mxu0 0.0
    %1620 = vmatpush.msra.mxu0 0.0
    %1621 = vmatpush.msra.mxu0 0.0
    %1622 = vmatpush.msra.mxu0 0.0
    %1623 = vmatpush.msra.mxu0 0.0
    %1624 = vmatpush.msra.mxu0 0.0
    %1625 = vmatpush.msra.mxu0 %v927
    %1626 = vmatpush.msra.mxu0 %v926
    %1627 = vmatpush.msra.mxu0 %v925
    %1628 = vmatpush.msra.mxu0 %v924
    %1629 = vmatmul.f32.gmra.mxu0 %v1611
    %v1630 = vpop.f32.mrf.mxu0
    %v1631 = vadd.f32 %v1609, %v1630
    %1632 = vdwg.mxu0
    %v1633 = vmul.f32 %v1631, 0.5
    %v1634 = vmul.f32 %v1631, 0.044715
    %v1635 = vmul.f32 %v1634, %v1631
    %v1636 = vmul.f32 %v1635, %v1631
    %v1637 = vadd.f32 %v1631, %v1636
    %v1638 = vmul.f32 %v1637, 0.7978846
    %v1639 = vtanh.pop %v1638
    %v1640 = vadd.f32 %v1639, 1.0
    %v1641 = vmul.f32 %v1633, %v1640
    %1642 = vmatpush.msra.mxu0 %v943
    %1643 = vmatpush.msra.mxu0 %v942
    %1644 = vmatpush.msra.mxu0 %v941
    %1645 = vmatpush.msra.mxu0 %v940
    %1646 = vmatpush.msra.mxu0 %v939
    %1647 = vmatpush.msra.mxu0 %v938
    %1648 = vmatpush.msra.mxu0 %v937
    %1649 = vmatpush.msra.mxu0 %v936
    %1650 = vmatpush.msra.mxu0 %v935
    %1651 = vmatpush.msra.mxu0 %v934
    %1652 = vmatpush.msra.mxu0 %v933
    %1653 = vmatpush.msra.mxu0 %v932
    %1654 = vmatpush.msra.mxu0 %v931
    %1655 = vmatpush.msra.mxu0 %v930
    %1656 = vmatpush.msra.mxu0 %v929
    %1657 = vmatpush.msra.mxu0 %v928
    %1658 = vmatmul.f32.gmra.mxu0 %v1641
    %v1659 = vpop.f32.mrf.mxu0
    %v1660 = vadd.f32 0.0, %v1659
    %1661 = vdwg.mxu0
    %v1662 = vadd.f32 %v1582, %v1660
    %v1663 = vperm.slane %v915, 0
    %v1664 = vadd.f32 %v1662, %v1663
    %v1665 = vsel %vm174, %v1664, 0.0
    %1666 = vadd.xlane.f32.xlu0 %v1665
    %v1667 = vpop.xlane.xlu0 %1666
    %v1668 = vmul.f32 %v1667, %v184
    %v1669 = vsub.f32 %v1664, %v1668
    %v1670 = vmul.f32 %v1669, %v1669
    %v1671 = vsel %vm174, %v1670, 0.0
    %1672 = vadd.xlane.f32.xlu0 %v1671
    %v1673 = vpop.xlane.xlu0 %1672
    %v1674 = vmul.f32 %v1673, %v184
    %v1675 = vadd.f32 %v1674, 1e-05
    %v1676 = vrsqrt.pop %v1675
    %v1677 = vmul.f32 %v1676, %v1675
    %v1678 = vmul.f32 %v1677, %v1676
    %v1679 = vmul.f32 0.5, %v1678
    %v1680 = vsub.f32 1.5, %v1679
    %v1681 = vmul.f32 %v1676, %v1680
    %vm1682 = vweird.f32 %v1675
    %vm1683 = vweird.f32 %v1676
    %vm1684 = vmor %vm1682, %vm1683
    %v1685 = vsel %vm1684, %v1676, %v1681
    %v1686 = vmul.f32 %v1669, %v1685
    %v1687 = vperm.slane %v54, 2
    %v1688 = vmul.f32 %v1686, %v1687
    %v1689 = vperm.slane %v54, 3
    %v1690 = vadd.f32 %v1688, %v1689
    %v1691 = vld [vmem:[%s8] sm:$0xff]
    %v1692 = vld [vmem:[%s8 + $0x8] sm:$0xff]
    %v1693 = vld [vmem:[%s8 + $0x10] sm:$0xff]
    %v1694 = vld [vmem:[%s8 + $0x18] sm:$0xff]
    %v1695 = vperm.slane %v54, 4
    %v1697 = vsel %vm96, %v1690, 0
    %1699 = vmatpush.msra.mxu0 0.0
    %1700 = vmatpush.msra.mxu0 0.0
    %1701 = vmatpush.msra.mxu0 0.0
    %1702 = vmatpush.msra.mxu0 0.0
    %1703 = vmatpush.msra.mxu0 0.0
    %1704 = vmatpush.msra.mxu0 0.0
    %1705 = vmatpush.msra.mxu0 0.0
    %1706 = vmatpush.msra.mxu0 0.0
    %1707 = vmatpush.msra.mxu0 0.0
    %1708 = vmatpush.msra.mxu0 0.0
    %1709 = vmatpush.msra.mxu0 0.0
    %1710 = vmatpush.msra.mxu0 0.0
    %1711 = vmatpush.msra.mxu0 %v1694
    %1712 = vmatpush.msra.mxu0 %v1693
    %1713 = vmatpush.msra.mxu0 %v1692
    %1714 = vmatpush.msra.mxu0 %v1691
    %1715 = vmatmul.f32.gmra.mxu0 %v1697
    %v1716 = vpop.f32.mrf.mxu0
    %v1717 = vadd.f32 %v1695, %v1716
    %1718 = vdwg.mxu0
    %1719 = vst.msk [vmem:[#allocation3] sm:$0x3f] %vm174, %v1717
    %v1720 = vld [vmem:[%s9] sm:$0xff]
    %v1721 = vld [vmem:[%s9 + $0x8] sm:$0x1]
    %v1722 = vadd.f32 %v1717, %v1720
    %vm1723 = vcmask 253952
    %1724 = vst.msk [vmem:[#allocation4] sm:$0x1] %vm1723, %v1722
    %s1725 = sld [smem:[#allocation7]]
    %p1726 = scmp.lt.s32.totalorder %s1725, 2
    %s1727 = scalar_select %p1726, 1, 0
    %s1728 = scvt.s32.f32 %s1727
    %s1729 = sadd.s32 %s1725, 1
    %s1730 = scalar_select %p1726, %s1729, 0
    %s1731 = scalar_lea.vmem [#allocation3], %s1730
    %v1732 = vld [vmem:[%s1731] sm:$0x1]
    %v1733 = vstv %s1728
    %v1734 = vmul.f32 %v1732, %v1733
    %s1735 = ssub.f32 1.0, %s1728
    %v1736 = vstv %s1735
    %v1737 = vmul.f32 %v54, %v1736
    %v1739 = vrot.slane %v1737, 1
    %v1741 = vadd.f32 %v1734, %v1739
    %v1743 = vrot.slane %v1720, 1
    %v1745 = vadd.f32 %v1741, %v1743
    %1746 = vst.msk [vmem:[#allocation4 + $0x1] sm:$0x1] %vm1723, %v1745
    %s1747 = sld [smem:[#allocation7 + $0x1]]
    %p1748 = scmp.lt.s32.totalorder %s1747, 2
    %s1749 = scalar_select %p1748, 1, 0
    %s1750 = scvt.s32.f32 %s1749
    %s1751 = sadd.s32 %s1747, 1
    %s1752 = scalar_select %p1748, %s1751, 0
    %s1753 = scalar_lea.vmem [#allocation3], %s1752
    %v1754 = vld [vmem:[%s1753] sm:$0x1]
    %v1755 = vstv %s1750
    %v1756 = vmul.f32 %v1754, %v1755
    %s1757 = ssub.f32 1.0, %s1750
    %v1758 = vstv %s1757
    %v1759 = vmul.f32 %v54, %v1758
    %v1761 = vrot.slane %v1759, 1
    %v1763 = vadd.f32 %v1756, %v1761
    %v1764 = vrot.slane %v1720, 2
    %v1766 = vadd.f32 %v1763, %v1764
    %1767 = vst.msk [vmem:[#allocation4 + $0x2] sm:$0x1] %vm1723, %v1766
    %s1768 = sld [smem:[#allocation7 + $0x2]]
    %p1769 = scmp.lt.s32.totalorder %s1768, 2
    %s1770 = scalar_select %p1769, 1, 0
    %s1771 = scvt.s32.f32 %s1770
    %s1772 = sadd.s32 %s1768, 1
    %s1773 = scalar_select %p1769, %s1772, 0
    %s1774 = scalar_lea.vmem [#allocation3], %s1773
    %v1775 = vld [vmem:[%s1774] sm:$0x1]
    %v1776 = vstv %s1771
    %v1777 = vmul.f32 %v1775, %v1776
    %s1778 = ssub.f32 1.0, %s1771
    %v1779 = vstv %s1778
    %v1780 = vmul.f32 %v54, %v1779
    %v1782 = vrot.slane %v1780, 1
    %v1784 = vadd.f32 %v1777, %v1782
    %v1785 = vrot.slane %v1720, 3
    %v1787 = vadd.f32 %v1784, %v1785
    %1788 = vst.msk [vmem:[#allocation4 + $0x3] sm:$0x1] %vm1723, %v1787
    %s1789 = sld [smem:[#allocation7 + $0x3]]
    %p1790 = scmp.lt.s32.totalorder %s1789, 2
    %s1791 = scalar_select %p1790, 1, 0
    %s1792 = scvt.s32.f32 %s1791
    %s1793 = sadd.s32 %s1789, 1
    %s1794 = scalar_select %p1790, %s1793, 0
    %s1795 = scalar_lea.vmem [#allocation3], %s1794
    %v1796 = vld [vmem:[%s1795] sm:$0x1]
    %v1797 = vstv %s1792
    %v1798 = vmul.f32 %v1796, %v1797
    %s1799 = ssub.f32 1.0, %s1792
    %v1800 = vstv %s1799
    %v1801 = vmul.f32 %v54, %v1800
    %v1803 = vrot.slane %v1801, 1
    %v1805 = vadd.f32 %v1798, %v1803
    %v1806 = vrot.slane %v1720, 4
    %v1808 = vadd.f32 %v1805, %v1806
    %1809 = vst.msk [vmem:[#allocation4 + $0x4] sm:$0x1] %vm1723, %v1808
    %s1810 = sld [smem:[#allocation7 + $0x4]]
    %p1811 = scmp.lt.s32.totalorder %s1810, 2
    %s1812 = scalar_select %p1811, 1, 0
    %s1813 = scvt.s32.f32 %s1812
    %s1814 = sadd.s32 %s1810, 1
    %s1815 = scalar_select %p1811, %s1814, 0
    %s1816 = scalar_lea.vmem [#allocation3], %s1815
    %v1817 = vld [vmem:[%s1816] sm:$0x1]
    %v1818 = vstv %s1813
    %v1819 = vmul.f32 %v1817, %v1818
    %s1820 = ssub.f32 1.0, %s1813
    %v1821 = vstv %s1820
    %v1822 = vmul.f32 %v54, %v1821
    %v1824 = vrot.slane %v1822, 1
    %v1826 = vadd.f32 %v1819, %v1824
    %v1827 = vrot.slane %v1720, 5
    %v1829 = vadd.f32 %v1826, %v1827
    %1830 = vst.msk [vmem:[#allocation4 + $0x5] sm:$0x1] %vm1723, %v1829
    %s1831 = sld [smem:[#allocation7 + $0x5]]
    %p1832 = scmp.lt.s32.totalorder %s1831, 2
    %s1833 = scalar_select %p1832, 1, 0
    %s1834 = scvt.s32.f32 %s1833
    %s1835 = sadd.s32 %s1831, 1
    %s1836 = scalar_select %p1832, %s1835, 0
    %s1837 = scalar_lea.vmem [#allocation3], %s1836
    %v1838 = vld [vmem:[%s1837] sm:$0x1]
    %v1839 = vstv %s1834
    %v1840 = vmul.f32 %v1838, %v1839
    %s1841 = ssub.f32 1.0, %s1834
    %v1842 = vstv %s1841
    %v1843 = vmul.f32 %v54, %v1842
    %v1845 = vrot.slane %v1843, 1
    %v1847 = vadd.f32 %v1840, %v1845
    %v1848 = vrot.slane %v1720, 6
    %v1850 = vadd.f32 %v1847, %v1848
    %1851 = vst.msk [vmem:[#allocation4 + $0x6] sm:$0x1] %vm1723, %v1850
    %s1852 = sld [smem:[#allocation7 + $0x6]]
    %p1853 = scmp.lt.s32.totalorder %s1852, 2
    %s1854 = scalar_select %p1853, 1, 0
    %s1855 = scvt.s32.f32 %s1854
    %s1856 = sadd.s32 %s1852, 1
    %s1857 = scalar_select %p1853, %s1856, 0
    %s1858 = scalar_lea.vmem [#allocation3], %s1857
    %v1859 = vld [vmem:[%s1858] sm:$0x1]
    %v1860 = vstv %s1855
    %v1861 = vmul.f32 %v1859, %v1860
    %s1862 = ssub.f32 1.0, %s1855
    %v1863 = vstv %s1862
    %v1864 = vmul.f32 %v54, %v1863
    %v1866 = vrot.slane %v1864, 1
    %v1868 = vadd.f32 %v1861, %v1866
    %v1869 = vrot.slane %v1720, 7
    %v1871 = vadd.f32 %v1868, %v1869
    %1872 = vst.msk [vmem:[#allocation4 + $0x7] sm:$0x1] %vm1723, %v1871
    %s1873 = sld [smem:[#allocation7 + $0x7]]
    %p1874 = scmp.lt.s32.totalorder %s1873, 2
    %s1875 = scalar_select %p1874, 1, 0
    %s1876 = scvt.s32.f32 %s1875
    %s1877 = sadd.s32 %s1873, 1
    %s1878 = scalar_select %p1874, %s1877, 0
    %s1879 = scalar_lea.vmem [#allocation3], %s1878
    %v1880 = vld [vmem:[%s1879] sm:$0x1]
    %v1881 = vstv %s1876
    %v1882 = vmul.f32 %v1880, %v1881
    %s1883 = ssub.f32 1.0, %s1876
    %v1884 = vstv %s1883
    %v1885 = vmul.f32 %v54, %v1884
    %v1887 = vrot.slane %v1885, 1
    %v1889 = vadd.f32 %v1882, %v1887
    %v1890 = vadd.f32 %v1889, %v1721
    %1891 = vst.msk [vmem:[#allocation4 + $0x8] sm:$0x1] %vm1723, %v1890
    %v1892 = vadd.f32 %v1717, %v1827
    %vm1893 = vcmask 257027
    %1894 = vst.msk [vmem:[#allocation4 + $0x6] sm:$0x8] %vm1893, %v1892
    %s1895 = sld [smem:[#allocation7 + $0x80]]
    %p1896 = scmp.lt.s32.totalorder %s1895, 2
    %s1897 = scalar_select %p1896, 1, 0
    %s1898 = scvt.s32.f32 %s1897
    %s1899 = sadd.s32 %s1895, 1
    %s1900 = scalar_select %p1896, %s1899, 0
    %s1901 = sadd.s32 %s1900, 3
    %s1902 = scalar_lea.vmem [#allocation3], %s1901
    %v1903 = vld [vmem:[%s1902] sm:$0x1]
    %v1904 = vstv %s1898
    %v1905 = vmul.f32 %v1903, %v1904
    %s1906 = ssub.f32 1.0, %s1898
    %v1907 = vstv %s1906
    %v1908 = vmul.f32 %v54, %v1907
    %v1910 = vrot.slane %v1908, 1
    %v1912 = vadd.f32 %v1905, %v1910
    %v1913 = vadd.f32 %v1912, %v1743
    %1914 = vst.msk [vmem:[#allocation4 + $0xa] sm:$0x1] %vm1723, %v1913
    %s1915 = sld [smem:[#allocation7 + $0x81]]
    %p1916 = scmp.lt.s32.totalorder %s1915, 2
    %s1917 = scalar_select %p1916, 1, 0
    %s1918 = scvt.s32.f32 %s1917
    %s1919 = sadd.s32 %s1915, 1
    %s1920 = scalar_select %p1916, %s1919, 0
    %s1921 = sadd.s32 %s1920, 3
    %s1922 = scalar_lea.vmem [#allocation3], %s1921
    %v1923 = vld [vmem:[%s1922] sm:$0x1]
    %v1924 = vstv %s1918
    %v1925 = vmul.f32 %v1923, %v1924
    %s1926 = ssub.f32 1.0, %s1918
    %v1927 = vstv %s1926
    %v1928 = vmul.f32 %v54, %v1927
    %v1930 = vrot.slane %v1928, 1
    %v1932 = vadd.f32 %v1925, %v1930
    %v1933 = vadd.f32 %v1932, %v1764
    %1934 = vst.msk [vmem:[#allocation4 + $0xb] sm:$0x1] %vm1723, %v1933
    %s1935 = sld [smem:[#allocation7 + $0x82]]
    %p1936 = scmp.lt.s32.totalorder %s1935, 2
    %s1937 = scalar_select %p1936, 1, 0
    %s1938 = scvt.s32.f32 %s1937
    %s1939 = sadd.s32 %s1935, 1
    %s1940 = scalar_select %p1936, %s1939, 0
    %s1941 = sadd.s32 %s1940, 3
    %s1942 = scalar_lea.vmem [#allocation3], %s1941
    %v1943 = vld [vmem:[%s1942] sm:$0x1]
    %v1944 = vstv %s1938
    %v1945 = vmul.f32 %v1943, %v1944
    %s1946 = ssub.f32 1.0, %s1938
    %v1947 = vstv %s1946
    %v1948 = vmul.f32 %v54, %v1947
    %v1950 = vrot.slane %v1948, 1
    %v1952 = vadd.f32 %v1945, %v1950
    %v1953 = vadd.f32 %v1952, %v1785
    %1954 = vst.msk [vmem:[#allocation4 + $0xc] sm:$0x1] %vm1723, %v1953
    %s1955 = sld [smem:[#allocation7 + $0x83]]
    %p1956 = scmp.lt.s32.totalorder %s1955, 2
    %s1957 = scalar_select %p1956, 1, 0
    %s1958 = scvt.s32.f32 %s1957
    %s1959 = sadd.s32 %s1955, 1
    %s1960 = scalar_select %p1956, %s1959, 0
    %s1961 = sadd.s32 %s1960, 3
    %s1962 = scalar_lea.vmem [#allocation3], %s1961
    %v1963 = vld [vmem:[%s1962] sm:$0x1]
    %v1964 = vstv %s1958
    %v1965 = vmul.f32 %v1963, %v1964
    %s1966 = ssub.f32 1.0, %s1958
    %v1967 = vstv %s1966
    %v1968 = vmul.f32 %v54, %v1967
    %v1970 = vrot.slane %v1968, 1
    %v1972 = vadd.f32 %v1965, %v1970
    %v1973 = vadd.f32 %v1972, %v1806
    %1974 = vst.msk [vmem:[#allocation4 + $0xd] sm:$0x1] %vm1723, %v1973
    %s1975 = sld [smem:[#allocation7 + $0x84]]
    %p1976 = scmp.lt.s32.totalorder %s1975, 2
    %s1977 = scalar_select %p1976, 1, 0
    %s1978 = scvt.s32.f32 %s1977
    %s1979 = sadd.s32 %s1975, 1
    %s1980 = scalar_select %p1976, %s1979, 0
    %s1981 = sadd.s32 %s1980, 3
    %s1982 = scalar_lea.vmem [#allocation3], %s1981
    %v1983 = vld [vmem:[%s1982] sm:$0x1]
    %v1984 = vstv %s1978
    %v1985 = vmul.f32 %v1983, %v1984
    %s1986 = ssub.f32 1.0, %s1978
    %v1987 = vstv %s1986
    %v1988 = vmul.f32 %v54, %v1987
    %v1990 = vrot.slane %v1988, 1
    %v1992 = vadd.f32 %v1985, %v1990
    %v1993 = vadd.f32 %v1992, %v1827
    %1994 = vst.msk [vmem:[#allocation4 + $0xe] sm:$0x1] %vm1723, %v1993
    %s1995 = sld [smem:[#allocation7 + $0x85]]
    %p1996 = scmp.lt.s32.totalorder %s1995, 2
    %s1997 = scalar_select %p1996, 1, 0
    %s1998 = scvt.s32.f32 %s1997
    %s1999 = sadd.s32 %s1995, 1
    %s2000 = scalar_select %p1996, %s1999, 0
    %s2001 = sadd.s32 %s2000, 3
    %s2002 = scalar_lea.vmem [#allocation3], %s2001
    %v2003 = vld [vmem:[%s2002] sm:$0x1]
    %v2004 = vstv %s1998
    %v2005 = vmul.f32 %v2003, %v2004
    %s2006 = ssub.f32 1.0, %s1998
    %v2007 = vstv %s2006
    %v2008 = vmul.f32 %v54, %v2007
    %v2010 = vrot.slane %v2008, 1
    %v2012 = vadd.f32 %v2005, %v2010
    %v2013 = vadd.f32 %v2012, %v1848
    %2014 = vst.msk [vmem:[#allocation4 + $0xf] sm:$0x1] %vm1723, %v2013
    %s2015 = sld [smem:[#allocation7 + $0x86]]
    %p2016 = scmp.lt.s32.totalorder %s2015, 2
    %s2017 = scalar_select %p2016, 1, 0
    %s2018 = scvt.s32.f32 %s2017
    %s2019 = sadd.s32 %s2015, 1
    %s2020 = scalar_select %p2016, %s2019, 0
    %s2021 = sadd.s32 %s2020, 3
    %s2022 = scalar_lea.vmem [#allocation3], %s2021
    %v2023 = vld [vmem:[%s2022] sm:$0x1]
    %v2024 = vstv %s2018
    %v2025 = vmul.f32 %v2023, %v2024
    %s2026 = ssub.f32 1.0, %s2018
    %v2027 = vstv %s2026
    %v2028 = vmul.f32 %v54, %v2027
    %v2030 = vrot.slane %v2028, 1
    %v2032 = vadd.f32 %v2025, %v2030
    %v2033 = vadd.f32 %v2032, %v1869
    %2034 = vst.msk [vmem:[#allocation4 + $0x10] sm:$0x1] %vm1723, %v2033
    %s2035 = sld [smem:[#allocation7 + $0x87]]
    %p2036 = scmp.lt.s32.totalorder %s2035, 2
    %s2037 = scalar_select %p2036, 1, 0
    %s2038 = scvt.s32.f32 %s2037
    %s2039 = sadd.s32 %s2035, 1
    %s2040 = scalar_select %p2036, %s2039, 0
    %s2041 = sadd.s32 %s2040, 3
    %s2042 = scalar_lea.vmem [#allocation3], %s2041
    %v2043 = vld [vmem:[%s2042] sm:$0x1]
    %v2044 = vstv %s2038
    %v2045 = vmul.f32 %v2043, %v2044
    %s2046 = ssub.f32 1.0, %s2038
    %v2047 = vstv %s2046
    %v2048 = vmul.f32 %v54, %v2047
    %v2050 = vrot.slane %v2048, 1
    %v2052 = vadd.f32 %v2045, %v2050
    %v2053 = vadd.f32 %v2052, %v1721
    %2054 = vst.msk [vmem:[#allocation4 + $0x11] sm:$0x1] %vm1723, %v2053
    %v2055 = vld [vmem:[#allocation4] sm:$0xff]
    %v2056 = vld [vmem:[#allocation4 + $0x8] sm:$0xff]
    %v2057 = vld [vmem:[#allocation4 + $0x10] sm:$0x3]
    %v2058 = vld [vmem:[%s6] sm:$0x1]
    %v2059 = vld [vmem:[%s6 + $0x1] sm:$0x1]
    %v2060 = vld [vmem:[%s6 + $0x2] sm:$0x1]
    %v2061 = vld [vmem:[%s6 + $0x3] sm:$0x1]
    %v2062 = vld [vmem:[%s6 + $0x4] sm:$0x1]
    %v2063 = vld [vmem:[%s6 + $0x5] sm:$0x1]
    %v2064 = vld [vmem:[%s6 + $0x6] sm:$0x1]
    %v2065 = vld [vmem:[%s6 + $0x7] sm:$0x1]
    %v2066 = vld [vmem:[%s6 + $0x8] sm:$0xff]
    %v2067 = vld [vmem:[%s6 + $0x10] sm:$0xff]
    %v2068 = vld [vmem:[%s6 + $0x18] sm:$0xff]
    %v2069 = vld [vmem:[%s6 + $0x20] sm:$0xff]
    %v2070 = vld [vmem:[%s6 + $0x28] sm:$0xff]
    %v2071 = vld [vmem:[%s6 + $0x30] sm:$0xff]
    %v2072 = vld [vmem:[%s6 + $0x38] sm:$0xff]
    %v2073 = vld [vmem:[%s6 + $0x40] sm:$0xff]
    %v2074 = vld [vmem:[%s6 + $0x48] sm:$0xff]
    %v2075 = vld [vmem:[%s6 + $0x50] sm:$0xff]
    %v2076 = vld [vmem:[%s6 + $0x58] sm:$0xff]
    %v2077 = vld [vmem:[%s6 + $0x60] sm:$0xff]
    %v2078 = vld [vmem:[%s6 + $0x68] sm:$0xff]
    %v2079 = vld [vmem:[%s6 + $0x70] sm:$0xff]
    %v2080 = vld [vmem:[%s6 + $0x78] sm:$0xff]
    %v2081 = vld [vmem:[%s6 + $0x80] sm:$0xff]
    %v2082 = vld [vmem:[%s6 + $0x88] sm:$0xff]
    %v2083 = vld [vmem:[%s6 + $0x90] sm:$0xff]
    %v2084 = vld [vmem:[%s6 + $0x98] sm:$0xff]
    %v2085 = vld [vmem:[%s6 + $0xa0] sm:$0xff]
    %v2086 = vld [vmem:[%s6 + $0xa8] sm:$0xff]
    %v2087 = vld [vmem:[%s6 + $0xb0] sm:$0xff]
    %v2088 = vld [vmem:[%s6 + $0xb8] sm:$0xff]
    %v2089 = vld [vmem:[%s6 + $0xc0] sm:$0xff]
    %v2090 = vld [vmem:[%s6 + $0xc8] sm:$0xff]
    %v2091 = vld [vmem:[%s6 + $0xd0] sm:$0xff]
    %v2092 = vld [vmem:[%s6 + $0xd8] sm:$0xff]
    %v2093 = vld [vmem:[%s6 + $0xe0] sm:$0xff]
    %v2094 = vsel %vm96, %v2055, 0.0
    %2095 = vadd.xlane.f32.xlu0 %v2094
    %v2096 = vpop.xlane.xlu0 %2095
    %v2097 = vsel %vm96, %v2056, 0.0
    %2098 = vadd.xlane.f32.xlu0 %v2097
    %v2099 = vpop.xlane.xlu0 %2098
    %vm2100 = vcmask 254976
    %v2101 = vsel %vm2100, %v2057, 0.0
    %2102 = vadd.xlane.f32.xlu0 %v2101
    %v2103 = vpop.xlane.xlu0 %2102
    %v2104 = vmul.f32 %v2096, %v184
    %v2105 = vmul.f32 %v2099, %v184
    %v2106 = vmul.f32 %v2103, %v184
    %v2107 = vsub.f32 %v2055, %v2104
    %v2108 = vsub.f32 %v2056, %v2105
    %v2109 = vsub.f32 %v2057, %v2106
    %v2110 = vmul.f32 %v2107, %v2107
    %v2111 = vmul.f32 %v2108, %v2108
    %v2112 = vmul.f32 %v2109, %v2109
    %v2113 = vsel %vm96, %v2110, 0.0
    %2114 = vadd.xlane.f32.xlu0 %v2113
    %v2115 = vpop.xlane.xlu0 %2114
    %v2116 = vsel %vm96, %v2111, 0.0
    %2117 = vadd.xlane.f32.xlu0 %v2116
    %v2118 = vpop.xlane.xlu0 %2117
    %v2119 = vsel %vm2100, %v2112, 0.0
    %2120 = vadd.xlane.f32.xlu0 %v2119
    %v2121 = vpop.xlane.xlu0 %2120
    %v2122 = vmul.f32 %v2115, %v184
    %v2123 = vmul.f32 %v2118, %v184
    %v2124 = vmul.f32 %v2121, %v184
    %v2125 = vadd.f32 %v2122, 1e-05
    %v2126 = vadd.f32 %v2123, 1e-05
    %v2127 = vadd.f32 %v2124, 1e-05
    %v2128 = vrsqrt.pop %v2125
    %v2129 = vmul.f32 %v2128, %v2125
    %v2130 = vmul.f32 %v2129, %v2128
    %v2131 = vmul.f32 0.5, %v2130
    %v2132 = vsub.f32 1.5, %v2131
    %v2133 = vmul.f32 %v2128, %v2132
    %vm2134 = vweird.f32 %v2125
    %vm2135 = vweird.f32 %v2128
    %vm2136 = vmor %vm2134, %vm2135
    %v2137 = vsel %vm2136, %v2128, %v2133
    %v2138 = vrsqrt.pop %v2126
    %v2139 = vmul.f32 %v2138, %v2126
    %v2140 = vmul.f32 %v2139, %v2138
    %v2141 = vmul.f32 0.5, %v2140
    %v2142 = vsub.f32 1.5, %v2141
    %v2143 = vmul.f32 %v2138, %v2142
    %vm2144 = vweird.f32 %v2126
    %vm2145 = vweird.f32 %v2138
    %vm2146 = vmor %vm2144, %vm2145
    %v2147 = vsel %vm2146, %v2138, %v2143
    %v2148 = vrsqrt.pop %v2127
    %v2149 = vmul.f32 %v2148, %v2127
    %v2150 = vmul.f32 %v2149, %v2148
    %v2151 = vmul.f32 0.5, %v2150
    %v2152 = vsub.f32 1.5, %v2151
    %v2153 = vmul.f32 %v2148, %v2152
    %vm2154 = vweird.f32 %v2127
    %vm2155 = vweird.f32 %v2148
    %vm2156 = vmor %vm2154, %vm2155
    %v2157 = vsel %vm2156, %v2148, %v2153
    %v2158 = vmul.f32 %v2107, %v2137
    %v2159 = vmul.f32 %v2108, %v2147
    %v2160 = vmul.f32 %v2109, %v2157
    %v2161 = vperm.slane %v2058, 0
    %v2162 = vmul.f32 %v2158, %v2161
    %v2163 = vmul.f32 %v2159, %v2161
    %v2164 = vmul.f32 %v2160, %v2161
    %v2165 = vperm.slane %v2059, 0
    %v2166 = vadd.f32 %v2162, %v2165
    %v2167 = vadd.f32 %v2163, %v2165
    %v2168 = vadd.f32 %v2164, %v2165
    %v2169 = vperm.slane %v2060, 0
    %v2171 = vsel %vm96, %v2166, 0
    %v2174 = vsel %vm96, %v2167, 0
    %v2177 = vsel %vm96, %v2168, 0
    %2179 = vmatpush.msra.mxu0 0.0
    %2180 = vmatpush.msra.mxu0 0.0
    %2181 = vmatpush.msra.mxu0 0.0
    %2182 = vmatpush.msra.mxu0 0.0
    %2183 = vmatpush.msra.mxu0 0.0
    %2184 = vmatpush.msra.mxu0 0.0
    %2185 = vmatpush.msra.mxu0 0.0
    %2186 = vmatpush.msra.mxu0 0.0
    %2187 = vmatpush.msra.mxu0 0.0
    %2188 = vmatpush.msra.mxu0 0.0
    %2189 = vmatpush.msra.mxu0 0.0
    %2190 = vmatpush.msra.mxu0 0.0
    %2191 = vmatpush.msra.mxu0 %v2069
    %2192 = vmatpush.msra.mxu0 %v2068
    %2193 = vmatpush.msra.mxu0 %v2067
    %2194 = vmatpush.msra.mxu0 %v2066
    %2195 = vmatmul.f32.gmra.mxu0 %v2171
    %v2196 = vpop.f32.mrf.mxu0
    %v2197 = vadd.f32 %v2169, %v2196
    %2198 = vmatmul.f32.gmra.mxu0 %v2174
    %v2199 = vpop.f32.mrf.mxu0
    %v2200 = vadd.f32 %v2169, %v2199
    %2201 = vmatmul.f32.gmra.mxu0 %v2177
    %v2202 = vpop.f32.mrf.mxu0
    %v2203 = vadd.f32 %v2169, %v2202
    %2204 = vdwg.mxu0
    %v2205 = vmul.f32 %v2197, 0.35355338
    %v2206 = vmul.f32 %v2200, 0.35355338
    %2209 = vrot.lane.b32.xlu0 %v2197, 96
    %v2210 = vpop.permute.xlu0 %2209
    %2211 = vrot.lane.b32.xlu0 %v2200, 96
    %v2212 = vpop.permute.xlu0 %2211
    %v2214 = vsel %vm236, %v2205, 0
    %v2217 = vsel %vm236, %v2206, 0
    %v2219 = vsel %vm236, %v2210, 0
    %v2221 = vsel %vm236, %v2212, 0
    %2223 = vmatpush.xpose.msra.mxu0 0.0
    %2224 = vmatpush.xpose.msra.mxu0 0.0
    %2225 = vmatpush.xpose.msra.mxu0 0.0
    %2226 = vmatpush.xpose.msra.mxu0 0.0
    %2227 = vmatpush.xpose.msra.mxu0 0.0
    %2228 = vmatpush.xpose.msra.mxu0 0.0
    %2229 = vmatpush.xpose.msra.mxu0 0.0
    %2230 = vmatpush.xpose.msra.mxu0 0.0
    %2231 = vmatpush.xpose.msra.mxu0 0.0
    %2232 = vmatpush.xpose.msra.mxu0 0.0
    %2233 = vmatpush.xpose.msra.mxu0 0.0
    %2234 = vmatpush.xpose.msra.mxu0 0.0
    %2235 = vmatpush.xpose.msra.mxu0 0.0
    %2236 = vmatpush.xpose.msra.mxu0 0.0
    %2237 = vmatpush.xpose.msra.mxu0 %v2221
    %2238 = vmatpush.xpose.msra.mxu0 %v2219
    %2239 = vmatmul.f32.gmra.mxu0 %v2214
    %v2240 = vpop.f32.mrf.mxu0
    %v2241 = vadd.f32 0.0, %v2240
    %2242 = vmatmul.f32.gmra.mxu0 %v2217
    %v2243 = vpop.f32.mrf.mxu0
    %v2244 = vadd.f32 0.0, %v2243
    %2245 = vdwg.mxu0
    %vm2246 = vcmask 72704
    %v2247 = vsel %vm2246, %v2241, -inf
    %2248 = vmax.xlane.f32.xlu0 %v2247
    %v2249 = vpop.xlane.xlu0 %2248
    %vm2250 = vcmask 65536
    %v2251 = vsel %vm2250, %v2244, -inf
    %2252 = vmax.xlane.f32.xlu0 %v2251
    %v2253 = vpop.xlane.xlu0 %2252
    %v2254 = vsub.f32 %v2241, %v2249
    %v2255 = vsub.f32 %v2244, %v2253
    %v2256 = vmul.f32 %v2254, 1.442695
    %v2257 = vpow.pop %v2256
    %v2258 = vmul.f32 %v2255, 1.442695
    %v2259 = vpow.pop %v2258
    %v2260 = vsel %vm2246, %v2257, 0.0
    %2261 = vadd.xlane.f32.xlu0 %v2260
    %v2262 = vpop.xlane.xlu0 %2261
    %v2263 = vsel %vm2250, %v2259, 0.0
    %2264 = vadd.xlane.f32.xlu0 %v2263
    %v2265 = vpop.xlane.xlu0 %2264
    %v2266 = vrcp.pop %v2262
    %v2267 = vrcp.pop %v2265
    %v2268 = vmul.f32 %v2257, %v2266
    %v2269 = vmul.f32 %v2259, %v2267
    %2270 = vrot.lane.b32.xlu0 %v2197, 64
    %v2271 = vpop.permute.xlu0 %2270
    %2272 = vrot.lane.b32.xlu0 %v2200, 64
    %v2273 = vpop.permute.xlu0 %2272
    %v2276 = vsel %vm2246, %v2268, 0
    %v2279 = vsel %vm2246, %v2269, 0
    %v2281 = vsel %vm128, %v2273, 0
    %2283 = vmatpush.msra.mxu0 0.0
    %2284 = vmatpush.msra.mxu0 0.0
    %2285 = vmatpush.msra.mxu0 0.0
    %2286 = vmatpush.msra.mxu0 0.0
    %2287 = vmatpush.msra.mxu0 0.0
    %2288 = vmatpush.msra.mxu0 0.0
    %2289 = vmatpush.msra.mxu0 0.0
    %2290 = vmatpush.msra.mxu0 0.0
    %2291 = vmatpush.msra.mxu0 0.0
    %2292 = vmatpush.msra.mxu0 0.0
    %2293 = vmatpush.msra.mxu0 0.0
    %2294 = vmatpush.msra.mxu0 0.0
    %2295 = vmatpush.msra.mxu0 0.0
    %2296 = vmatpush.msra.mxu0 0.0
    %2297 = vmatpush.msra.mxu0 %v2281
    %2298 = vmatpush.msra.mxu0 %v2271
    %2299 = vmatmul.f32.gmra.mxu0 %v2276
    %v2300 = vpop.f32.mrf.mxu0
    %v2301 = vadd.f32 0.0, %v2300
    %2302 = vmatmul.f32.gmra.mxu0 %v2279
    %v2303 = vpop.f32.mrf.mxu0
    %v2304 = vadd.f32 0.0, %v2303
    %2305 = vdwg.mxu0
    %2306 = vrot.lane.b32.xlu0 %v2205, 120
    %v2307 = vpop.permute.xlu0 %2306
    %2308 = vrot.lane.b32.xlu0 %v2206, 120
    %v2309 = vpop.permute.xlu0 %2308
    %2310 = vrot.lane.b32.xlu0 %v2197, 88
    %v2311 = vpop.permute.xlu0 %2310
    %2312 = vrot.lane.b32.xlu0 %v2200, 88
    %v2313 = vpop.permute.xlu0 %2312
    %v2314 = vsel %vm236, %v2307, 0
    %v2316 = vsel %vm236, %v2309, 0
    %v2318 = vsel %vm236, %v2311, 0
    %v2320 = vsel %vm236, %v2313, 0
    %2322 = vmatpush.xpose.msra.mxu0 0.0
    %2323 = vmatpush.xpose.msra.mxu0 0.0
    %2324 = vmatpush.xpose.msra.mxu0 0.0
    %2325 = vmatpush.xpose.msra.mxu0 0.0
    %2326 = vmatpush.xpose.msra.mxu0 0.0
    %2327 = vmatpush.xpose.msra.mxu0 0.0
    %2328 = vmatpush.xpose.msra.mxu0 0.0
    %2329 = vmatpush.xpose.msra.mxu0 0.0
    %2330 = vmatpush.xpose.msra.mxu0 0.0
    %2331 = vmatpush.xpose.msra.mxu0 0.0
    %2332 = vmatpush.xpose.msra.mxu0 0.0
    %2333 = vmatpush.xpose.msra.mxu0 0.0
    %2334 = vmatpush.xpose.msra.mxu0 0.0
    %2335 = vmatpush.xpose.msra.mxu0 0.0
    %2336 = vmatpush.xpose.msra.mxu0 %v2320
    %2337 = vmatpush.xpose.msra.mxu0 %v2318
    %2338 = vmatmul.f32.gmra.mxu0 %v2314
    %v2339 = vpop.f32.mrf.mxu0
    %v2340 = vadd.f32 0.0, %v2339
    %2341 = vmatmul.f32.gmra.mxu0 %v2316
    %v2342 = vpop.f32.mrf.mxu0
    %v2343 = vadd.f32 0.0, %v2342
    %2344 = vdwg.mxu0
    %v2345 = vsel %vm2246, %v2340, -inf
    %2346 = vmax.xlane.f32.xlu0 %v2345
    %v2347 = vpop.xlane.xlu0 %2346
    %v2348 = vsel %vm2250, %v2343, -inf
    %2349 = vmax.xlane.f32.xlu0 %v2348
    %v2350 = vpop.xlane.xlu0 %2349
    %v2351 = vsub.f32 %v2340, %v2347
    %v2352 = vsub.f32 %v2343, %v2350
    %v2353 = vmul.f32 %v2351, 1.442695
    %v2354 = vpow.pop %v2353
    %v2355 = vmul.f32 %v2352, 1.442695
    %v2356 = vpow.pop %v2355
    %v2357 = vsel %vm2246, %v2354, 0.0
    %2358 = vadd.xlane.f32.xlu0 %v2357
    %v2359 = vpop.xlane.xlu0 %2358
    %v2360 = vsel %vm2250, %v2356, 0.0
    %2361 = vadd.xlane.f32.xlu0 %v2360
    %v2362 = vpop.xlane.xlu0 %2361
    %v2363 = vrcp.pop %v2359
    %v2364 = vrcp.pop %v2362
    %v2365 = vmul.f32 %v2354, %v2363
    %v2366 = vmul.f32 %v2356, %v2364
    %2367 = vrot.lane.b32.xlu0 %v2197, 56
    %v2368 = vpop.permute.xlu0 %2367
    %2369 = vrot.lane.b32.xlu0 %v2200, 56
    %v2370 = vpop.permute.xlu0 %2369
    %v2373 = vsel %vm2246, %v2365, 0
    %v2376 = vsel %vm2246, %v2366, 0
    %v2378 = vsel %vm128, %v2370, 0
    %2380 = vmatpush.msra.mxu0 0.0
    %2381 = vmatpush.msra.mxu0 0.0
    %2382 = vmatpush.msra.mxu0 0.0
    %2383 = vmatpush.msra.mxu0 0.0
    %2384 = vmatpush.msra.mxu0 0.0
    %2385 = vmatpush.msra.mxu0 0.0
    %2386 = vmatpush.msra.mxu0 0.0
    %2387 = vmatpush.msra.mxu0 0.0
    %2388 = vmatpush.msra.mxu0 0.0
    %2389 = vmatpush.msra.mxu0 0.0
    %2390 = vmatpush.msra.mxu0 0.0
    %2391 = vmatpush.msra.mxu0 0.0
    %2392 = vmatpush.msra.mxu0 0.0
    %2393 = vmatpush.msra.mxu0 0.0
    %2394 = vmatpush.msra.mxu0 %v2378
    %2395 = vmatpush.msra.mxu0 %v2368
    %2396 = vmatmul.f32.gmra.mxu0 %v2373
    %v2397 = vpop.f32.mrf.mxu0
    %v2398 = vadd.f32 0.0, %v2397
    %2399 = vmatmul.f32.gmra.mxu0 %v2376
    %v2400 = vpop.f32.mrf.mxu0
    %v2401 = vadd.f32 0.0, %v2400
    %2402 = vdwg.mxu0
    %2403 = vrot.lane.b32.xlu0 %v2205, 112
    %v2404 = vpop.permute.xlu0 %2403
    %2405 = vrot.lane.b32.xlu0 %v2206, 112
    %v2406 = vpop.permute.xlu0 %2405
    %2407 = vrot.lane.b32.xlu0 %v2197, 80
    %v2408 = vpop.permute.xlu0 %2407
    %2409 = vrot.lane.b32.xlu0 %v2200, 80
    %v2410 = vpop.permute.xlu0 %2409
    %v2411 = vsel %vm236, %v2404, 0
    %v2413 = vsel %vm236, %v2406, 0
    %v2415 = vsel %vm236, %v2408, 0
    %v2417 = vsel %vm236, %v2410, 0
    %2419 = vmatpush.xpose.msra.mxu0 0.0
    %2420 = vmatpush.xpose.msra.mxu0 0.0
    %2421 = vmatpush.xpose.msra.mxu0 0.0
    %2422 = vmatpush.xpose.msra.mxu0 0.0
    %2423 = vmatpush.xpose.msra.mxu0 0.0
    %2424 = vmatpush.xpose.msra.mxu0 0.0
    %2425 = vmatpush.xpose.msra.mxu0 0.0
    %2426 = vmatpush.xpose.msra.mxu0 0.0
    %2427 = vmatpush.xpose.msra.mxu0 0.0
    %2428 = vmatpush.xpose.msra.mxu0 0.0
    %2429 = vmatpush.xpose.msra.mxu0 0.0
    %2430 = vmatpush.xpose.msra.mxu0 0.0
    %2431 = vmatpush.xpose.msra.mxu0 0.0
    %2432 = vmatpush.xpose.msra.mxu0 0.0
    %2433 = vmatpush.xpose.msra.mxu0 %v2417
    %2434 = vmatpush.xpose.msra.mxu0 %v2415
    %2435 = vmatmul.f32.gmra.mxu0 %v2411
    %v2436 = vpop.f32.mrf.mxu0
    %v2437 = vadd.f32 0.0, %v2436
    %2438 = vmatmul.f32.gmra.mxu0 %v2413
    %v2439 = vpop.f32.mrf.mxu0
    %v2440 = vadd.f32 0.0, %v2439
    %2441 = vdwg.mxu0
    %v2442 = vsel %vm2246, %v2437, -inf
    %2443 = vmax.xlane.f32.xlu0 %v2442
    %v2444 = vpop.xlane.xlu0 %2443
    %v2445 = vsel %vm2250, %v2440, -inf
    %2446 = vmax.xlane.f32.xlu0 %v2445
    %v2447 = vpop.xlane.xlu0 %2446
    %v2448 = vsub.f32 %v2437, %v2444
    %v2449 = vsub.f32 %v2440, %v2447
    %v2450 = vmul.f32 %v2448, 1.442695
    %v2451 = vpow.pop %v2450
    %v2452 = vmul.f32 %v2449, 1.442695
    %v2453 = vpow.pop %v2452
    %v2454 = vsel %vm2246, %v2451, 0.0
    %2455 = vadd.xlane.f32.xlu0 %v2454
    %v2456 = vpop.xlane.xlu0 %2455
    %v2457 = vsel %vm2250, %v2453, 0.0
    %2458 = vadd.xlane.f32.xlu0 %v2457
    %v2459 = vpop.xlane.xlu0 %2458
    %v2460 = vrcp.pop %v2456
    %v2461 = vrcp.pop %v2459
    %v2462 = vmul.f32 %v2451, %v2460
    %v2463 = vmul.f32 %v2453, %v2461
    %2464 = vrot.lane.b32.xlu0 %v2197, 48
    %v2465 = vpop.permute.xlu0 %2464
    %2466 = vrot.lane.b32.xlu0 %v2200, 48
    %v2467 = vpop.permute.xlu0 %2466
    %v2470 = vsel %vm2246, %v2462, 0
    %v2473 = vsel %vm2246, %v2463, 0
    %v2475 = vsel %vm128, %v2467, 0
    %2477 = vmatpush.msra.mxu0 0.0
    %2478 = vmatpush.msra.mxu0 0.0
    %2479 = vmatpush.msra.mxu0 0.0
    %2480 = vmatpush.msra.mxu0 0.0
    %2481 = vmatpush.msra.mxu0 0.0
    %2482 = vmatpush.msra.mxu0 0.0
    %2483 = vmatpush.msra.mxu0 0.0
    %2484 = vmatpush.msra.mxu0 0.0
    %2485 = vmatpush.msra.mxu0 0.0
    %2486 = vmatpush.msra.mxu0 0.0
    %2487 = vmatpush.msra.mxu0 0.0
    %2488 = vmatpush.msra.mxu0 0.0
    %2489 = vmatpush.msra.mxu0 0.0
    %2490 = vmatpush.msra.mxu0 0.0
    %2491 = vmatpush.msra.mxu0 %v2475
    %2492 = vmatpush.msra.mxu0 %v2465
    %2493 = vmatmul.f32.gmra.mxu0 %v2470
    %v2494 = vpop.f32.mrf.mxu0
    %v2495 = vadd.f32 0.0, %v2494
    %2496 = vmatmul.f32.gmra.mxu0 %v2473
    %v2497 = vpop.f32.mrf.mxu0
    %v2498 = vadd.f32 0.0, %v2497
    %2499 = vdwg.mxu0
    %2500 = vrot.lane.b32.xlu0 %v2205, 104
    %v2501 = vpop.permute.xlu0 %2500
    %2502 = vrot.lane.b32.xlu0 %v2206, 104
    %v2503 = vpop.permute.xlu0 %2502
    %2504 = vrot.lane.b32.xlu0 %v2197, 72
    %v2505 = vpop.permute.xlu0 %2504
    %2506 = vrot.lane.b32.xlu0 %v2200, 72
    %v2507 = vpop.permute.xlu0 %2506
    %v2508 = vsel %vm236, %v2501, 0
    %v2510 = vsel %vm236, %v2503, 0
    %v2512 = vsel %vm236, %v2505, 0
    %v2514 = vsel %vm236, %v2507, 0
    %2516 = vmatpush.xpose.msra.mxu0 0.0
    %2517 = vmatpush.xpose.msra.mxu0 0.0
    %2518 = vmatpush.xpose.msra.mxu0 0.0
    %2519 = vmatpush.xpose.msra.mxu0 0.0
    %2520 = vmatpush.xpose.msra.mxu0 0.0
    %2521 = vmatpush.xpose.msra.mxu0 0.0
    %2522 = vmatpush.xpose.msra.mxu0 0.0
    %2523 = vmatpush.xpose.msra.mxu0 0.0
    %2524 = vmatpush.xpose.msra.mxu0 0.0
    %2525 = vmatpush.xpose.msra.mxu0 0.0
    %2526 = vmatpush.xpose.msra.mxu0 0.0
    %2527 = vmatpush.xpose.msra.mxu0 0.0
    %2528 = vmatpush.xpose.msra.mxu0 0.0
    %2529 = vmatpush.xpose.msra.mxu0 0.0
    %2530 = vmatpush.xpose.msra.mxu0 %v2514
    %2531 = vmatpush.xpose.msra.mxu0 %v2512
    %2532 = vmatmul.f32.gmra.mxu0 %v2508
    %v2533 = vpop.f32.mrf.mxu0
    %v2534 = vadd.f32 0.0, %v2533
    %2535 = vmatmul.f32.gmra.mxu0 %v2510
    %v2536 = vpop.f32.mrf.mxu0
    %v2537 = vadd.f32 0.0, %v2536
    %2538 = vdwg.mxu0
    %v2539 = vsel %vm2246, %v2534, -inf
    %2540 = vmax.xlane.f32.xlu0 %v2539
    %v2541 = vpop.xlane.xlu0 %2540
    %v2542 = vsel %vm2250, %v2537, -inf
    %2543 = vmax.xlane.f32.xlu0 %v2542
    %v2544 = vpop.xlane.xlu0 %2543
    %v2545 = vsub.f32 %v2534, %v2541
    %v2546 = vsub.f32 %v2537, %v2544
    %v2547 = vmul.f32 %v2545, 1.442695
    %v2548 = vpow.pop %v2547
    %v2549 = vmul.f32 %v2546, 1.442695
    %v2550 = vpow.pop %v2549
    %v2551 = vsel %vm2246, %v2548, 0.0
    %2552 = vadd.xlane.f32.xlu0 %v2551
    %v2553 = vpop.xlane.xlu0 %2552
    %v2554 = vsel %vm2250, %v2550, 0.0
    %2555 = vadd.xlane.f32.xlu0 %v2554
    %v2556 = vpop.xlane.xlu0 %2555
    %v2557 = vrcp.pop %v2553
    %v2558 = vrcp.pop %v2556
    %v2559 = vmul.f32 %v2548, %v2557
    %v2560 = vmul.f32 %v2550, %v2558
    %2561 = vrot.lane.b32.xlu0 %v2197, 40
    %v2562 = vpop.permute.xlu0 %2561
    %2563 = vrot.lane.b32.xlu0 %v2200, 40
    %v2564 = vpop.permute.xlu0 %2563
    %v2567 = vsel %vm2246, %v2559, 0
    %v2570 = vsel %vm2246, %v2560, 0
    %v2572 = vsel %vm128, %v2564, 0
    %2574 = vmatpush.msra.mxu0 0.0
    %2575 = vmatpush.msra.mxu0 0.0
    %2576 = vmatpush.msra.mxu0 0.0
    %2577 = vmatpush.msra.mxu0 0.0
    %2578 = vmatpush.msra.mxu0 0.0
    %2579 = vmatpush.msra.mxu0 0.0
    %2580 = vmatpush.msra.mxu0 0.0
    %2581 = vmatpush.msra.mxu0 0.0
    %2582 = vmatpush.msra.mxu0 0.0
    %2583 = vmatpush.msra.mxu0 0.0
    %2584 = vmatpush.msra.mxu0 0.0
    %2585 = vmatpush.msra.mxu0 0.0
    %2586 = vmatpush.msra.mxu0 0.0
    %2587 = vmatpush.msra.mxu0 0.0
    %2588 = vmatpush.msra.mxu0 %v2572
    %2589 = vmatpush.msra.mxu0 %v2562
    %2590 = vmatmul.f32.gmra.mxu0 %v2567
    %v2591 = vpop.f32.mrf.mxu0
    %v2592 = vadd.f32 0.0, %v2591
    %2593 = vmatmul.f32.gmra.mxu0 %v2570
    %v2594 = vpop.f32.mrf.mxu0
    %v2595 = vadd.f32 0.0, %v2594
    %2596 = vdwg.mxu0
    %2599 = vrot.lane.b32.xlu0 %v2398, 8
    %v2600 = vpop.permute.xlu0 %2599
    %2601 = vrot.lane.b32.xlu0 %v2401, 8
    %v2602 = vpop.permute.xlu0 %2601
    %2607 = vrot.lane.b32.xlu0 %v2495, 16
    %v2608 = vpop.permute.xlu0 %2607
    %2609 = vrot.lane.b32.xlu0 %v2498, 16
    %v2610 = vpop.permute.xlu0 %2609
    %2615 = vrot.lane.b32.xlu0 %v2592, 24
    %v2616 = vpop.permute.xlu0 %2615
    %2617 = vrot.lane.b32.xlu0 %v2595, 24
    %v2618 = vpop.permute.xlu0 %2617
    %v2621 = vsel %vm236, %v2301, %v2600
    %v2622 = vsel %vm236, %v2304, %v2602
    %v2623 = vsel %vm513, %v2621, %v2608
    %v2624 = vsel %vm513, %v2622, %v2610
    %v2625 = vsel %vm515, %v2623, %v2616
    %v2626 = vsel %vm515, %v2624, %v2618
    %v2627 = vmul.f32 %v2203, 0.35355338
    %vm2629 = vcmask 1046528
    %v2630 = vrot.slane %v2206, 1
    %v2631 = vrot.slane %v2627, 1
    %v2632 = vsel %vm2629, %v2630, %v2631
    %v2634 = vrot.slane %v2200, 1
    %v2635 = vrot.slane %v2203, 1
    %v2636 = vsel %vm2629, %v2634, %v2635
    %2637 = vrot.lane.b32.xlu0 %v2636, 96
    %v2638 = vpop.permute.xlu0 %2637
    %2639 = vrot.lane.b32.xlu0 %v2635, 96
    %v2640 = vpop.permute.xlu0 %2639
    %v2641 = vsel %vm236, %v2632, 0
    %v2643 = vsel %vm236, %v2631, 0
    %v2645 = vsel %vm236, %v2638, 0
    %v2647 = vsel %vm236, %v2640, 0
    %2649 = vmatpush.xpose.msra.mxu0 0.0
    %2650 = vmatpush.xpose.msra.mxu0 0.0
    %2651 = vmatpush.xpose.msra.mxu0 0.0
    %2652 = vmatpush.xpose.msra.mxu0 0.0
    %2653 = vmatpush.xpose.msra.mxu0 0.0
    %2654 = vmatpush.xpose.msra.mxu0 0.0
    %2655 = vmatpush.xpose.msra.mxu0 0.0
    %2656 = vmatpush.xpose.msra.mxu0 0.0
    %2657 = vmatpush.xpose.msra.mxu0 0.0
    %2658 = vmatpush.xpose.msra.mxu0 0.0
    %2659 = vmatpush.xpose.msra.mxu0 0.0
    %2660 = vmatpush.xpose.msra.mxu0 0.0
    %2661 = vmatpush.xpose.msra.mxu0 0.0
    %2662 = vmatpush.xpose.msra.mxu0 0.0
    %2663 = vmatpush.xpose.msra.mxu0 %v2647
    %2664 = vmatpush.xpose.msra.mxu0 %v2645
    %2665 = vmatmul.f32.gmra.mxu0 %v2641
    %v2666 = vpop.f32.mrf.mxu0
    %v2667 = vadd.f32 0.0, %v2666
    %2668 = vmatmul.f32.gmra.mxu0 %v2643
    %v2669 = vpop.f32.mrf.mxu0
    %v2670 = vadd.f32 0.0, %v2669
    %2671 = vdwg.mxu0
    %v2672 = vsel %vm2246, %v2667, -inf
    %2673 = vmax.xlane.f32.xlu0 %v2672
    %v2674 = vpop.xlane.xlu0 %2673
    %v2675 = vsel %vm2250, %v2670, -inf
    %2676 = vmax.xlane.f32.xlu0 %v2675
    %v2677 = vpop.xlane.xlu0 %2676
    %v2678 = vsub.f32 %v2667, %v2674
    %v2679 = vsub.f32 %v2670, %v2677
    %v2680 = vmul.f32 %v2678, 1.442695
    %v2681 = vpow.pop %v2680
    %v2682 = vmul.f32 %v2679, 1.442695
    %v2683 = vpow.pop %v2682
    %v2684 = vsel %vm2246, %v2681, 0.0
    %2685 = vadd.xlane.f32.xlu0 %v2684
    %v2686 = vpop.xlane.xlu0 %2685
    %v2687 = vsel %vm2250, %v2683, 0.0
    %2688 = vadd.xlane.f32.xlu0 %v2687
    %v2689 = vpop.xlane.xlu0 %2688
    %v2690 = vrcp.pop %v2686
    %v2691 = vrcp.pop %v2689
    %v2692 = vmul.f32 %v2681, %v2690
    %v2693 = vmul.f32 %v2683, %v2691
    %2694 = vrot.lane.b32.xlu0 %v2636, 64
    %v2695 = vpop.permute.xlu0 %2694
    %2696 = vrot.lane.b32.xlu0 %v2635, 64
    %v2697 = vpop.permute.xlu0 %2696
    %v2700 = vsel %vm2246, %v2692, 0
    %v2703 = vsel %vm2246, %v2693, 0
    %v2705 = vsel %vm128, %v2697, 0
    %2707 = vmatpush.msra.mxu0 0.0
    %2708 = vmatpush.msra.mxu0 0.0
    %2709 = vmatpush.msra.mxu0 0.0
    %2710 = vmatpush.msra.mxu0 0.0
    %2711 = vmatpush.msra.mxu0 0.0
    %2712 = vmatpush.msra.mxu0 0.0
    %2713 = vmatpush.msra.mxu0 0.0
    %2714 = vmatpush.msra.mxu0 0.0
    %2715 = vmatpush.msra.mxu0 0.0
    %2716 = vmatpush.msra.mxu0 0.0
    %2717 = vmatpush.msra.mxu0 0.0
    %2718 = vmatpush.msra.mxu0 0.0
    %2719 = vmatpush.msra.mxu0 0.0
    %2720 = vmatpush.msra.mxu0 0.0
    %2721 = vmatpush.msra.mxu0 %v2705
    %2722 = vmatpush.msra.mxu0 %v2695
    %2723 = vmatmul.f32.gmra.mxu0 %v2700
    %v2724 = vpop.f32.mrf.mxu0
    %v2725 = vadd.f32 0.0, %v2724
    %2726 = vmatmul.f32.gmra.mxu0 %v2703
    %v2727 = vpop.f32.mrf.mxu0
    %v2728 = vadd.f32 0.0, %v2727
    %2729 = vdwg.mxu0
    %2730 = vrot.lane.b32.xlu0 %v2632, 120
    %v2731 = vpop.permute.xlu0 %2730
    %2732 = vrot.lane.b32.xlu0 %v2631, 120
    %v2733 = vpop.permute.xlu0 %2732
    %2734 = vrot.lane.b32.xlu0 %v2636, 88
    %v2735 = vpop.permute.xlu0 %2734
    %2736 = vrot.lane.b32.xlu0 %v2635, 88
    %v2737 = vpop.permute.xlu0 %2736
    %v2738 = vsel %vm236, %v2731, 0
    %v2740 = vsel %vm236, %v2733, 0
    %v2742 = vsel %vm236, %v2735, 0
    %v2744 = vsel %vm236, %v2737, 0
    %2746 = vmatpush.xpose.msra.mxu0 0.0
    %2747 = vmatpush.xpose.msra.mxu0 0.0
    %2748 = vmatpush.xpose.msra.mxu0 0.0
    %2749 = vmatpush.xpose.msra.mxu0 0.0
    %2750 = vmatpush.xpose.msra.mxu0 0.0
    %2751 = vmatpush.xpose.msra.mxu0 0.0
    %2752 = vmatpush.xpose.msra.mxu0 0.0
    %2753 = vmatpush.xpose.msra.mxu0 0.0
    %2754 = vmatpush.xpose.msra.mxu0 0.0
    %2755 = vmatpush.xpose.msra.mxu0 0.0
    %2756 = vmatpush.xpose.msra.mxu0 0.0
    %2757 = vmatpush.xpose.msra.mxu0 0.0
    %2758 = vmatpush.xpose.msra.mxu0 0.0
    %2759 = vmatpush.xpose.msra.mxu0 0.0
    %2760 = vmatpush.xpose.msra.mxu0 %v2744
    %2761 = vmatpush.xpose.msra.mxu0 %v2742
    %2762 = vmatmul.f32.gmra.mxu0 %v2738
    %v2763 = vpop.f32.mrf.mxu0
    %v2764 = vadd.f32 0.0, %v2763
    %2765 = vmatmul.f32.gmra.mxu0 %v2740
    %v2766 = vpop.f32.mrf.mxu0
    %v2767 = vadd.f32 0.0, %v2766
    %2768 = vdwg.mxu0
    %v2769 = vsel %vm2246, %v2764, -inf
    %2770 = vmax.xlane.f32.xlu0 %v2769
    %v2771 = vpop.xlane.xlu0 %2770
    %v2772 = vsel %vm2250, %v2767, -inf
    %2773 = vmax.xlane.f32.xlu0 %v2772
    %v2774 = vpop.xlane.xlu0 %2773
    %v2775 = vsub.f32 %v2764, %v2771
    %v2776 = vsub.f32 %v2767, %v2774
    %v2777 = vmul.f32 %v2775, 1.442695
    %v2778 = vpow.pop %v2777
    %v2779 = vmul.f32 %v2776, 1.442695
    %v2780 = vpow.pop %v2779
    %v2781 = vsel %vm2246, %v2778, 0.0
    %2782 = vadd.xlane.f32.xlu0 %v2781
    %v2783 = vpop.xlane.xlu0 %2782
    %v2784 = vsel %vm2250, %v2780, 0.0
    %2785 = vadd.xlane.f32.xlu0 %v2784
    %v2786 = vpop.xlane.xlu0 %2785
    %v2787 = vrcp.pop %v2783
    %v2788 = vrcp.pop %v2786
    %v2789 = vmul.f32 %v2778, %v2787
    %v2790 = vmul.f32 %v2780, %v2788
    %2791 = vrot.lane.b32.xlu0 %v2636, 56
    %v2792 = vpop.permute.xlu0 %2791
    %2793 = vrot.lane.b32.xlu0 %v2635, 56
    %v2794 = vpop.permute.xlu0 %2793
    %v2797 = vsel %vm2246, %v2789, 0
    %v2800 = vsel %vm2246, %v2790, 0
    %v2802 = vsel %vm128, %v2794, 0
    %2804 = vmatpush.msra.mxu0 0.0
    %2805 = vmatpush.msra.mxu0 0.0
    %2806 = vmatpush.msra.mxu0 0.0
    %2807 = vmatpush.msra.mxu0 0.0
    %2808 = vmatpush.msra.mxu0 0.0
    %2809 = vmatpush.msra.mxu0 0.0
    %2810 = vmatpush.msra.mxu0 0.0
    %2811 = vmatpush.msra.mxu0 0.0
    %2812 = vmatpush.msra.mxu0 0.0
    %2813 = vmatpush.msra.mxu0 0.0
    %2814 = vmatpush.msra.mxu0 0.0
    %2815 = vmatpush.msra.mxu0 0.0
    %2816 = vmatpush.msra.mxu0 0.0
    %2817 = vmatpush.msra.mxu0 0.0
    %2818 = vmatpush.msra.mxu0 %v2802
    %2819 = vmatpush.msra.mxu0 %v2792
    %2820 = vmatmul.f32.gmra.mxu0 %v2797
    %v2821 = vpop.f32.mrf.mxu0
    %v2822 = vadd.f32 0.0, %v2821
    %2823 = vmatmul.f32.gmra.mxu0 %v2800
    %v2824 = vpop.f32.mrf.mxu0
    %v2825 = vadd.f32 0.0, %v2824
    %2826 = vdwg.mxu0
    %2827 = vrot.lane.b32.xlu0 %v2632, 112
    %v2828 = vpop.permute.xlu0 %2827
    %2829 = vrot.lane.b32.xlu0 %v2631, 112
    %v2830 = vpop.permute.xlu0 %2829
    %2831 = vrot.lane.b32.xlu0 %v2636, 80
    %v2832 = vpop.permute.xlu0 %2831
    %2833 = vrot.lane.b32.xlu0 %v2635, 80
    %v2834 = vpop.permute.xlu0 %2833
    %v2835 = vsel %vm236, %v2828, 0
    %v2837 = vsel %vm236, %v2830, 0
    %v2839 = vsel %vm236, %v2832, 0
    %v2841 = vsel %vm236, %v2834, 0
    %2843 = vmatpush.xpose.msra.mxu0 0.0
    %2844 = vmatpush.xpose.msra.mxu0 0.0
    %2845 = vmatpush.xpose.msra.mxu0 0.0
    %2846 = vmatpush.xpose.msra.mxu0 0.0
    %2847 = vmatpush.xpose.msra.mxu0 0.0
    %2848 = vmatpush.xpose.msra.mxu0 0.0
    %2849 = vmatpush.xpose.msra.mxu0 0.0
    %2850 = vmatpush.xpose.msra.mxu0 0.0
    %2851 = vmatpush.xpose.msra.mxu0 0.0
    %2852 = vmatpush.xpose.msra.mxu0 0.0
    %2853 = vmatpush.xpose.msra.mxu0 0.0
    %2854 = vmatpush.xpose.msra.mxu0 0.0
    %2855 = vmatpush.xpose.msra.mxu0 0.0
    %2856 = vmatpush.xpose.msra.mxu0 0.0
    %2857 = vmatpush.xpose.msra.mxu0 %v2841
    %2858 = vmatpush.xpose.msra.mxu0 %v2839
    %2859 = vmatmul.f32.gmra.mxu0 %v2835
    %v2860 = vpop.f32.mrf.mxu0
    %v2861 = vadd.f32 0.0, %v2860
    %2862 = vmatmul.f32.gmra.mxu0 %v2837
    %v2863 = vpop.f32.mrf.mxu0
    %v2864 = vadd.f32 0.0, %v2863
    %2865 = vdwg.mxu0
    %v2866 = vsel %vm2246, %v2861, -inf
    %2867 = vmax.xlane.f32.xlu0 %v2866
    %v2868 = vpop.xlane.xlu0 %2867
    %v2869 = vsel %vm2250, %v2864, -inf
    %2870 = vmax.xlane.f32.xlu0 %v2869
    %v2871 = vpop.xlane.xlu0 %2870
    %v2872 = vsub.f32 %v2861, %v2868
    %v2873 = vsub.f32 %v2864, %v2871
    %v2874 = vmul.f32 %v2872, 1.442695
    %v2875 = vpow.pop %v2874
    %v2876 = vmul.f32 %v2873, 1.442695
    %v2877 = vpow.pop %v2876
    %v2878 = vsel %vm2246, %v2875, 0.0
    %2879 = vadd.xlane.f32.xlu0 %v2878
    %v2880 = vpop.xlane.xlu0 %2879
    %v2881 = vsel %vm2250, %v2877, 0.0
    %2882 = vadd.xlane.f32.xlu0 %v2881
    %v2883 = vpop.xlane.xlu0 %2882
    %v2884 = vrcp.pop %v2880
    %v2885 = vrcp.pop %v2883
    %v2886 = vmul.f32 %v2875, %v2884
    %v2887 = vmul.f32 %v2877, %v2885
    %2888 = vrot.lane.b32.xlu0 %v2636, 48
    %v2889 = vpop.permute.xlu0 %2888
    %2890 = vrot.lane.b32.xlu0 %v2635, 48
    %v2891 = vpop.permute.xlu0 %2890
    %v2894 = vsel %vm2246, %v2886, 0
    %v2897 = vsel %vm2246, %v2887, 0
    %v2899 = vsel %vm128, %v2891, 0
    %2901 = vmatpush.msra.mxu0 0.0
    %2902 = vmatpush.msra.mxu0 0.0
    %2903 = vmatpush.msra.mxu0 0.0
    %2904 = vmatpush.msra.mxu0 0.0
    %2905 = vmatpush.msra.mxu0 0.0
    %2906 = vmatpush.msra.mxu0 0.0
    %2907 = vmatpush.msra.mxu0 0.0
    %2908 = vmatpush.msra.mxu0 0.0
    %2909 = vmatpush.msra.mxu0 0.0
    %2910 = vmatpush.msra.mxu0 0.0
    %2911 = vmatpush.msra.mxu0 0.0
    %2912 = vmatpush.msra.mxu0 0.0
    %2913 = vmatpush.msra.mxu0 0.0
    %2914 = vmatpush.msra.mxu0 0.0
    %2915 = vmatpush.msra.mxu0 %v2899
    %2916 = vmatpush.msra.mxu0 %v2889
    %2917 = vmatmul.f32.gmra.mxu0 %v2894
    %v2918 = vpop.f32.mrf.mxu0
    %v2919 = vadd.f32 0.0, %v2918
    %2920 = vmatmul.f32.gmra.mxu0 %v2897
    %v2921 = vpop.f32.mrf.mxu0
    %v2922 = vadd.f32 0.0, %v2921
    %2923 = vdwg.mxu0
    %2924 = vrot.lane.b32.xlu0 %v2632, 104
    %v2925 = vpop.permute.xlu0 %2924
    %2926 = vrot.lane.b32.xlu0 %v2631, 104
    %v2927 = vpop.permute.xlu0 %2926
    %2928 = vrot.lane.b32.xlu0 %v2636, 72
    %v2929 = vpop.permute.xlu0 %2928
    %2930 = vrot.lane.b32.xlu0 %v2635, 72
    %v2931 = vpop.permute.xlu0 %2930
    %v2932 = vsel %vm236, %v2925, 0
    %v2934 = vsel %vm236, %v2927, 0
    %v2936 = vsel %vm236, %v2929, 0
    %v2938 = vsel %vm236, %v2931, 0
    %2940 = vmatpush.xpose.msra.mxu0 0.0
    %2941 = vmatpush.xpose.msra.mxu0 0.0
    %2942 = vmatpush.xpose.msra.mxu0 0.0
    %2943 = vmatpush.xpose.msra.mxu0 0.0
    %2944 = vmatpush.xpose.msra.mxu0 0.0
    %2945 = vmatpush.xpose.msra.mxu0 0.0
    %2946 = vmatpush.xpose.msra.mxu0 0.0
    %2947 = vmatpush.xpose.msra.mxu0 0.0
    %2948 = vmatpush.xpose.msra.mxu0 0.0
    %2949 = vmatpush.xpose.msra.mxu0 0.0
    %2950 = vmatpush.xpose.msra.mxu0 0.0
    %2951 = vmatpush.xpose.msra.mxu0 0.0
    %2952 = vmatpush.xpose.msra.mxu0 0.0
    %2953 = vmatpush.xpose.msra.mxu0 0.0
    %2954 = vmatpush.xpose.msra.mxu0 %v2938
    %2955 = vmatpush.xpose.msra.mxu0 %v2936
    %2956 = vmatmul.f32.gmra.mxu0 %v2932
    %v2957 = vpop.f32.mrf.mxu0
    %v2958 = vadd.f32 0.0, %v2957
    %2959 = vmatmul.f32.gmra.mxu0 %v2934
    %v2960 = vpop.f32.mrf.mxu0
    %v2961 = vadd.f32 0.0, %v2960
    %2962 = vdwg.mxu0
    %v2963 = vsel %vm2246, %v2958, -inf
    %2964 = vmax.xlane.f32.xlu0 %v2963
    %v2965 = vpop.xlane.xlu0 %2964
    %v2966 = vsel %vm2250, %v2961, -inf
    %2967 = vmax.xlane.f32.xlu0 %v2966
    %v2968 = vpop.xlane.xlu0 %2967
    %v2969 = vsub.f32 %v2958, %v2965
    %v2970 = vsub.f32 %v2961, %v2968
    %v2971 = vmul.f32 %v2969, 1.442695
    %v2972 = vpow.pop %v2971
    %v2973 = vmul.f32 %v2970, 1.442695
    %v2974 = vpow.pop %v2973
    %v2975 = vsel %vm2246, %v2972, 0.0
    %2976 = vadd.xlane.f32.xlu0 %v2975
    %v2977 = vpop.xlane.xlu0 %2976
    %v2978 = vsel %vm2250, %v2974, 0.0
    %2979 = vadd.xlane.f32.xlu0 %v2978
    %v2980 = vpop.xlane.xlu0 %2979
    %v2981 = vrcp.pop %v2977
    %v2982 = vrcp.pop %v2980
    %v2983 = vmul.f32 %v2972, %v2981
    %v2984 = vmul.f32 %v2974, %v2982
    %2985 = vrot.lane.b32.xlu0 %v2636, 40
    %v2986 = vpop.permute.xlu0 %2985
    %2987 = vrot.lane.b32.xlu0 %v2635, 40
    %v2988 = vpop.permute.xlu0 %2987
    %v2991 = vsel %vm2246, %v2983, 0
    %v2994 = vsel %vm2246, %v2984, 0
    %v2996 = vsel %vm128, %v2988, 0
    %2998 = vmatpush.msra.mxu0 0.0
    %2999 = vmatpush.msra.mxu0 0.0
    %3000 = vmatpush.msra.mxu0 0.0
    %3001 = vmatpush.msra.mxu0 0.0
    %3002 = vmatpush.msra.mxu0 0.0
    %3003 = vmatpush.msra.mxu0 0.0
    %3004 = vmatpush.msra.mxu0 0.0
    %3005 = vmatpush.msra.mxu0 0.0
    %3006 = vmatpush.msra.mxu0 0.0
    %3007 = vmatpush.msra.mxu0 0.0
    %3008 = vmatpush.msra.mxu0 0.0
    %3009 = vmatpush.msra.mxu0 0.0
    %3010 = vmatpush.msra.mxu0 0.0
    %3011 = vmatpush.msra.mxu0 0.0
    %3012 = vmatpush.msra.mxu0 %v2996
    %3013 = vmatpush.msra.mxu0 %v2986
    %3014 = vmatmul.f32.gmra.mxu0 %v2991
    %v3015 = vpop.f32.mrf.mxu0
    %v3016 = vadd.f32 0.0, %v3015
    %3017 = vmatmul.f32.gmra.mxu0 %v2994
    %v3018 = vpop.f32.mrf.mxu0
    %v3019 = vadd.f32 0.0, %v3018
    %3020 = vdwg.mxu0
    %3023 = vrot.lane.b32.xlu0 %v2822, 8
    %v3024 = vpop.permute.xlu0 %3023
    %3025 = vrot.lane.b32.xlu0 %v2825, 8
    %v3026 = vpop.permute.xlu0 %3025
    %3031 = vrot.lane.b32.xlu0 %v2919, 16
    %v3032 = vpop.permute.xlu0 %3031
    %3033 = vrot.lane.b32.xlu0 %v2922, 16
    %v3034 = vpop.permute.xlu0 %3033
    %3039 = vrot.lane.b32.xlu0 %v3016, 24
    %v3040 = vpop.permute.xlu0 %3039
    %3041 = vrot.lane.b32.xlu0 %v3019, 24
    %v3042 = vpop.permute.xlu0 %3041
    %v3045 = vsel %vm236, %v2725, %v3024
    %v3046 = vsel %vm236, %v2728, %v3026
    %v3047 = vsel %vm513, %v3045, %v3032
    %v3048 = vsel %vm513, %v3046, %v3034
    %v3049 = vsel %vm515, %v3047, %v3040
    %v3050 = vsel %vm515, %v3048, %v3042
    %v3053 = vrot.slane %v3049, 7
    %v3054 = vrot.slane %v3050, 7
    %v3055 = vsel %vm128, %v3053, %v3054
    %v3057 = vsel %vm128, %v2626, %v3053
    %v3059 = vsel %vm96, %v2625, 0
    %v3062 = vsel %vm96, %v3057, 0
    %v3064 = vsel %vm96, %v3055, 0
    %3066 = vmatpush.msra.mxu0 0.0
    %3067 = vmatpush.msra.mxu0 0.0
    %3068 = vmatpush.msra.mxu0 0.0
    %3069 = vmatpush.msra.mxu0 0.0
    %3070 = vmatpush.msra.mxu0 0.0
    %3071 = vmatpush.msra.mxu0 0.0
    %3072 = vmatpush.msra.mxu0 0.0
    %3073 = vmatpush.msra.mxu0 0.0
    %3074 = vmatpush.msra.mxu0 0.0
    %3075 = vmatpush.msra.mxu0 0.0
    %3076 = vmatpush.msra.mxu0 0.0
    %3077 = vmatpush.msra.mxu0 0.0
    %3078 = vmatpush.msra.mxu0 %v2073
    %3079 = vmatpush.msra.mxu0 %v2072
    %3080 = vmatpush.msra.mxu0 %v2071
    %3081 = vmatpush.msra.mxu0 %v2070
    %3082 = vmatmul.f32.gmra.mxu0 %v3059
    %v3083 = vpop.f32.mrf.mxu0
    %v3084 = vadd.f32 0.0, %v3083
    %3085 = vmatmul.f32.gmra.mxu0 %v3062
    %v3086 = vpop.f32.mrf.mxu0
    %v3087 = vadd.f32 0.0, %v3086
    %3088 = vmatmul.f32.gmra.mxu0 %v3064
    %v3089 = vpop.f32.mrf.mxu0
    %v3090 = vadd.f32 0.0, %v3089
    %3091 = vdwg.mxu0
    %v3092 = vadd.f32 %v2055, %v3084
    %v3093 = vadd.f32 %v2056, %v3087
    %v3094 = vadd.f32 %v2057, %v3090
    %v3095 = vperm.slane %v2061, 0
    %v3096 = vadd.f32 %v3092, %v3095
    %v3097 = vadd.f32 %v3093, %v3095
    %v3098 = vadd.f32 %v3094, %v3095
    %v3099 = vsel %vm96, %v3096, 0.0
    %3100 = vadd.xlane.f32.xlu0 %v3099
    %v3101 = vpop.xlane.xlu0 %3100
    %v3102 = vsel %vm96, %v3097, 0.0
    %3103 = vadd.xlane.f32.xlu0 %v3102
    %v3104 = vpop.xlane.xlu0 %3103
    %v3105 = vsel %vm2100, %v3098, 0.0
    %3106 = vadd.xlane.f32.xlu0 %v3105
    %v3107 = vpop.xlane.xlu0 %3106
    %v3108 = vmul.f32 %v3101, %v184
    %v3109 = vmul.f32 %v3104, %v184
    %v3110 = vmul.f32 %v3107, %v184
    %v3111 = vsub.f32 %v3096, %v3108
    %v3112 = vsub.f32 %v3097, %v3109
    %v3113 = vsub.f32 %v3098, %v3110
    %v3114 = vmul.f32 %v3111, %v3111
    %v3115 = vmul.f32 %v3112, %v3112
    %v3116 = vmul.f32 %v3113, %v3113
    %v3117 = vsel %vm96, %v3114, 0.0
    %3118 = vadd.xlane.f32.xlu0 %v3117
    %v3119 = vpop.xlane.xlu0 %3118
    %v3120 = vsel %vm96, %v3115, 0.0
    %3121 = vadd.xlane.f32.xlu0 %v3120
    %v3122 = vpop.xlane.xlu0 %3121
    %v3123 = vsel %vm2100, %v3116, 0.0
    %3124 = vadd.xlane.f32.xlu0 %v3123
    %v3125 = vpop.xlane.xlu0 %3124
    %v3126 = vmul.f32 %v3119, %v184
    %v3127 = vmul.f32 %v3122, %v184
    %v3128 = vmul.f32 %v3125, %v184
    %v3129 = vadd.f32 %v3126, 1e-05
    %v3130 = vadd.f32 %v3127, 1e-05
    %v3131 = vadd.f32 %v3128, 1e-05
    %v3132 = vrsqrt.pop %v3129
    %v3133 = vmul.f32 %v3132, %v3129
    %v3134 = vmul.f32 %v3133, %v3132
    %v3135 = vmul.f32 0.5, %v3134
    %v3136 = vsub.f32 1.5, %v3135
    %v3137 = vmul.f32 %v3132, %v3136
    %vm3138 = vweird.f32 %v3129
    %vm3139 = vweird.f32 %v3132
    %vm3140 = vmor %vm3138, %vm3139
    %v3141 = vsel %vm3140, %v3132, %v3137
    %v3142 = vrsqrt.pop %v3130
    %v3143 = vmul.f32 %v3142, %v3130
    %v3144 = vmul.f32 %v3143, %v3142
    %v3145 = vmul.f32 0.5, %v3144
    %v3146 = vsub.f32 1.5, %v3145
    %v3147 = vmul.f32 %v3142, %v3146
    %vm3148 = vweird.f32 %v3130
    %vm3149 = vweird.f32 %v3142
    %vm3150 = vmor %vm3148, %vm3149
    %v3151 = vsel %vm3150, %v3142, %v3147
    %v3152 = vrsqrt.pop %v3131
    %v3153 = vmul.f32 %v3152, %v3131
    %v3154 = vmul.f32 %v3153, %v3152
    %v3155 = vmul.f32 0.5, %v3154
    %v3156 = vsub.f32 1.5, %v3155
    %v3157 = vmul.f32 %v3152, %v3156
    %vm3158 = vweird.f32 %v3131
    %vm3159 = vweird.f32 %v3152
    %vm3160 = vmor %vm3158, %vm3159
    %v3161 = vsel %vm3160, %v3152, %v3157
    %v3162 = vmul.f32 %v3111, %v3141
    %v3163 = vmul.f32 %v3112, %v3151
    %v3164 = vmul.f32 %v3113, %v3161
    %v3165 = vperm.slane %v2062, 0
    %v3166 = vmul.f32 %v3162, %v3165
    %v3167 = vmul.f32 %v3163, %v3165
    %v3168 = vmul.f32 %v3164, %v3165
    %v3169 = vperm.slane %v2063, 0
    %v3170 = vadd.f32 %v3166, %v3169
    %v3171 = vadd.f32 %v3167, %v3169
    %v3172 = vadd.f32 %v3168, %v3169
    %v3173 = vperm.slane %v2064, 0
    %v3175 = vsel %vm96, %v3170, 0
    %v3178 = vsel %vm96, %v3171, 0
    %v3181 = vsel %vm96, %v3172, 0
    %3183 = vmatpush.msra.mxu0 0.0
    %3184 = vmatpush.msra.mxu0 0.0
    %3185 = vmatpush.msra.mxu0 0.0
    %3186 = vmatpush.msra.mxu0 0.0
    %3187 = vmatpush.msra.mxu0 0.0
    %3188 = vmatpush.msra.mxu0 0.0
    %3189 = vmatpush.msra.mxu0 0.0
    %3190 = vmatpush.msra.mxu0 0.0
    %3191 = vmatpush.msra.mxu0 0.0
    %3192 = vmatpush.msra.mxu0 0.0
    %3193 = vmatpush.msra.mxu0 0.0
    %3194 = vmatpush.msra.mxu0 0.0
    %3195 = vmatpush.msra.mxu0 %v2077
    %3196 = vmatpush.msra.mxu0 %v2076
    %3197 = vmatpush.msra.mxu0 %v2075
    %3198 = vmatpush.msra.mxu0 %v2074
    %3199 = vmatmul.f32.gmra.mxu0 %v3175
    %v3200 = vpop.f32.mrf.mxu0
    %v3201 = vadd.f32 %v3173, %v3200
    %3202 = vmatmul.f32.gmra.mxu0 %v3178
    %v3203 = vpop.f32.mrf.mxu0
    %v3204 = vadd.f32 %v3173, %v3203
    %3205 = vmatmul.f32.gmra.mxu0 %v3181
    %v3206 = vpop.f32.mrf.mxu0
    %v3207 = vadd.f32 %v3173, %v3206
    %3208 = vdwg.mxu0
    %v3209 = vmul.f32 %v3201, 0.5
    %v3210 = vmul.f32 %v3204, 0.5
    %v3211 = vmul.f32 %v3207, 0.5
    %v3212 = vmul.f32 %v3201, 0.044715
    %v3213 = vmul.f32 %v3204, 0.044715
    %v3214 = vmul.f32 %v3207, 0.044715
    %v3215 = vmul.f32 %v3212, %v3201
    %v3216 = vmul.f32 %v3213, %v3204
    %v3217 = vmul.f32 %v3214, %v3207
    %v3218 = vmul.f32 %v3215, %v3201
    %v3219 = vmul.f32 %v3216, %v3204
    %v3220 = vmul.f32 %v3217, %v3207
    %v3221 = vadd.f32 %v3201, %v3218
    %v3222 = vadd.f32 %v3204, %v3219
    %v3223 = vadd.f32 %v3207, %v3220
    %v3224 = vmul.f32 %v3221, 0.7978846
    %v3225 = vmul.f32 %v3222, 0.7978846
    %v3226 = vmul.f32 %v3223, 0.7978846
    %v3227 = vtanh.pop %v3224
    %v3228 = vtanh.pop %v3225
    %v3229 = vtanh.pop %v3226
    %v3230 = vadd.f32 %v3227, 1.0
    %v3231 = vadd.f32 %v3228, 1.0
    %v3232 = vadd.f32 %v3229, 1.0
    %v3233 = vmul.f32 %v3209, %v3230
    %v3234 = vmul.f32 %v3210, %v3231
    %v3235 = vmul.f32 %v3211, %v3232
    %3236 = vmatpush.msra.mxu0 %v2093
    %3237 = vmatpush.msra.mxu0 %v2092
    %3238 = vmatpush.msra.mxu0 %v2091
    %3239 = vmatpush.msra.mxu0 %v2090
    %3240 = vmatpush.msra.mxu0 %v2089
    %3241 = vmatpush.msra.mxu0 %v2088
    %3242 = vmatpush.msra.mxu0 %v2087
    %3243 = vmatpush.msra.mxu0 %v2086
    %3244 = vmatpush.msra.mxu0 %v2085
    %3245 = vmatpush.msra.mxu0 %v2084
    %3246 = vmatpush.msra.mxu0 %v2083
    %3247 = vmatpush.msra.mxu0 %v2082
    %3248 = vmatpush.msra.mxu0 %v2081
    %3249 = vmatpush.msra.mxu0 %v2080
    %3250 = vmatpush.msra.mxu0 %v2079
    %3251 = vmatpush.msra.mxu0 %v2078
    %3252 = vmatmul.f32.gmra.mxu0 %v3233
    %v3253 = vpop.f32.mrf.mxu0
    %v3254 = vadd.f32 0.0, %v3253
    %3255 = vmatmul.f32.gmra.mxu0 %v3234
    %v3256 = vpop.f32.mrf.mxu0
    %v3257 = vadd.f32 0.0, %v3256
    %3258 = vmatmul.f32.gmra.mxu0 %v3235
    %v3259 = vpop.f32.mrf.mxu0
    %v3260 = vadd.f32 0.0, %v3259
    %3261 = vdwg.mxu0
    %v3262 = vadd.f32 %v3096, %v3254
    %v3263 = vadd.f32 %v3097, %v3257
    %v3264 = vadd.f32 %v3098, %v3260
    %v3265 = vperm.slane %v2065, 0
    %v3266 = vadd.f32 %v3262, %v3265
    %v3267 = vadd.f32 %v3263, %v3265
    %v3268 = vadd.f32 %v3264, %v3265
    %v3269 = vsel %vm96, %v3266, 0.0
    %3270 = vadd.xlane.f32.xlu0 %v3269
    %v3271 = vpop.xlane.xlu0 %3270
    %v3272 = vsel %vm96, %v3267, 0.0
    %3273 = vadd.xlane.f32.xlu0 %v3272
    %v3274 = vpop.xlane.xlu0 %3273
    %v3275 = vsel %vm2100, %v3268, 0.0
    %3276 = vadd.xlane.f32.xlu0 %v3275
    %v3277 = vpop.xlane.xlu0 %3276
    %v3278 = vmul.f32 %v3271, %v184
    %v3279 = vmul.f32 %v3274, %v184
    %v3280 = vmul.f32 %v3277, %v184
    %v3281 = vsub.f32 %v3266, %v3278
    %v3282 = vsub.f32 %v3267, %v3279
    %v3283 = vsub.f32 %v3268, %v3280
    %v3284 = vmul.f32 %v3281, %v3281
    %v3285 = vmul.f32 %v3282, %v3282
    %v3286 = vmul.f32 %v3283, %v3283
    %v3287 = vsel %vm96, %v3284, 0.0
    %3288 = vadd.xlane.f32.xlu0 %v3287
    %v3289 = vpop.xlane.xlu0 %3288
    %v3290 = vsel %vm96, %v3285, 0.0
    %3291 = vadd.xlane.f32.xlu0 %v3290
    %v3292 = vpop.xlane.xlu0 %3291
    %v3293 = vsel %vm2100, %v3286, 0.0
    %3294 = vadd.xlane.f32.xlu0 %v3293
    %v3295 = vpop.xlane.xlu0 %3294
    %v3296 = vmul.f32 %v3289, %v184
    %v3297 = vmul.f32 %v3292, %v184
    %v3298 = vmul.f32 %v3295, %v184
    %v3299 = vadd.f32 %v3296, 1e-05
    %v3300 = vadd.f32 %v3297, 1e-05
    %v3301 = vadd.f32 %v3298, 1e-05
    %v3302 = vrsqrt.pop %v3299
    %v3303 = vmul.f32 %v3302, %v3299
    %v3304 = vmul.f32 %v3303, %v3302
    %v3305 = vmul.f32 0.5, %v3304
    %v3306 = vsub.f32 1.5, %v3305
    %v3307 = vmul.f32 %v3302, %v3306
    %vm3308 = vweird.f32 %v3299
    %vm3309 = vweird.f32 %v3302
    %vm3310 = vmor %vm3308, %vm3309
    %v3311 = vsel %vm3310, %v3302, %v3307
    %v3312 = vrsqrt.pop %v3300
    %v3313 = vmul.f32 %v3312, %v3300
    %v3314 = vmul.f32 %v3313, %v3312
    %v3315 = vmul.f32 0.5, %v3314
    %v3316 = vsub.f32 1.5, %v3315
    %v3317 = vmul.f32 %v3312, %v3316
    %vm3318 = vweird.f32 %v3300
    %vm3319 = vweird.f32 %v3312
    %vm3320 = vmor %vm3318, %vm3319
    %v3321 = vsel %vm3320, %v3312, %v3317
    %v3322 = vrsqrt.pop %v3301
    %v3323 = vmul.f32 %v3322, %v3301
    %v3324 = vmul.f32 %v3323, %v3322
    %v3325 = vmul.f32 0.5, %v3324
    %v3326 = vsub.f32 1.5, %v3325
    %v3327 = vmul.f32 %v3322, %v3326
    %vm3328 = vweird.f32 %v3301
    %vm3329 = vweird.f32 %v3322
    %vm3330 = vmor %vm3328, %vm3329
    %v3331 = vsel %vm3330, %v3322, %v3327
    %v3332 = vmul.f32 %v3281, %v3311
    %v3333 = vmul.f32 %v3282, %v3321
    %v3334 = vmul.f32 %v3283, %v3331
    %v3335 = vperm.slane %v54, 5
    %v3336 = vmul.f32 %v3332, %v3335
    %v3337 = vmul.f32 %v3333, %v3335
    %v3338 = vmul.f32 %v3334, %v3335
    %v3339 = vperm.slane %v54, 6
    %v3340 = vadd.f32 %v3336, %v3339
    %v3341 = vadd.f32 %v3337, %v3339
    %v3342 = vadd.f32 %v3338, %v3339
    %v3343 = vld [vmem:[%s10] sm:$0xff]
    %v3344 = vld [vmem:[%s10 + $0x8] sm:$0xff]
    %v3345 = vld [vmem:[%s10 + $0x10] sm:$0xff]
    %v3346 = vld [vmem:[%s10 + $0x18] sm:$0xff]
    %v3347 = vperm.slane %v54, 7
    %v3349 = vsel %vm96, %v3340, 0
    %v3352 = vsel %vm96, %v3341, 0
    %v3355 = vsel %vm96, %v3342, 0
    %3357 = vmatpush.msra.mxu0 0.0
    %3358 = vmatpush.msra.mxu0 0.0
    %3359 = vmatpush.msra.mxu0 0.0
    %3360 = vmatpush.msra.mxu0 0.0
    %3361 = vmatpush.msra.mxu0 0.0
    %3362 = vmatpush.msra.mxu0 0.0
    %3363 = vmatpush.msra.mxu0 0.0
    %3364 = vmatpush.msra.mxu0 0.0
    %3365 = vmatpush.msra.mxu0 0.0
    %3366 = vmatpush.msra.mxu0 0.0
    %3367 = vmatpush.msra.mxu0 0.0
    %3368 = vmatpush.msra.mxu0 0.0
    %3369 = vmatpush.msra.mxu0 %v3346
    %3370 = vmatpush.msra.mxu0 %v3345
    %3371 = vmatpush.msra.mxu0 %v3344
    %3372 = vmatpush.msra.mxu0 %v3343
    %3373 = vmatmul.f32.gmra.mxu0 %v3349
    %v3374 = vpop.f32.mrf.mxu0
    %v3375 = vadd.f32 %v3347, %v3374
    %3376 = vmatmul.f32.gmra.mxu0 %v3352
    %v3377 = vpop.f32.mrf.mxu0
    %v3378 = vadd.f32 %v3347, %v3377
    %3379 = vmatmul.f32.gmra.mxu0 %v3355
    %v3380 = vpop.f32.mrf.mxu0
    %v3381 = vadd.f32 %v3347, %v3380
    %3382 = vdwg.mxu0
    %v3385 = vrot.slane %v3375, 1
    %v3386 = vrot.slane %v3378, 1
    %v3387 = vsel %vm2629, %v3385, %v3386
    %vm3390 = vcmask 1045504
    %v3391 = vrot.slane %v3378, 2
    %v3392 = vrot.slane %v3381, 2
    %v3393 = vsel %vm3390, %v3391, %v3392
    %3395 = vst.msk [vmem:[#allocation8] sm:$0xff] %vm66, %v3387
    %3396 = vst.msk [vmem:[#allocation8 + $0x8] sm:$0xff] %vm66, %v3393
    %v3397 = vsub.f32 %v3387, %v55
    %v3398 = vsub.f32 %v3393, %v56
    %v3399 = vmul.f32 %v3397, %v3397
    %v3400 = vmul.f32 %v3398, %v3398
    %v3401 = vsel %vm66, %v3399, 0.0
    %3402 = vadd.xlane.f32.xlu0 %v3401
    %v3403 = vpop.xlane.xlu0 %3402
    %v3404 = vsel %vm66, %v3400, 0.0
    %3405 = vadd.xlane.f32.xlu0 %v3404
    %v3406 = vpop.xlane.xlu0 %3405
    %v3407 = vrcp.pop 64.0
    %v3408 = vmul.f32 64.0, %v3407
    %v3409 = vsub.f32 1.0, %v3408
    %v3410 = vmul.f32 %v3407, %v3409
    %v3411 = vadd.f32 %v3407, %v3410
    %vm3412 = vweird.f32 %v3407
    %v3413 = vsel %vm3412, %v3407, %v3411
    %v3414 = vmul.f32 %v3403, %v3413
    %v3415 = vmul.f32 %v3406, %v3413
    %v3416 = vld [vmem:[%s11] sm:$0xff]
    %v3417 = vld [vmem:[%s11 + $0x8] sm:$0xff]
    %v3418 = vmul.f32 %v3414, %v3416
    %v3419 = vmul.f32 %v3415, %v3417
    %vm3420 = vcmask 7168
    %v3421 = vsel %vm3420, %v3418, 0.0
    %v3422 = vsel %vm3420, %v3419, 0.0
    %v3423 = vadd.f32 %v3421, %v3422
    %v3424 = vrot.slane %v3423, 4
    %v3425 = vadd.f32 %v3423, %v3424
    %v3426 = vrot.slane %v3425, 2
    %v3427 = vadd.f32 %v3425, %v3426
    %v3428 = vrot.slane %v3427, 1
    %v3429 = vadd.f32 %v3427, %v3428
    %v3430 = vsel %vm3420, %v3416, 0.0
    %v3431 = vsel %vm3420, %v3417, 0.0
    %v3432 = vadd.f32 %v3430, %v3431
    %v3433 = vrot.slane %v3432, 4
    %v3434 = vadd.f32 %v3432, %v3433
    %v3435 = vrot.slane %v3434, 2
    %v3436 = vadd.f32 %v3434, %v3435
    %v3437 = vrot.slane %v3436, 1
    %v3438 = vadd.f32 %v3436, %v3437
    %v3439 = vrcp.pop %v3438
    %v3440 = vmul.f32 %v3438, %v3439
    %v3441 = vsub.f32 1.0, %v3440
    %v3442 = vmul.f32 %v3439, %v3441
    %v3443 = vadd.f32 %v3439, %v3442
    %vm3444 = vweird.f32 %v3438
    %vm3445 = vweird.f32 %v3439
    %vm3446 = vmor %vm3444, %vm3445
    %v3447 = vsel %vm3446, %v3439, %v3443
    %v3448 = vand.u32 2147483647, %v3438
    %vm3449 = vcmp.eq.f32.partialorder %v3448, 8.507059e+37
    %v3450 = vand.u32 %v3438, 2147483648
    %v3451 = vor.u32 1.1754944e-38, %v3450
    %v3452 = vsel %vm3449, %v3451, %v3447
    %v3453 = vmul.f32 %v3429, %v3452
    %vm3454 = vcmask 0
    %3455 = vst.msk [vmem:[#allocation10] sm:$0x1] %vm3454, %v3453
    // Predicated region
    $region42: #{mae_forward.3} parent=1 // pred_check
      _
    $region43: #{mae_forward.3} parent=1 // pred_check_branch
      %3457 = sbr.rel (0) target = $region45
    $region44: #{mae_forward.3} parent=1 // pred_region
      %3459 = vsyncadd [#allocation9], 0
      %s3460 = sshll.u32 [#allocation8], 4
      %s3461 = int_to_ptr.vmem [resolvable:$true] %s3460
      %s3462 = sshll.u32 %s12, 4
      %s3463 = int_to_ptr.hbm [resolvable:$true] %s3462
      %3468 = dma.vmem_to_hbm [thread:$0]  %s3461, 256, %s3463, [#allocation9], 128, 128, 8
    $region45: #{mae_forward.3} parent=1 // pred_fallthru
      _
    // Predicated region
    $region46: #{mae_forward.3} parent=1 // pred_check
      _
    $region47: #{mae_forward.3} parent=1 // pred_check_branch
      %3470 = sbr.rel (0) target = $region49
    $region48: #{mae_forward.3} parent=1 // pred_region
      %3472 = vsyncadd [#allocation11], 0
      %s3474 = sshll.u32 [#allocation10], 4
      %s3475 = int_to_ptr.vmem [resolvable:$true] %s3474
      %s3476 = sshll.u32 %s13, 4
      %s3477 = int_to_ptr.hbm [resolvable:$true] %s3476
      %3479 = dma.vmem_to_hbm [thread:$0]  %s3475, 16, %s3477, [#allocation11]
    $region49: #{mae_forward.3} parent=1 // pred_fallthru
      _
    // Predicated region
    $region50: #{mae_forward.3} parent=1 // pred_check
      _
    $region51: #{mae_forward.3} parent=1 // pred_check_branch
      %3481 = sbr.rel (0) target = $region53
    $region52: #{mae_forward.3} parent=1 // pred_region
      %3483 = dma.done [#allocation9], 256
    $region53: #{mae_forward.3} parent=1 // pred_fallthru
      _
    // Predicated region
    $region54: #{mae_forward.3} parent=1 // pred_check
      _
    $region55: #{mae_forward.3} parent=1 // pred_check_branch
      %3485 = sbr.rel (0) target = $region57
    $region56: #{mae_forward.3} parent=1 // pred_region
      %3487 = dma.done [#allocation11], 16
    $region57: #{mae_forward.3} parent=1 // pred_fallthru
      _
    %3488 = vsyncpa [#allocation9], 1
    %3489 = vsyncpa [#allocation11], 1

</llo_original>
